<compile_context>
chip_gen: v7x
topology: tpu7x:2x2x1
jax: 0.10.0
libtpu: 0.0.40
codegen_flags: <defaults>
</compile_context>

<pallas_src>
import jax
import jax.numpy as jnp
from jax import lax
from jax.experimental import pallas as pl
from jax.experimental.pallas import tpu as pltpu
import numpy as np

# ---------------- static problem configuration ----------------
B, C, OUP = 2, 8, 8          # batch, inp, oup
K = 3                        # kernel_size
K2 = K * K
PAD = K // 2
HIN = WIN = 12               # input spatial
H, W = HIN, WIN              # generate conv is stride 1 -> same spatial
HW = H * W
MIP = max(8, C // 32)        # reduction=32
EPS = 1e-5
L = (H + 2 * PAD) * W + 2 * PAD   # flattened, H-padded + lane-padded input length


def _hswish(y):
    return y * (jnp.clip(y + 3.0, 0.0, 6.0) * (1.0 / 6.0))


def _sigmoid(z):
    # exp -> EUP, approx reciprocal -> EUP: keeps the VALU slot clear.
    return pl.reciprocal(1.0 + jnp.exp(-z), approx=True)


# ---------------- fused Pallas kernel ----------------
def rfca_kernel(xe_ref, qm_ref, wg_ref, bg_ref, w1_ref, b1_ref,
                wh_ref, bh_ref, ww_ref, bw_ref, wf_ref, bf_ref,
                shw_ref, erep_ref, etil_ref, o_ref):
    """Fused RFCAConv forward for one batch element.  grid = (B,).

    Layouts (all channel-major, flattened spatial on lanes):
      xe_ref  : (1, C, L)        zero-padded (H) + flattened input, lane offset o + p*W + q
                                 addresses tap (p, q) of output position o = h*W + w
      qm_ref  : (K, HW)          per-q lane masks for the W boundary
      wg_ref  : (C, K2*K*K)      generate-conv weights (BN folded), col = (m*K+p)*K + q
      o_ref   : (1, OUP, HW)     lane-dense output block
    """
    xe = xe_ref[0]                                   # (C, L)
    qm = qm_ref[...]                                 # (K, HW)
    wg = wg_ref[...]                                 # (C, 81)
    bg = bg_ref[...]                                 # (C, K2)

    # ---- 1) shifted + masked input planes, one per (p, q) offset (shared by all taps) ----
    planes = []
    for p in range(K):
        for q in range(K):
            s = p * W + q
            plane = xe[:, s:s + HW]                  # (C, HW)
            if q != PAD:                             # zero the wrapped W-boundary lanes
                plane = plane * qm[q:q + 1, :]
            planes.append(plane)

    # ---- 2) generate: depthwise KxK conv (+folded BN) + ReLU, all taps, lane-dense ----
    feat_blocks = []                                 # K2 x (C, HW), tap m = n1*K + n2
    for m in range(K2):
        acc = wg[:, m * K2:m * K2 + 1] * planes[0]
        for j in range(1, K2):
            acc = acc + wg[:, m * K2 + j:m * K2 + j + 1] * planes[j]
        feat_blocks.append(jnp.maximum(acc + bg[:, m:m + 1], 0.0))
    feat = jnp.concatenate(feat_blocks, axis=0)      # (K2*C, HW)

    # ---- 3) pool_h / pool_w as ONE MXU matmul vs constant selector (divisors folded) ----
    pooled = jnp.dot(feat, shw_ref[...], preferred_element_type=jnp.float32)  # (K2*C, H+W)
    ph, pw = [], []
    for n1 in range(K):                              # sum over n2 -> (C, H)
        t = pooled[(n1 * K) * C:(n1 * K) * C + C, 0:H]
        for n2 in range(1, K):
            r = (n1 * K + n2) * C
            t = t + pooled[r:r + C, 0:H]
        ph.append(t)
    for n2 in range(K):                              # sum over n1 -> (C, W)
        t = pooled[n2 * C:n2 * C + C, H:H + W]
        for n1 in range(1, K):
            r = (n1 * K + n2) * C
            t = t + pooled[r:r + C, H:H + W]
        pw.append(t)
    pools = jnp.concatenate(ph + pw, axis=1)         # (C, K*(H+W)) = (C, 72)

    # ---- 4) coordinate attention: shared conv1(+bn1)+h_swish once, then conv_h / conv_w ----
    y = jnp.dot(w1_ref[...], pools, preferred_element_type=jnp.float32) + b1_ref[...]
    y = _hswish(y)                                   # (MIP, 72)
    zh = jnp.dot(wh_ref[...], y[:, :K * H], preferred_element_type=jnp.float32) + bh_ref[...]
    zw = jnp.dot(ww_ref[...], y[:, K * H:], preferred_element_type=jnp.float32) + bw_ref[...]
    ah = _sigmoid(zh)                                # (C, K*H), col = n1*H + h
    aw = _sigmoid(zw)                                # (C, K*W), col = n2*W + w

    # ---- 5) expand a_h / a_w to flattened spatial via constant 0/1 selectors (MXU) ----
    erep = erep_ref[...]                             # (H, HW): repeat each h over w
    etil = etil_ref[...]                             # (W, HW): tile w over h
    ah_e = [jnp.dot(ah[:, n1 * H:(n1 + 1) * H], erep, preferred_element_type=jnp.float32)
            for n1 in range(K)]                      # (C, HW): a_h[n1][c, h]
    aw_e = [jnp.dot(aw[:, n2 * W:(n2 + 1) * W], etil, preferred_element_type=jnp.float32)
            for n2 in range(K)]                      # (C, HW): a_w[n2][c, w]

    # ---- 6) modulate in vregs + final KxK/stride-K conv as ONE matmul, lane-dense store ----
    rhs_blocks = []
    for n1 in range(K):
        for n2 in range(K):
            m = n1 * K + n2
            rhs_blocks.append(feat_blocks[m] * ah_e[n1] * aw_e[n2])
    rhs = jnp.concatenate(rhs_blocks, axis=0)        # (K2*C, HW)
    out = jnp.dot(wf_ref[...], rhs, preferred_element_type=jnp.float32) + bf_ref[...]
    o_ref[0, :, :] = out                             # (OUP, HW)


# ---------------- wrapper ----------------
def rfca_forward_pallas(x, p):
    # fold BN of the generate branch into the grouped conv (glue)
    g_scale = p['g_gamma'] / jnp.sqrt(p['g_var'] + EPS)            # (C*K2,)
    wg_eff = p['Wg'][:, 0] * g_scale[:, None, None]                # (C*K2, K, K), row c*K2+m
    bg_eff = p['g_beta'] - p['g_mean'] * g_scale                   # (C*K2,)
    wgk = wg_eff.reshape(C, K2 * K * K)                            # (C, 81), col (m*K+p)*K+q
    bgk = bg_eff.reshape(C, K2)                                    # (C, K2)

    # fold bn1 into conv1 (glue); pool divisors are folded into the selector matrix
    s1 = p['bn1_gamma'] / jnp.sqrt(p['bn1_var'] + EPS)
    w1f = p['W1'] * s1[:, None]                                    # (MIP, C)
    b1c = (s1 * (p['b1'] - p['bn1_mean']) + p['bn1_beta']).reshape(MIP, 1)
    bhc = p['bh'].reshape(C, 1)
    bwc = p['bw'].reshape(C, 1)

    # final conv weights, columns ordered k = (n1*K+n2)*C + c
    wf2 = p['Wf'].transpose(0, 2, 3, 1).reshape(OUP, K2 * C)       # (OUP, 72)
    bfc = p['bf'].reshape(OUP, 1)

    # constant selector matrices / masks (host-built, tiny)
    o_idx = np.arange(HW)
    h_idx, w_idx = o_idx // W, o_idx % W
    shw = np.zeros((HW, H + W), np.float32)
    shw[o_idx, h_idx] = 1.0 / (K * W)                              # h-branch pool
    shw[o_idx, H + w_idx] = 1.0 / (K * H)                          # w-branch pool
    erep = (h_idx[None, :] == np.arange(H)[:, None]).astype(np.float32)   # (H, HW)
    etil = (w_idx[None, :] == np.arange(W)[:, None]).astype(np.float32)   # (W, HW)
    qmask = np.zeros((K, HW), np.float32)
    for q in range(K):
        qmask[q] = ((w_idx >= PAD - q) & (w_idx < W + PAD - q)).astype(np.float32)

    # flattened, H-padded input: xe[b, c, PAD + r*W + w] = x_padH[b, c, r, w]
    xpadh = jnp.pad(x, ((0, 0), (0, 0), (PAD, PAD), (0, 0))) \
               .reshape(B, C, (H + 2 * PAD) * W)
    xe = jnp.pad(xpadh, ((0, 0), (0, 0), (PAD, L - PAD - (H + 2 * PAD) * W)))

    full = lambda shape: pl.BlockSpec(shape, lambda b: (0, 0))
    out_flat = pl.pallas_call(
        rfca_kernel,
        out_shape=jax.ShapeDtypeStruct((B, OUP, HW), jnp.float32),
        grid=(B,),
        in_specs=[
            pl.BlockSpec((1, C, L), lambda b: (b, 0, 0)),
            full((K, HW)),
            full((C, K2 * K * K)),
            full((C, K2)),
            full((MIP, C)),
            full((MIP, 1)),
            full((C, MIP)),
            full((C, 1)),
            full((C, MIP)),
            full((C, 1)),
            full((OUP, K2 * C)),
            full((OUP, 1)),
            full((HW, H + W)),
            full((H, HW)),
            full((W, HW)),
        ],
        out_specs=pl.BlockSpec((1, OUP, HW), lambda b: (b, 0, 0)),
        compiler_params=pltpu.CompilerParams(
            dimension_semantics=("parallel",)),     # both TCs used on v7x
    )(xe, jnp.asarray(qmask), wgk, bgk, w1f, b1c, p['Wh'], bhc, p['Ww'], bwc,
      wf2, bfc, jnp.asarray(shw), jnp.asarray(erep), jnp.asarray(etil))

    return out_flat.reshape(B, OUP, H, W)


# ---------------- pure-JAX reference (PyTorch semantics, eval-mode BN) ----------------
def _bn_eval(x, gamma, beta, mean, var):
    inv = gamma / jnp.sqrt(var + EPS)
    return (x - mean.reshape(1, -1, 1, 1)) * inv.reshape(1, -1, 1, 1) \
        + beta.reshape(1, -1, 1, 1)


def _h_swish(x):
    return x * (jnp.clip(x + 3.0, 0.0, 6.0) / 6.0)


def reference_forward(x, p):
    hp = lax.Precision.HIGHEST
    gen = lax.conv_general_dilated(
        x, p['Wg'], window_strides=(1, 1), padding=[(PAD, PAD), (PAD, PAD)],
        dimension_numbers=('NCHW', 'OIHW', 'NCHW'), feature_group_count=C,
        precision=hp)
    gen = jnp.maximum(_bn_eval(gen, p['g_gamma'], p['g_beta'],
                               p['g_mean'], p['g_var']), 0.0)
    h, w = gen.shape[2:]
    feat = gen.reshape(B, C, K2, h, w)
    # einops: 'b c (n1 n2) h w -> b c (h n1) (w n2)'
    gf = feat.reshape(B, C, K, K, h, w).transpose(0, 1, 4, 2, 5, 3) \
             .reshape(B, C, h * K, w * K)
    x_h = gf.mean(axis=3, keepdims=True)                             # (B,C,hK,1)
    x_w = gf.mean(axis=2, keepdims=True).transpose(0, 1, 3, 2)       # (B,C,wK,1)
    y = jnp.concatenate([x_h, x_w], axis=2)
    y = jnp.einsum('mc,bcrs->bmrs', p['W1'], y, precision=hp) \
        + p['b1'].reshape(1, -1, 1, 1)
    y = _h_swish(_bn_eval(y, p['bn1_gamma'], p['bn1_beta'],
                          p['bn1_mean'], p['bn1_var']))
    yh = y[:, :, :h * K, :]
    yw = y[:, :, h * K:, :].transpose(0, 1, 3, 2)
    a_h = jax.nn.sigmoid(jnp.einsum('cm,bmrs->bcrs', p['Wh'], yh, precision=hp)
                         + p['bh'].reshape(1, -1, 1, 1))
    a_w = jax.nn.sigmoid(jnp.einsum('cm,bmrs->bcrs', p['Ww'], yw, precision=hp)
                         + p['bw'].reshape(1, -1, 1, 1))
    mod = gf * a_w * a_h
    out = lax.conv_general_dilated(
        mod, p['Wf'], window_strides=(K, K), padding='VALID',
        dimension_numbers=('NCHW', 'OIHW', 'NCHW'), precision=hp)
    return out + p['bf'].reshape(1, -1, 1, 1)


# ---------------- deterministic parameter construction ----------------
def make_params(key):
    ks = jax.random.split(key, 9)
    ar = lambda n: jnp.arange(n, dtype=jnp.float32) / n
    p = {
        'Wg': 0.2 * jax.random.normal(ks[0], (C * K2, 1, K, K), jnp.float32),
        'g_gamma': 1.0 + 0.05 * ar(C * K2),
        'g_beta': 0.02 * ar(C * K2),
        'g_mean': 0.01 * ar(C * K2),
        'g_var': 1.0 + 0.10 * ar(C * K2),
        'W1': 0.2 * jax.random.normal(ks[1], (MIP, C), jnp.float32),
        'b1': 0.1 * jax.random.normal(ks[2], (MIP,), jnp.float32),
        'bn1_gamma': 1.0 + 0.04 * ar(MIP),
        'bn1_beta': 0.03 * ar(MIP),
        'bn1_mean': 0.02 * ar(MIP),
        'bn1_var': 1.0 + 0.05 * ar(MIP),
        'Wh': 0.3 * jax.random.normal(ks[3], (C, MIP), jnp.float32),
        'bh': 0.1 * jax.random.normal(ks[4], (C,), jnp.float32),
        'Ww': 0.3 * jax.random.normal(ks[5], (C, MIP), jnp.float32),
        'bw': 0.1 * jax.random.normal(ks[6], (C,), jnp.float32),
        'Wf': 0.1 * jax.random.normal(ks[7], (OUP, C, K, K), jnp.float32),
        'bf': 0.05 * ar(OUP),
    }
    return p


if __name__ == "__main__":
    root = jax.random.PRNGKey(0)
    kp, kx = jax.random.split(root)
    params = make_params(kp)
    x = jax.random.normal(kx, (B, C, HIN, WIN), jnp.float32)

    out = jax.block_until_ready(jax.jit(rfca_forward_pallas)(x, params))
    ref = jax.block_until_ready(reference_forward(x, params))

    np.testing.assert_allclose(np.asarray(out), np.asarray(ref),
                               rtol=2e-2, atol=2e-2)
    print("KERNEL_OK")
</pallas_src>

<mosaic_0001>
module attributes {stable_mosaic.version = 11 : i64} {
  func.func @rfca_kernel(%arg0: i32, %arg1: memref<1x8x170xf32, #tpu.memory_space<vmem>>, %arg2: memref<3x144xf32, #tpu.memory_space<vmem>>, %arg3: memref<8x81xf32, #tpu.memory_space<vmem>>, %arg4: memref<8x9xf32, #tpu.memory_space<vmem>>, %arg5: memref<8x8xf32, #tpu.memory_space<vmem>>, %arg6: memref<8x1xf32, #tpu.memory_space<vmem>>, %arg7: memref<8x8xf32, #tpu.memory_space<vmem>>, %arg8: memref<8x1xf32, #tpu.memory_space<vmem>>, %arg9: memref<8x8xf32, #tpu.memory_space<vmem>>, %arg10: memref<8x1xf32, #tpu.memory_space<vmem>>, %arg11: memref<8x72xf32, #tpu.memory_space<vmem>>, %arg12: memref<8x1xf32, #tpu.memory_space<vmem>>, %arg13: memref<144x24xf32, #tpu.memory_space<vmem>>, %arg14: memref<12x144xf32, #tpu.memory_space<vmem>>, %arg15: memref<12x144xf32, #tpu.memory_space<vmem>>, %arg16: memref<1x8x144xf32, #tpu.memory_space<vmem>>) attributes {dimension_semantics = [#tpu.dimension_semantics<parallel>], iteration_bounds = array<i64: 2>, scalar_prefetch = 0 : i64, scratch_operands = 0 : i64, tpu.core_type = #tpu.core_type<tc>, window_params = [{transform_indices = @transform_0, window_bounds = array<i64: 1, 8, 170>}, {pipeline_mode = #tpu.pipeline_mode<synchronous>, transform_indices = @transform_1, window_bounds = array<i64: 3, 144>}, {pipeline_mode = #tpu.pipeline_mode<synchronous>, transform_indices = @transform_2, window_bounds = array<i64: 8, 81>}, {pipeline_mode = #tpu.pipeline_mode<synchronous>, transform_indices = @transform_3, window_bounds = array<i64: 8, 9>}, {pipeline_mode = #tpu.pipeline_mode<synchronous>, transform_indices = @transform_4, window_bounds = array<i64: 8, 8>}, {pipeline_mode = #tpu.pipeline_mode<synchronous>, transform_indices = @transform_5, window_bounds = array<i64: 8, 1>}, {pipeline_mode = #tpu.pipeline_mode<synchronous>, transform_indices = @transform_6, window_bounds = array<i64: 8, 8>}, {pipeline_mode = #tpu.pipeline_mode<synchronous>, transform_indices = @transform_7, window_bounds = array<i64: 8, 1>}, {pipeline_mode = #tpu.pipeline_mode<synchronous>, transform_indices = @transform_8, window_bounds = array<i64: 8, 8>}, {pipeline_mode = #tpu.pipeline_mode<synchronous>, transform_indices = @transform_9, window_bounds = array<i64: 8, 1>}, {pipeline_mode = #tpu.pipeline_mode<synchronous>, transform_indices = @transform_10, window_bounds = array<i64: 8, 72>}, {pipeline_mode = #tpu.pipeline_mode<synchronous>, transform_indices = @transform_11, window_bounds = array<i64: 8, 1>}, {pipeline_mode = #tpu.pipeline_mode<synchronous>, transform_indices = @transform_12, window_bounds = array<i64: 144, 24>}, {pipeline_mode = #tpu.pipeline_mode<synchronous>, transform_indices = @transform_13, window_bounds = array<i64: 12, 144>}, {pipeline_mode = #tpu.pipeline_mode<synchronous>, transform_indices = @transform_14, window_bounds = array<i64: 12, 144>}, {transform_indices = @transform_15, window_bounds = array<i64: 1, 8, 144>}]} {
    %c0 = arith.constant 0 : index
    %c0_0 = arith.constant 0 : index
    %c0_1 = arith.constant 0 : index
    %0 = vector.load %arg1[%c0, %c0_0, %c0_1] : memref<1x8x170xf32, #tpu.memory_space<vmem>>, vector<1x8x170xf32>
    %1 = vector.shape_cast %0 : vector<1x8x170xf32> to vector<8x170xf32>
    %c0_2 = arith.constant 0 : index
    %c0_3 = arith.constant 0 : index
    %2 = vector.load %arg2[%c0_2, %c0_3] : memref<3x144xf32, #tpu.memory_space<vmem>>, vector<3x144xf32>
    %c0_4 = arith.constant 0 : index
    %c0_5 = arith.constant 0 : index
    %3 = vector.load %arg3[%c0_4, %c0_5] : memref<8x81xf32, #tpu.memory_space<vmem>>, vector<8x81xf32>
    %c0_6 = arith.constant 0 : index
    %c0_7 = arith.constant 0 : index
    %4 = vector.load %arg4[%c0_6, %c0_7] : memref<8x9xf32, #tpu.memory_space<vmem>>, vector<8x9xf32>
    %5 = vector.extract_strided_slice %1 {offsets = [0, 0], sizes = [8, 144], strides = [1, 1]} : vector<8x170xf32> to vector<8x144xf32>
    %6 = vector.extract_strided_slice %2 {offsets = [0, 0], sizes = [1, 144], strides = [1, 1]} : vector<3x144xf32> to vector<1x144xf32>
    %7 = vector.broadcast %6 : vector<1x144xf32> to vector<8x144xf32>
    %8 = arith.mulf %5, %7 : vector<8x144xf32>
    %9 = vector.extract_strided_slice %1 {offsets = [0, 1], sizes = [8, 144], strides = [1, 1]} : vector<8x170xf32> to vector<8x144xf32>
    %10 = vector.extract_strided_slice %1 {offsets = [0, 2], sizes = [8, 144], strides = [1, 1]} : vector<8x170xf32> to vector<8x144xf32>
    %11 = vector.extract_strided_slice %2 {offsets = [2, 0], sizes = [1, 144], strides = [1, 1]} : vector<3x144xf32> to vector<1x144xf32>
    %12 = vector.broadcast %11 : vector<1x144xf32> to vector<8x144xf32>
    %13 = arith.mulf %10, %12 : vector<8x144xf32>
    %14 = vector.extract_strided_slice %1 {offsets = [0, 12], sizes = [8, 144], strides = [1, 1]} : vector<8x170xf32> to vector<8x144xf32>
    %15 = vector.extract_strided_slice %2 {offsets = [0, 0], sizes = [1, 144], strides = [1, 1]} : vector<3x144xf32> to vector<1x144xf32>
    %16 = vector.broadcast %15 : vector<1x144xf32> to vector<8x144xf32>
    %17 = arith.mulf %14, %16 : vector<8x144xf32>
    %18 = vector.extract_strided_slice %1 {offsets = [0, 13], sizes = [8, 144], strides = [1, 1]} : vector<8x170xf32> to vector<8x144xf32>
    %19 = vector.extract_strided_slice %1 {offsets = [0, 14], sizes = [8, 144], strides = [1, 1]} : vector<8x170xf32> to vector<8x144xf32>
    %20 = vector.extract_strided_slice %2 {offsets = [2, 0], sizes = [1, 144], strides = [1, 1]} : vector<3x144xf32> to vector<1x144xf32>
    %21 = vector.broadcast %20 : vector<1x144xf32> to vector<8x144xf32>
    %22 = arith.mulf %19, %21 : vector<8x144xf32>
    %23 = vector.extract_strided_slice %1 {offsets = [0, 24], sizes = [8, 144], strides = [1, 1]} : vector<8x170xf32> to vector<8x144xf32>
    %24 = vector.extract_strided_slice %2 {offsets = [0, 0], sizes = [1, 144], strides = [1, 1]} : vector<3x144xf32> to vector<1x144xf32>
    %25 = vector.broadcast %24 : vector<1x144xf32> to vector<8x144xf32>
    %26 = arith.mulf %23, %25 : vector<8x144xf32>
    %27 = vector.extract_strided_slice %1 {offsets = [0, 25], sizes = [8, 144], strides = [1, 1]} : vector<8x170xf32> to vector<8x144xf32>
    %28 = vector.extract_strided_slice %1 {offsets = [0, 26], sizes = [8, 144], strides = [1, 1]} : vector<8x170xf32> to vector<8x144xf32>
    %29 = vector.extract_strided_slice %2 {offsets = [2, 0], sizes = [1, 144], strides = [1, 1]} : vector<3x144xf32> to vector<1x144xf32>
    %30 = vector.broadcast %29 : vector<1x144xf32> to vector<8x144xf32>
    %31 = arith.mulf %28, %30 : vector<8x144xf32>
    %32 = vector.extract_strided_slice %3 {offsets = [0, 0], sizes = [8, 1], strides = [1, 1]} : vector<8x81xf32> to vector<8x1xf32>
    %33 = vector.broadcast %32 : vector<8x1xf32> to vector<8x144xf32>
    %34 = arith.mulf %33, %8 : vector<8x144xf32>
    %35 = vector.extract_strided_slice %3 {offsets = [0, 1], sizes = [8, 1], strides = [1, 1]} : vector<8x81xf32> to vector<8x1xf32>
    %36 = vector.broadcast %35 : vector<8x1xf32> to vector<8x144xf32>
    %37 = arith.mulf %36, %9 : vector<8x144xf32>
    %38 = arith.addf %34, %37 : vector<8x144xf32>
    %39 = vector.extract_strided_slice %3 {offsets = [0, 2], sizes = [8, 1], strides = [1, 1]} : vector<8x81xf32> to vector<8x1xf32>
    %40 = vector.broadcast %39 : vector<8x1xf32> to vector<8x144xf32>
    %41 = arith.mulf %40, %13 : vector<8x144xf32>
    %42 = arith.addf %38, %41 : vector<8x144xf32>
    %43 = vector.extract_strided_slice %3 {offsets = [0, 3], sizes = [8, 1], strides = [1, 1]} : vector<8x81xf32> to vector<8x1xf32>
    %44 = vector.broadcast %43 : vector<8x1xf32> to vector<8x144xf32>
    %45 = arith.mulf %44, %17 : vector<8x144xf32>
    %46 = arith.addf %42, %45 : vector<8x144xf32>
    %47 = vector.extract_strided_slice %3 {offsets = [0, 4], sizes = [8, 1], strides = [1, 1]} : vector<8x81xf32> to vector<8x1xf32>
    %48 = vector.broadcast %47 : vector<8x1xf32> to vector<8x144xf32>
    %49 = arith.mulf %48, %18 : vector<8x144xf32>
    %50 = arith.addf %46, %49 : vector<8x144xf32>
    %51 = vector.extract_strided_slice %3 {offsets = [0, 5], sizes = [8, 1], strides = [1, 1]} : vector<8x81xf32> to vector<8x1xf32>
    %52 = vector.broadcast %51 : vector<8x1xf32> to vector<8x144xf32>
    %53 = arith.mulf %52, %22 : vector<8x144xf32>
    %54 = arith.addf %50, %53 : vector<8x144xf32>
    %55 = vector.extract_strided_slice %3 {offsets = [0, 6], sizes = [8, 1], strides = [1, 1]} : vector<8x81xf32> to vector<8x1xf32>
    %56 = vector.broadcast %55 : vector<8x1xf32> to vector<8x144xf32>
    %57 = arith.mulf %56, %26 : vector<8x144xf32>
    %58 = arith.addf %54, %57 : vector<8x144xf32>
    %59 = vector.extract_strided_slice %3 {offsets = [0, 7], sizes = [8, 1], strides = [1, 1]} : vector<8x81xf32> to vector<8x1xf32>
    %60 = vector.broadcast %59 : vector<8x1xf32> to vector<8x144xf32>
    %61 = arith.mulf %60, %27 : vector<8x144xf32>
    %62 = arith.addf %58, %61 : vector<8x144xf32>
    %63 = vector.extract_strided_slice %3 {offsets = [0, 8], sizes = [8, 1], strides = [1, 1]} : vector<8x81xf32> to vector<8x1xf32>
    %64 = vector.broadcast %63 : vector<8x1xf32> to vector<8x144xf32>
    %65 = arith.mulf %64, %31 : vector<8x144xf32>
    %66 = arith.addf %62, %65 : vector<8x144xf32>
    %67 = vector.extract_strided_slice %4 {offsets = [0, 0], sizes = [8, 1], strides = [1, 1]} : vector<8x9xf32> to vector<8x1xf32>
    %68 = vector.broadcast %67 : vector<8x1xf32> to vector<8x144xf32>
    %69 = arith.addf %66, %68 : vector<8x144xf32>
    %cst = arith.constant 0.000000e+00 : f32
    %70 = vector.broadcast %cst : f32 to vector<8x144xf32>
    %71 = arith.maximumf %69, %70 : vector<8x144xf32>
    %72 = vector.extract_strided_slice %3 {offsets = [0, 9], sizes = [8, 1], strides = [1, 1]} : vector<8x81xf32> to vector<8x1xf32>
    %73 = vector.broadcast %72 : vector<8x1xf32> to vector<8x144xf32>
    %74 = arith.mulf %73, %8 : vector<8x144xf32>
    %75 = vector.extract_strided_slice %3 {offsets = [0, 10], sizes = [8, 1], strides = [1, 1]} : vector<8x81xf32> to vector<8x1xf32>
    %76 = vector.broadcast %75 : vector<8x1xf32> to vector<8x144xf32>
    %77 = arith.mulf %76, %9 : vector<8x144xf32>
    %78 = arith.addf %74, %77 : vector<8x144xf32>
    %79 = vector.extract_strided_slice %3 {offsets = [0, 11], sizes = [8, 1], strides = [1, 1]} : vector<8x81xf32> to vector<8x1xf32>
    %80 = vector.broadcast %79 : vector<8x1xf32> to vector<8x144xf32>
    %81 = arith.mulf %80, %13 : vector<8x144xf32>
    %82 = arith.addf %78, %81 : vector<8x144xf32>
    %83 = vector.extract_strided_slice %3 {offsets = [0, 12], sizes = [8, 1], strides = [1, 1]} : vector<8x81xf32> to vector<8x1xf32>
    %84 = vector.broadcast %83 : vector<8x1xf32> to vector<8x144xf32>
    %85 = arith.mulf %84, %17 : vector<8x144xf32>
    %86 = arith.addf %82, %85 : vector<8x144xf32>
    %87 = vector.extract_strided_slice %3 {offsets = [0, 13], sizes = [8, 1], strides = [1, 1]} : vector<8x81xf32> to vector<8x1xf32>
    %88 = vector.broadcast %87 : vector<8x1xf32> to vector<8x144xf32>
    %89 = arith.mulf %88, %18 : vector<8x144xf32>
    %90 = arith.addf %86, %89 : vector<8x144xf32>
    %91 = vector.extract_strided_slice %3 {offsets = [0, 14], sizes = [8, 1], strides = [1, 1]} : vector<8x81xf32> to vector<8x1xf32>
    %92 = vector.broadcast %91 : vector<8x1xf32> to vector<8x144xf32>
    %93 = arith.mulf %92, %22 : vector<8x144xf32>
    %94 = arith.addf %90, %93 : vector<8x144xf32>
    %95 = vector.extract_strided_slice %3 {offsets = [0, 15], sizes = [8, 1], strides = [1, 1]} : vector<8x81xf32> to vector<8x1xf32>
    %96 = vector.broadcast %95 : vector<8x1xf32> to vector<8x144xf32>
    %97 = arith.mulf %96, %26 : vector<8x144xf32>
    %98 = arith.addf %94, %97 : vector<8x144xf32>
    %99 = vector.extract_strided_slice %3 {offsets = [0, 16], sizes = [8, 1], strides = [1, 1]} : vector<8x81xf32> to vector<8x1xf32>
    %100 = vector.broadcast %99 : vector<8x1xf32> to vector<8x144xf32>
    %101 = arith.mulf %100, %27 : vector<8x144xf32>
    %102 = arith.addf %98, %101 : vector<8x144xf32>
    %103 = vector.extract_strided_slice %3 {offsets = [0, 17], sizes = [8, 1], strides = [1, 1]} : vector<8x81xf32> to vector<8x1xf32>
    %104 = vector.broadcast %103 : vector<8x1xf32> to vector<8x144xf32>
    %105 = arith.mulf %104, %31 : vector<8x144xf32>
    %106 = arith.addf %102, %105 : vector<8x144xf32>
    %107 = vector.extract_strided_slice %4 {offsets = [0, 1], sizes = [8, 1], strides = [1, 1]} : vector<8x9xf32> to vector<8x1xf32>
    %108 = vector.broadcast %107 : vector<8x1xf32> to vector<8x144xf32>
    %109 = arith.addf %106, %108 : vector<8x144xf32>
    %cst_8 = arith.constant 0.000000e+00 : f32
    %110 = vector.broadcast %cst_8 : f32 to vector<8x144xf32>
    %111 = arith.maximumf %109, %110 : vector<8x144xf32>
    %112 = vector.extract_strided_slice %3 {offsets = [0, 18], sizes = [8, 1], strides = [1, 1]} : vector<8x81xf32> to vector<8x1xf32>
    %113 = vector.broadcast %112 : vector<8x1xf32> to vector<8x144xf32>
    %114 = arith.mulf %113, %8 : vector<8x144xf32>
    %115 = vector.extract_strided_slice %3 {offsets = [0, 19], sizes = [8, 1], strides = [1, 1]} : vector<8x81xf32> to vector<8x1xf32>
    %116 = vector.broadcast %115 : vector<8x1xf32> to vector<8x144xf32>
    %117 = arith.mulf %116, %9 : vector<8x144xf32>
    %118 = arith.addf %114, %117 : vector<8x144xf32>
    %119 = vector.extract_strided_slice %3 {offsets = [0, 20], sizes = [8, 1], strides = [1, 1]} : vector<8x81xf32> to vector<8x1xf32>
    %120 = vector.broadcast %119 : vector<8x1xf32> to vector<8x144xf32>
    %121 = arith.mulf %120, %13 : vector<8x144xf32>
    %122 = arith.addf %118, %121 : vector<8x144xf32>
    %123 = vector.extract_strided_slice %3 {offsets = [0, 21], sizes = [8, 1], strides = [1, 1]} : vector<8x81xf32> to vector<8x1xf32>
    %124 = vector.broadcast %123 : vector<8x1xf32> to vector<8x144xf32>
    %125 = arith.mulf %124, %17 : vector<8x144xf32>
    %126 = arith.addf %122, %125 : vector<8x144xf32>
    %127 = vector.extract_strided_slice %3 {offsets = [0, 22], sizes = [8, 1], strides = [1, 1]} : vector<8x81xf32> to vector<8x1xf32>
    %128 = vector.broadcast %127 : vector<8x1xf32> to vector<8x144xf32>
    %129 = arith.mulf %128, %18 : vector<8x144xf32>
    %130 = arith.addf %126, %129 : vector<8x144xf32>
    %131 = vector.extract_strided_slice %3 {offsets = [0, 23], sizes = [8, 1], strides = [1, 1]} : vector<8x81xf32> to vector<8x1xf32>
    %132 = vector.broadcast %131 : vector<8x1xf32> to vector<8x144xf32>
    %133 = arith.mulf %132, %22 : vector<8x144xf32>
    %134 = arith.addf %130, %133 : vector<8x144xf32>
    %135 = vector.extract_strided_slice %3 {offsets = [0, 24], sizes = [8, 1], strides = [1, 1]} : vector<8x81xf32> to vector<8x1xf32>
    %136 = vector.broadcast %135 : vector<8x1xf32> to vector<8x144xf32>
    %137 = arith.mulf %136, %26 : vector<8x144xf32>
    %138 = arith.addf %134, %137 : vector<8x144xf32>
    %139 = vector.extract_strided_slice %3 {offsets = [0, 25], sizes = [8, 1], strides = [1, 1]} : vector<8x81xf32> to vector<8x1xf32>
    %140 = vector.broadcast %139 : vector<8x1xf32> to vector<8x144xf32>
    %141 = arith.mulf %140, %27 : vector<8x144xf32>
    %142 = arith.addf %138, %141 : vector<8x144xf32>
    %143 = vector.extract_strided_slice %3 {offsets = [0, 26], sizes = [8, 1], strides = [1, 1]} : vector<8x81xf32> to vector<8x1xf32>
    %144 = vector.broadcast %143 : vector<8x1xf32> to vector<8x144xf32>
    %145 = arith.mulf %144, %31 : vector<8x144xf32>
    %146 = arith.addf %142, %145 : vector<8x144xf32>
    %147 = vector.extract_strided_slice %4 {offsets = [0, 2], sizes = [8, 1], strides = [1, 1]} : vector<8x9xf32> to vector<8x1xf32>
    %148 = vector.broadcast %147 : vector<8x1xf32> to vector<8x144xf32>
    %149 = arith.addf %146, %148 : vector<8x144xf32>
    %cst_9 = arith.constant 0.000000e+00 : f32
    %150 = vector.broadcast %cst_9 : f32 to vector<8x144xf32>
    %151 = arith.maximumf %149, %150 : vector<8x144xf32>
    %152 = vector.extract_strided_slice %3 {offsets = [0, 27], sizes = [8, 1], strides = [1, 1]} : vector<8x81xf32> to vector<8x1xf32>
    %153 = vector.broadcast %152 : vector<8x1xf32> to vector<8x144xf32>
    %154 = arith.mulf %153, %8 : vector<8x144xf32>
    %155 = vector.extract_strided_slice %3 {offsets = [0, 28], sizes = [8, 1], strides = [1, 1]} : vector<8x81xf32> to vector<8x1xf32>
    %156 = vector.broadcast %155 : vector<8x1xf32> to vector<8x144xf32>
    %157 = arith.mulf %156, %9 : vector<8x144xf32>
    %158 = arith.addf %154, %157 : vector<8x144xf32>
    %159 = vector.extract_strided_slice %3 {offsets = [0, 29], sizes = [8, 1], strides = [1, 1]} : vector<8x81xf32> to vector<8x1xf32>
    %160 = vector.broadcast %159 : vector<8x1xf32> to vector<8x144xf32>
    %161 = arith.mulf %160, %13 : vector<8x144xf32>
    %162 = arith.addf %158, %161 : vector<8x144xf32>
    %163 = vector.extract_strided_slice %3 {offsets = [0, 30], sizes = [8, 1], strides = [1, 1]} : vector<8x81xf32> to vector<8x1xf32>
    %164 = vector.broadcast %163 : vector<8x1xf32> to vector<8x144xf32>
    %165 = arith.mulf %164, %17 : vector<8x144xf32>
    %166 = arith.addf %162, %165 : vector<8x144xf32>
    %167 = vector.extract_strided_slice %3 {offsets = [0, 31], sizes = [8, 1], strides = [1, 1]} : vector<8x81xf32> to vector<8x1xf32>
    %168 = vector.broadcast %167 : vector<8x1xf32> to vector<8x144xf32>
    %169 = arith.mulf %168, %18 : vector<8x144xf32>
    %170 = arith.addf %166, %169 : vector<8x144xf32>
    %171 = vector.extract_strided_slice %3 {offsets = [0, 32], sizes = [8, 1], strides = [1, 1]} : vector<8x81xf32> to vector<8x1xf32>
    %172 = vector.broadcast %171 : vector<8x1xf32> to vector<8x144xf32>
    %173 = arith.mulf %172, %22 : vector<8x144xf32>
    %174 = arith.addf %170, %173 : vector<8x144xf32>
    %175 = vector.extract_strided_slice %3 {offsets = [0, 33], sizes = [8, 1], strides = [1, 1]} : vector<8x81xf32> to vector<8x1xf32>
    %176 = vector.broadcast %175 : vector<8x1xf32> to vector<8x144xf32>
    %177 = arith.mulf %176, %26 : vector<8x144xf32>
    %178 = arith.addf %174, %177 : vector<8x144xf32>
    %179 = vector.extract_strided_slice %3 {offsets = [0, 34], sizes = [8, 1], strides = [1, 1]} : vector<8x81xf32> to vector<8x1xf32>
    %180 = vector.broadcast %179 : vector<8x1xf32> to vector<8x144xf32>
    %181 = arith.mulf %180, %27 : vector<8x144xf32>
    %182 = arith.addf %178, %181 : vector<8x144xf32>
    %183 = vector.extract_strided_slice %3 {offsets = [0, 35], sizes = [8, 1], strides = [1, 1]} : vector<8x81xf32> to vector<8x1xf32>
    %184 = vector.broadcast %183 : vector<8x1xf32> to vector<8x144xf32>
    %185 = arith.mulf %184, %31 : vector<8x144xf32>
    %186 = arith.addf %182, %185 : vector<8x144xf32>
    %187 = vector.extract_strided_slice %4 {offsets = [0, 3], sizes = [8, 1], strides = [1, 1]} : vector<8x9xf32> to vector<8x1xf32>
    %188 = vector.broadcast %187 : vector<8x1xf32> to vector<8x144xf32>
    %189 = arith.addf %186, %188 : vector<8x144xf32>
    %cst_10 = arith.constant 0.000000e+00 : f32
    %190 = vector.broadcast %cst_10 : f32 to vector<8x144xf32>
    %191 = arith.maximumf %189, %190 : vector<8x144xf32>
    %192 = vector.extract_strided_slice %3 {offsets = [0, 36], sizes = [8, 1], strides = [1, 1]} : vector<8x81xf32> to vector<8x1xf32>
    %193 = vector.broadcast %192 : vector<8x1xf32> to vector<8x144xf32>
    %194 = arith.mulf %193, %8 : vector<8x144xf32>
    %195 = vector.extract_strided_slice %3 {offsets = [0, 37], sizes = [8, 1], strides = [1, 1]} : vector<8x81xf32> to vector<8x1xf32>
    %196 = vector.broadcast %195 : vector<8x1xf32> to vector<8x144xf32>
    %197 = arith.mulf %196, %9 : vector<8x144xf32>
    %198 = arith.addf %194, %197 : vector<8x144xf32>
    %199 = vector.extract_strided_slice %3 {offsets = [0, 38], sizes = [8, 1], strides = [1, 1]} : vector<8x81xf32> to vector<8x1xf32>
    %200 = vector.broadcast %199 : vector<8x1xf32> to vector<8x144xf32>
    %201 = arith.mulf %200, %13 : vector<8x144xf32>
    %202 = arith.addf %198, %201 : vector<8x144xf32>
    %203 = vector.extract_strided_slice %3 {offsets = [0, 39], sizes = [8, 1], strides = [1, 1]} : vector<8x81xf32> to vector<8x1xf32>
    %204 = vector.broadcast %203 : vector<8x1xf32> to vector<8x144xf32>
    %205 = arith.mulf %204, %17 : vector<8x144xf32>
    %206 = arith.addf %202, %205 : vector<8x144xf32>
    %207 = vector.extract_strided_slice %3 {offsets = [0, 40], sizes = [8, 1], strides = [1, 1]} : vector<8x81xf32> to vector<8x1xf32>
    %208 = vector.broadcast %207 : vector<8x1xf32> to vector<8x144xf32>
    %209 = arith.mulf %208, %18 : vector<8x144xf32>
    %210 = arith.addf %206, %209 : vector<8x144xf32>
    %211 = vector.extract_strided_slice %3 {offsets = [0, 41], sizes = [8, 1], strides = [1, 1]} : vector<8x81xf32> to vector<8x1xf32>
    %212 = vector.broadcast %211 : vector<8x1xf32> to vector<8x144xf32>
    %213 = arith.mulf %212, %22 : vector<8x144xf32>
    %214 = arith.addf %210, %213 : vector<8x144xf32>
    %215 = vector.extract_strided_slice %3 {offsets = [0, 42], sizes = [8, 1], strides = [1, 1]} : vector<8x81xf32> to vector<8x1xf32>
    %216 = vector.broadcast %215 : vector<8x1xf32> to vector<8x144xf32>
    %217 = arith.mulf %216, %26 : vector<8x144xf32>
    %218 = arith.addf %214, %217 : vector<8x144xf32>
    %219 = vector.extract_strided_slice %3 {offsets = [0, 43], sizes = [8, 1], strides = [1, 1]} : vector<8x81xf32> to vector<8x1xf32>
    %220 = vector.broadcast %219 : vector<8x1xf32> to vector<8x144xf32>
    %221 = arith.mulf %220, %27 : vector<8x144xf32>
    %222 = arith.addf %218, %221 : vector<8x144xf32>
    %223 = vector.extract_strided_slice %3 {offsets = [0, 44], sizes = [8, 1], strides = [1, 1]} : vector<8x81xf32> to vector<8x1xf32>
    %224 = vector.broadcast %223 : vector<8x1xf32> to vector<8x144xf32>
    %225 = arith.mulf %224, %31 : vector<8x144xf32>
    %226 = arith.addf %222, %225 : vector<8x144xf32>
    %227 = vector.extract_strided_slice %4 {offsets = [0, 4], sizes = [8, 1], strides = [1, 1]} : vector<8x9xf32> to vector<8x1xf32>
    %228 = vector.broadcast %227 : vector<8x1xf32> to vector<8x144xf32>
    %229 = arith.addf %226, %228 : vector<8x144xf32>
    %cst_11 = arith.constant 0.000000e+00 : f32
    %230 = vector.broadcast %cst_11 : f32 to vector<8x144xf32>
    %231 = arith.maximumf %229, %230 : vector<8x144xf32>
    %232 = vector.extract_strided_slice %3 {offsets = [0, 45], sizes = [8, 1], strides = [1, 1]} : vector<8x81xf32> to vector<8x1xf32>
    %233 = vector.broadcast %232 : vector<8x1xf32> to vector<8x144xf32>
    %234 = arith.mulf %233, %8 : vector<8x144xf32>
    %235 = vector.extract_strided_slice %3 {offsets = [0, 46], sizes = [8, 1], strides = [1, 1]} : vector<8x81xf32> to vector<8x1xf32>
    %236 = vector.broadcast %235 : vector<8x1xf32> to vector<8x144xf32>
    %237 = arith.mulf %236, %9 : vector<8x144xf32>
    %238 = arith.addf %234, %237 : vector<8x144xf32>
    %239 = vector.extract_strided_slice %3 {offsets = [0, 47], sizes = [8, 1], strides = [1, 1]} : vector<8x81xf32> to vector<8x1xf32>
    %240 = vector.broadcast %239 : vector<8x1xf32> to vector<8x144xf32>
    %241 = arith.mulf %240, %13 : vector<8x144xf32>
    %242 = arith.addf %238, %241 : vector<8x144xf32>
    %243 = vector.extract_strided_slice %3 {offsets = [0, 48], sizes = [8, 1], strides = [1, 1]} : vector<8x81xf32> to vector<8x1xf32>
    %244 = vector.broadcast %243 : vector<8x1xf32> to vector<8x144xf32>
    %245 = arith.mulf %244, %17 : vector<8x144xf32>
    %246 = arith.addf %242, %245 : vector<8x144xf32>
    %247 = vector.extract_strided_slice %3 {offsets = [0, 49], sizes = [8, 1], strides = [1, 1]} : vector<8x81xf32> to vector<8x1xf32>
    %248 = vector.broadcast %247 : vector<8x1xf32> to vector<8x144xf32>
    %249 = arith.mulf %248, %18 : vector<8x144xf32>
    %250 = arith.addf %246, %249 : vector<8x144xf32>
    %251 = vector.extract_strided_slice %3 {offsets = [0, 50], sizes = [8, 1], strides = [1, 1]} : vector<8x81xf32> to vector<8x1xf32>
    %252 = vector.broadcast %251 : vector<8x1xf32> to vector<8x144xf32>
    %253 = arith.mulf %252, %22 : vector<8x144xf32>
    %254 = arith.addf %250, %253 : vector<8x144xf32>
    %255 = vector.extract_strided_slice %3 {offsets = [0, 51], sizes = [8, 1], strides = [1, 1]} : vector<8x81xf32> to vector<8x1xf32>
    %256 = vector.broadcast %255 : vector<8x1xf32> to vector<8x144xf32>
    %257 = arith.mulf %256, %26 : vector<8x144xf32>
    %258 = arith.addf %254, %257 : vector<8x144xf32>
    %259 = vector.extract_strided_slice %3 {offsets = [0, 52], sizes = [8, 1], strides = [1, 1]} : vector<8x81xf32> to vector<8x1xf32>
    %260 = vector.broadcast %259 : vector<8x1xf32> to vector<8x144xf32>
    %261 = arith.mulf %260, %27 : vector<8x144xf32>
    %262 = arith.addf %258, %261 : vector<8x144xf32>
    %263 = vector.extract_strided_slice %3 {offsets = [0, 53], sizes = [8, 1], strides = [1, 1]} : vector<8x81xf32> to vector<8x1xf32>
    %264 = vector.broadcast %263 : vector<8x1xf32> to vector<8x144xf32>
    %265 = arith.mulf %264, %31 : vector<8x144xf32>
    %266 = arith.addf %262, %265 : vector<8x144xf32>
    %267 = vector.extract_strided_slice %4 {offsets = [0, 5], sizes = [8, 1], strides = [1, 1]} : vector<8x9xf32> to vector<8x1xf32>
    %268 = vector.broadcast %267 : vector<8x1xf32> to vector<8x144xf32>
    %269 = arith.addf %266, %268 : vector<8x144xf32>
    %cst_12 = arith.constant 0.000000e+00 : f32
    %270 = vector.broadcast %cst_12 : f32 to vector<8x144xf32>
    %271 = arith.maximumf %269, %270 : vector<8x144xf32>
    %272 = vector.extract_strided_slice %3 {offsets = [0, 54], sizes = [8, 1], strides = [1, 1]} : vector<8x81xf32> to vector<8x1xf32>
    %273 = vector.broadcast %272 : vector<8x1xf32> to vector<8x144xf32>
    %274 = arith.mulf %273, %8 : vector<8x144xf32>
    %275 = vector.extract_strided_slice %3 {offsets = [0, 55], sizes = [8, 1], strides = [1, 1]} : vector<8x81xf32> to vector<8x1xf32>
    %276 = vector.broadcast %275 : vector<8x1xf32> to vector<8x144xf32>
    %277 = arith.mulf %276, %9 : vector<8x144xf32>
    %278 = arith.addf %274, %277 : vector<8x144xf32>
    %279 = vector.extract_strided_slice %3 {offsets = [0, 56], sizes = [8, 1], strides = [1, 1]} : vector<8x81xf32> to vector<8x1xf32>
    %280 = vector.broadcast %279 : vector<8x1xf32> to vector<8x144xf32>
    %281 = arith.mulf %280, %13 : vector<8x144xf32>
    %282 = arith.addf %278, %281 : vector<8x144xf32>
    %283 = vector.extract_strided_slice %3 {offsets = [0, 57], sizes = [8, 1], strides = [1, 1]} : vector<8x81xf32> to vector<8x1xf32>
    %284 = vector.broadcast %283 : vector<8x1xf32> to vector<8x144xf32>
    %285 = arith.mulf %284, %17 : vector<8x144xf32>
    %286 = arith.addf %282, %285 : vector<8x144xf32>
    %287 = vector.extract_strided_slice %3 {offsets = [0, 58], sizes = [8, 1], strides = [1, 1]} : vector<8x81xf32> to vector<8x1xf32>
    %288 = vector.broadcast %287 : vector<8x1xf32> to vector<8x144xf32>
    %289 = arith.mulf %288, %18 : vector<8x144xf32>
    %290 = arith.addf %286, %289 : vector<8x144xf32>
    %291 = vector.extract_strided_slice %3 {offsets = [0, 59], sizes = [8, 1], strides = [1, 1]} : vector<8x81xf32> to vector<8x1xf32>
    %292 = vector.broadcast %291 : vector<8x1xf32> to vector<8x144xf32>
    %293 = arith.mulf %292, %22 : vector<8x144xf32>
    %294 = arith.addf %290, %293 : vector<8x144xf32>
    %295 = vector.extract_strided_slice %3 {offsets = [0, 60], sizes = [8, 1], strides = [1, 1]} : vector<8x81xf32> to vector<8x1xf32>
    %296 = vector.broadcast %295 : vector<8x1xf32> to vector<8x144xf32>
    %297 = arith.mulf %296, %26 : vector<8x144xf32>
    %298 = arith.addf %294, %297 : vector<8x144xf32>
    %299 = vector.extract_strided_slice %3 {offsets = [0, 61], sizes = [8, 1], strides = [1, 1]} : vector<8x81xf32> to vector<8x1xf32>
    %300 = vector.broadcast %299 : vector<8x1xf32> to vector<8x144xf32>
    %301 = arith.mulf %300, %27 : vector<8x144xf32>
    %302 = arith.addf %298, %301 : vector<8x144xf32>
    %303 = vector.extract_strided_slice %3 {offsets = [0, 62], sizes = [8, 1], strides = [1, 1]} : vector<8x81xf32> to vector<8x1xf32>
    %304 = vector.broadcast %303 : vector<8x1xf32> to vector<8x144xf32>
    %305 = arith.mulf %304, %31 : vector<8x144xf32>
    %306 = arith.addf %302, %305 : vector<8x144xf32>
    %307 = vector.extract_strided_slice %4 {offsets = [0, 6], sizes = [8, 1], strides = [1, 1]} : vector<8x9xf32> to vector<8x1xf32>
    %308 = vector.broadcast %307 : vector<8x1xf32> to vector<8x144xf32>
    %309 = arith.addf %306, %308 : vector<8x144xf32>
    %cst_13 = arith.constant 0.000000e+00 : f32
    %310 = vector.broadcast %cst_13 : f32 to vector<8x144xf32>
    %311 = arith.maximumf %309, %310 : vector<8x144xf32>
    %312 = vector.extract_strided_slice %3 {offsets = [0, 63], sizes = [8, 1], strides = [1, 1]} : vector<8x81xf32> to vector<8x1xf32>
    %313 = vector.broadcast %312 : vector<8x1xf32> to vector<8x144xf32>
    %314 = arith.mulf %313, %8 : vector<8x144xf32>
    %315 = vector.extract_strided_slice %3 {offsets = [0, 64], sizes = [8, 1], strides = [1, 1]} : vector<8x81xf32> to vector<8x1xf32>
    %316 = vector.broadcast %315 : vector<8x1xf32> to vector<8x144xf32>
    %317 = arith.mulf %316, %9 : vector<8x144xf32>
    %318 = arith.addf %314, %317 : vector<8x144xf32>
    %319 = vector.extract_strided_slice %3 {offsets = [0, 65], sizes = [8, 1], strides = [1, 1]} : vector<8x81xf32> to vector<8x1xf32>
    %320 = vector.broadcast %319 : vector<8x1xf32> to vector<8x144xf32>
    %321 = arith.mulf %320, %13 : vector<8x144xf32>
    %322 = arith.addf %318, %321 : vector<8x144xf32>
    %323 = vector.extract_strided_slice %3 {offsets = [0, 66], sizes = [8, 1], strides = [1, 1]} : vector<8x81xf32> to vector<8x1xf32>
    %324 = vector.broadcast %323 : vector<8x1xf32> to vector<8x144xf32>
    %325 = arith.mulf %324, %17 : vector<8x144xf32>
    %326 = arith.addf %322, %325 : vector<8x144xf32>
    %327 = vector.extract_strided_slice %3 {offsets = [0, 67], sizes = [8, 1], strides = [1, 1]} : vector<8x81xf32> to vector<8x1xf32>
    %328 = vector.broadcast %327 : vector<8x1xf32> to vector<8x144xf32>
    %329 = arith.mulf %328, %18 : vector<8x144xf32>
    %330 = arith.addf %326, %329 : vector<8x144xf32>
    %331 = vector.extract_strided_slice %3 {offsets = [0, 68], sizes = [8, 1], strides = [1, 1]} : vector<8x81xf32> to vector<8x1xf32>
    %332 = vector.broadcast %331 : vector<8x1xf32> to vector<8x144xf32>
    %333 = arith.mulf %332, %22 : vector<8x144xf32>
    %334 = arith.addf %330, %333 : vector<8x144xf32>
    %335 = vector.extract_strided_slice %3 {offsets = [0, 69], sizes = [8, 1], strides = [1, 1]} : vector<8x81xf32> to vector<8x1xf32>
    %336 = vector.broadcast %335 : vector<8x1xf32> to vector<8x144xf32>
    %337 = arith.mulf %336, %26 : vector<8x144xf32>
    %338 = arith.addf %334, %337 : vector<8x144xf32>
    %339 = vector.extract_strided_slice %3 {offsets = [0, 70], sizes = [8, 1], strides = [1, 1]} : vector<8x81xf32> to vector<8x1xf32>
    %340 = vector.broadcast %339 : vector<8x1xf32> to vector<8x144xf32>
    %341 = arith.mulf %340, %27 : vector<8x144xf32>
    %342 = arith.addf %338, %341 : vector<8x144xf32>
    %343 = vector.extract_strided_slice %3 {offsets = [0, 71], sizes = [8, 1], strides = [1, 1]} : vector<8x81xf32> to vector<8x1xf32>
    %344 = vector.broadcast %343 : vector<8x1xf32> to vector<8x144xf32>
    %345 = arith.mulf %344, %31 : vector<8x144xf32>
    %346 = arith.addf %342, %345 : vector<8x144xf32>
    %347 = vector.extract_strided_slice %4 {offsets = [0, 7], sizes = [8, 1], strides = [1, 1]} : vector<8x9xf32> to vector<8x1xf32>
    %348 = vector.broadcast %347 : vector<8x1xf32> to vector<8x144xf32>
    %349 = arith.addf %346, %348 : vector<8x144xf32>
    %cst_14 = arith.constant 0.000000e+00 : f32
    %350 = vector.broadcast %cst_14 : f32 to vector<8x144xf32>
    %351 = arith.maximumf %349, %350 : vector<8x144xf32>
    %352 = vector.extract_strided_slice %3 {offsets = [0, 72], sizes = [8, 1], strides = [1, 1]} : vector<8x81xf32> to vector<8x1xf32>
    %353 = vector.broadcast %352 : vector<8x1xf32> to vector<8x144xf32>
    %354 = arith.mulf %353, %8 : vector<8x144xf32>
    %355 = vector.extract_strided_slice %3 {offsets = [0, 73], sizes = [8, 1], strides = [1, 1]} : vector<8x81xf32> to vector<8x1xf32>
    %356 = vector.broadcast %355 : vector<8x1xf32> to vector<8x144xf32>
    %357 = arith.mulf %356, %9 : vector<8x144xf32>
    %358 = arith.addf %354, %357 : vector<8x144xf32>
    %359 = vector.extract_strided_slice %3 {offsets = [0, 74], sizes = [8, 1], strides = [1, 1]} : vector<8x81xf32> to vector<8x1xf32>
    %360 = vector.broadcast %359 : vector<8x1xf32> to vector<8x144xf32>
    %361 = arith.mulf %360, %13 : vector<8x144xf32>
    %362 = arith.addf %358, %361 : vector<8x144xf32>
    %363 = vector.extract_strided_slice %3 {offsets = [0, 75], sizes = [8, 1], strides = [1, 1]} : vector<8x81xf32> to vector<8x1xf32>
    %364 = vector.broadcast %363 : vector<8x1xf32> to vector<8x144xf32>
    %365 = arith.mulf %364, %17 : vector<8x144xf32>
    %366 = arith.addf %362, %365 : vector<8x144xf32>
    %367 = vector.extract_strided_slice %3 {offsets = [0, 76], sizes = [8, 1], strides = [1, 1]} : vector<8x81xf32> to vector<8x1xf32>
    %368 = vector.broadcast %367 : vector<8x1xf32> to vector<8x144xf32>
    %369 = arith.mulf %368, %18 : vector<8x144xf32>
    %370 = arith.addf %366, %369 : vector<8x144xf32>
    %371 = vector.extract_strided_slice %3 {offsets = [0, 77], sizes = [8, 1], strides = [1, 1]} : vector<8x81xf32> to vector<8x1xf32>
    %372 = vector.broadcast %371 : vector<8x1xf32> to vector<8x144xf32>
    %373 = arith.mulf %372, %22 : vector<8x144xf32>
    %374 = arith.addf %370, %373 : vector<8x144xf32>
    %375 = vector.extract_strided_slice %3 {offsets = [0, 78], sizes = [8, 1], strides = [1, 1]} : vector<8x81xf32> to vector<8x1xf32>
    %376 = vector.broadcast %375 : vector<8x1xf32> to vector<8x144xf32>
    %377 = arith.mulf %376, %26 : vector<8x144xf32>
    %378 = arith.addf %374, %377 : vector<8x144xf32>
    %379 = vector.extract_strided_slice %3 {offsets = [0, 79], sizes = [8, 1], strides = [1, 1]} : vector<8x81xf32> to vector<8x1xf32>
    %380 = vector.broadcast %379 : vector<8x1xf32> to vector<8x144xf32>
    %381 = arith.mulf %380, %27 : vector<8x144xf32>
    %382 = arith.addf %378, %381 : vector<8x144xf32>
    %383 = vector.extract_strided_slice %3 {offsets = [0, 80], sizes = [8, 1], strides = [1, 1]} : vector<8x81xf32> to vector<8x1xf32>
    %384 = vector.broadcast %383 : vector<8x1xf32> to vector<8x144xf32>
    %385 = arith.mulf %384, %31 : vector<8x144xf32>
    %386 = arith.addf %382, %385 : vector<8x144xf32>
    %387 = vector.extract_strided_slice %4 {offsets = [0, 8], sizes = [8, 1], strides = [1, 1]} : vector<8x9xf32> to vector<8x1xf32>
    %388 = vector.broadcast %387 : vector<8x1xf32> to vector<8x144xf32>
    %389 = arith.addf %386, %388 : vector<8x144xf32>
    %cst_15 = arith.constant 0.000000e+00 : f32
    %390 = vector.broadcast %cst_15 : f32 to vector<8x144xf32>
    %391 = arith.maximumf %389, %390 : vector<8x144xf32>
    %392 = tpu.concatenate %71, %111, %151, %191, %231, %271, %311, %351, %391 in 0 : vector<8x144xf32>, vector<8x144xf32>, vector<8x144xf32>, vector<8x144xf32>, vector<8x144xf32>, vector<8x144xf32>, vector<8x144xf32>, vector<8x144xf32>, vector<8x144xf32> -> vector<72x144xf32>
    %c0_16 = arith.constant 0 : index
    %c0_17 = arith.constant 0 : index
    %393 = vector.load %arg13[%c0_16, %c0_17] : memref<144x24xf32, #tpu.memory_space<vmem>>, vector<144x24xf32>
    %cst_18 = arith.constant dense<0.000000e+00> : vector<72x24xf32>
    %394 = tpu.matmul %392, %393, %cst_18 {dimension_numbers = #tpu.dot_dimension_numbers<[1], [0], [0], [1], [0, 0, 1, 1], [], []>} : vector<72x144xf32>, vector<144x24xf32>, vector<72x24xf32> -> vector<72x24xf32>
    %395 = vector.extract_strided_slice %394 {offsets = [0, 0], sizes = [8, 12], strides = [1, 1]} : vector<72x24xf32> to vector<8x12xf32>
    %396 = vector.extract_strided_slice %394 {offsets = [8, 0], sizes = [8, 12], strides = [1, 1]} : vector<72x24xf32> to vector<8x12xf32>
    %397 = arith.addf %395, %396 : vector<8x12xf32>
    %398 = vector.extract_strided_slice %394 {offsets = [16, 0], sizes = [8, 12], strides = [1, 1]} : vector<72x24xf32> to vector<8x12xf32>
    %399 = arith.addf %397, %398 : vector<8x12xf32>
    %400 = vector.extract_strided_slice %394 {offsets = [24, 0], sizes = [8, 12], strides = [1, 1]} : vector<72x24xf32> to vector<8x12xf32>
    %401 = vector.extract_strided_slice %394 {offsets = [32, 0], sizes = [8, 12], strides = [1, 1]} : vector<72x24xf32> to vector<8x12xf32>
    %402 = arith.addf %400, %401 : vector<8x12xf32>
    %403 = vector.extract_strided_slice %394 {offsets = [40, 0], sizes = [8, 12], strides = [1, 1]} : vector<72x24xf32> to vector<8x12xf32>
    %404 = arith.addf %402, %403 : vector<8x12xf32>
    %405 = vector.extract_strided_slice %394 {offsets = [48, 0], sizes = [8, 12], strides = [1, 1]} : vector<72x24xf32> to vector<8x12xf32>
    %406 = vector.extract_strided_slice %394 {offsets = [56, 0], sizes = [8, 12], strides = [1, 1]} : vector<72x24xf32> to vector<8x12xf32>
    %407 = arith.addf %405, %406 : vector<8x12xf32>
    %408 = vector.extract_strided_slice %394 {offsets = [64, 0], sizes = [8, 12], strides = [1, 1]} : vector<72x24xf32> to vector<8x12xf32>
    %409 = arith.addf %407, %408 : vector<8x12xf32>
    %410 = vector.extract_strided_slice %394 {offsets = [0, 12], sizes = [8, 12], strides = [1, 1]} : vector<72x24xf32> to vector<8x12xf32>
    %411 = vector.extract_strided_slice %394 {offsets = [24, 12], sizes = [8, 12], strides = [1, 1]} : vector<72x24xf32> to vector<8x12xf32>
    %412 = arith.addf %410, %411 : vector<8x12xf32>
    %413 = vector.extract_strided_slice %394 {offsets = [48, 12], sizes = [8, 12], strides = [1, 1]} : vector<72x24xf32> to vector<8x12xf32>
    %414 = arith.addf %412, %413 : vector<8x12xf32>
    %415 = vector.extract_strided_slice %394 {offsets = [8, 12], sizes = [8, 12], strides = [1, 1]} : vector<72x24xf32> to vector<8x12xf32>
    %416 = vector.extract_strided_slice %394 {offsets = [32, 12], sizes = [8, 12], strides = [1, 1]} : vector<72x24xf32> to vector<8x12xf32>
    %417 = arith.addf %415, %416 : vector<8x12xf32>
    %418 = vector.extract_strided_slice %394 {offsets = [56, 12], sizes = [8, 12], strides = [1, 1]} : vector<72x24xf32> to vector<8x12xf32>
    %419 = arith.addf %417, %418 : vector<8x12xf32>
    %420 = vector.extract_strided_slice %394 {offsets = [16, 12], sizes = [8, 12], strides = [1, 1]} : vector<72x24xf32> to vector<8x12xf32>
    %421 = vector.extract_strided_slice %394 {offsets = [40, 12], sizes = [8, 12], strides = [1, 1]} : vector<72x24xf32> to vector<8x12xf32>
    %422 = arith.addf %420, %421 : vector<8x12xf32>
    %423 = vector.extract_strided_slice %394 {offsets = [64, 12], sizes = [8, 12], strides = [1, 1]} : vector<72x24xf32> to vector<8x12xf32>
    %424 = arith.addf %422, %423 : vector<8x12xf32>
    %425 = tpu.concatenate %399, %404, %409, %414, %419, %424 in 1 : vector<8x12xf32>, vector<8x12xf32>, vector<8x12xf32>, vector<8x12xf32>, vector<8x12xf32>, vector<8x12xf32> -> vector<8x72xf32>
    %c0_19 = arith.constant 0 : index
    %c0_20 = arith.constant 0 : index
    %426 = vector.load %arg5[%c0_19, %c0_20] : memref<8x8xf32, #tpu.memory_space<vmem>>, vector<8x8xf32>
    %cst_21 = arith.constant dense<0.000000e+00> : vector<8x72xf32>
    %427 = tpu.matmul %426, %425, %cst_21 {dimension_numbers = #tpu.dot_dimension_numbers<[1], [0], [0], [1], [0, 0, 1, 1], [], []>} : vector<8x8xf32>, vector<8x72xf32>, vector<8x72xf32> -> vector<8x72xf32>
    %c0_22 = arith.constant 0 : index
    %c0_23 = arith.constant 0 : index
    %428 = vector.load %arg6[%c0_22, %c0_23] : memref<8x1xf32, #tpu.memory_space<vmem>>, vector<8x1xf32>
    %429 = vector.broadcast %428 : vector<8x1xf32> to vector<8x72xf32>
    %430 = arith.addf %427, %429 : vector<8x72xf32>
    %cst_24 = arith.constant 3.000000e+00 : f32
    %431 = vector.broadcast %cst_24 : f32 to vector<8x72xf32>
    %432 = arith.addf %430, %431 : vector<8x72xf32>
    %cst_25 = arith.constant 0.000000e+00 : f32
    %cst_26 = arith.constant 6.000000e+00 : f32
    %433 = vector.broadcast %cst_25 : f32 to vector<8x72xf32>
    %434 = arith.maximumf %433, %432 : vector<8x72xf32>
    %435 = vector.broadcast %cst_26 : f32 to vector<8x72xf32>
    %436 = arith.minimumf %435, %434 : vector<8x72xf32>
    %cst_27 = arith.constant 0.166666672 : f32
    %437 = vector.broadcast %cst_27 : f32 to vector<8x72xf32>
    %438 = arith.mulf %436, %437 : vector<8x72xf32>
    %439 = arith.mulf %430, %438 : vector<8x72xf32>
    %c0_28 = arith.constant 0 : index
    %c0_29 = arith.constant 0 : index
    %440 = vector.load %arg7[%c0_28, %c0_29] : memref<8x8xf32, #tpu.memory_space<vmem>>, vector<8x8xf32>
    %441 = vector.extract_strided_slice %439 {offsets = [0, 0], sizes = [8, 36], strides = [1, 1]} : vector<8x72xf32> to vector<8x36xf32>
    %cst_30 = arith.constant dense<0.000000e+00> : vector<8x36xf32>
    %442 = tpu.matmul %440, %441, %cst_30 {dimension_numbers = #tpu.dot_dimension_numbers<[1], [0], [0], [1], [0, 0, 1, 1], [], []>} : vector<8x8xf32>, vector<8x36xf32>, vector<8x36xf32> -> vector<8x36xf32>
    %c0_31 = arith.constant 0 : index
    %c0_32 = arith.constant 0 : index
    %443 = vector.load %arg8[%c0_31, %c0_32] : memref<8x1xf32, #tpu.memory_space<vmem>>, vector<8x1xf32>
    %444 = vector.broadcast %443 : vector<8x1xf32> to vector<8x36xf32>
    %445 = arith.addf %442, %444 : vector<8x36xf32>
    %c0_33 = arith.constant 0 : index
    %c0_34 = arith.constant 0 : index
    %446 = vector.load %arg9[%c0_33, %c0_34] : memref<8x8xf32, #tpu.memory_space<vmem>>, vector<8x8xf32>
    %447 = vector.extract_strided_slice %439 {offsets = [0, 36], sizes = [8, 36], strides = [1, 1]} : vector<8x72xf32> to vector<8x36xf32>
    %cst_35 = arith.constant dense<0.000000e+00> : vector<8x36xf32>
    %448 = tpu.matmul %446, %447, %cst_35 {dimension_numbers = #tpu.dot_dimension_numbers<[1], [0], [0], [1], [0, 0, 1, 1], [], []>} : vector<8x8xf32>, vector<8x36xf32>, vector<8x36xf32> -> vector<8x36xf32>
    %c0_36 = arith.constant 0 : index
    %c0_37 = arith.constant 0 : index
    %449 = vector.load %arg10[%c0_36, %c0_37] : memref<8x1xf32, #tpu.memory_space<vmem>>, vector<8x1xf32>
    %450 = vector.broadcast %449 : vector<8x1xf32> to vector<8x36xf32>
    %451 = arith.addf %448, %450 : vector<8x36xf32>
    %cst_38 = arith.constant 0.000000e+00 : f32
    %452 = vector.broadcast %cst_38 : f32 to vector<8x36xf32>
    %453 = arith.subf %452, %445 : vector<8x36xf32>
    %454 = math.exp %453 : vector<8x36xf32>
    %cst_39 = arith.constant 1.000000e+00 : f32
    %455 = vector.broadcast %cst_39 : f32 to vector<8x36xf32>
    %456 = arith.addf %455, %454 : vector<8x36xf32>
    %457 = tpu.reciprocal %456 {approx = true} : vector<8x36xf32> -> vector<8x36xf32>
    %cst_40 = arith.constant 0.000000e+00 : f32
    %458 = vector.broadcast %cst_40 : f32 to vector<8x36xf32>
    %459 = arith.subf %458, %451 : vector<8x36xf32>
    %460 = math.exp %459 : vector<8x36xf32>
    %cst_41 = arith.constant 1.000000e+00 : f32
    %461 = vector.broadcast %cst_41 : f32 to vector<8x36xf32>
    %462 = arith.addf %461, %460 : vector<8x36xf32>
    %463 = tpu.reciprocal %462 {approx = true} : vector<8x36xf32> -> vector<8x36xf32>
    %c0_42 = arith.constant 0 : index
    %c0_43 = arith.constant 0 : index
    %464 = vector.load %arg14[%c0_42, %c0_43] : memref<12x144xf32, #tpu.memory_space<vmem>>, vector<12x144xf32>
    %c0_44 = arith.constant 0 : index
    %c0_45 = arith.constant 0 : index
    %465 = vector.load %arg15[%c0_44, %c0_45] : memref<12x144xf32, #tpu.memory_space<vmem>>, vector<12x144xf32>
    %466 = vector.extract_strided_slice %457 {offsets = [0, 0], sizes = [8, 12], strides = [1, 1]} : vector<8x36xf32> to vector<8x12xf32>
    %cst_46 = arith.constant dense<0.000000e+00> : vector<8x144xf32>
    %467 = tpu.matmul %466, %464, %cst_46 {dimension_numbers = #tpu.dot_dimension_numbers<[1], [0], [0], [1], [0, 0, 1, 1], [], []>} : vector<8x12xf32>, vector<12x144xf32>, vector<8x144xf32> -> vector<8x144xf32>
    %468 = vector.extract_strided_slice %457 {offsets = [0, 12], sizes = [8, 12], strides = [1, 1]} : vector<8x36xf32> to vector<8x12xf32>
    %cst_47 = arith.constant dense<0.000000e+00> : vector<8x144xf32>
    %469 = tpu.matmul %468, %464, %cst_47 {dimension_numbers = #tpu.dot_dimension_numbers<[1], [0], [0], [1], [0, 0, 1, 1], [], []>} : vector<8x12xf32>, vector<12x144xf32>, vector<8x144xf32> -> vector<8x144xf32>
    %470 = vector.extract_strided_slice %457 {offsets = [0, 24], sizes = [8, 12], strides = [1, 1]} : vector<8x36xf32> to vector<8x12xf32>
    %cst_48 = arith.constant dense<0.000000e+00> : vector<8x144xf32>
    %471 = tpu.matmul %470, %464, %cst_48 {dimension_numbers = #tpu.dot_dimension_numbers<[1], [0], [0], [1], [0, 0, 1, 1], [], []>} : vector<8x12xf32>, vector<12x144xf32>, vector<8x144xf32> -> vector<8x144xf32>
    %472 = vector.extract_strided_slice %463 {offsets = [0, 0], sizes = [8, 12], strides = [1, 1]} : vector<8x36xf32> to vector<8x12xf32>
    %cst_49 = arith.constant dense<0.000000e+00> : vector<8x144xf32>
    %473 = tpu.matmul %472, %465, %cst_49 {dimension_numbers = #tpu.dot_dimension_numbers<[1], [0], [0], [1], [0, 0, 1, 1], [], []>} : vector<8x12xf32>, vector<12x144xf32>, vector<8x144xf32> -> vector<8x144xf32>
    %474 = vector.extract_strided_slice %463 {offsets = [0, 12], sizes = [8, 12], strides = [1, 1]} : vector<8x36xf32> to vector<8x12xf32>
    %cst_50 = arith.constant dense<0.000000e+00> : vector<8x144xf32>
    %475 = tpu.matmul %474, %465, %cst_50 {dimension_numbers = #tpu.dot_dimension_numbers<[1], [0], [0], [1], [0, 0, 1, 1], [], []>} : vector<8x12xf32>, vector<12x144xf32>, vector<8x144xf32> -> vector<8x144xf32>
    %476 = vector.extract_strided_slice %463 {offsets = [0, 24], sizes = [8, 12], strides = [1, 1]} : vector<8x36xf32> to vector<8x12xf32>
    %cst_51 = arith.constant dense<0.000000e+00> : vector<8x144xf32>
    %477 = tpu.matmul %476, %465, %cst_51 {dimension_numbers = #tpu.dot_dimension_numbers<[1], [0], [0], [1], [0, 0, 1, 1], [], []>} : vector<8x12xf32>, vector<12x144xf32>, vector<8x144xf32> -> vector<8x144xf32>
    %478 = arith.mulf %71, %467 : vector<8x144xf32>
    %479 = arith.mulf %478, %473 : vector<8x144xf32>
    %480 = arith.mulf %111, %467 : vector<8x144xf32>
    %481 = arith.mulf %480, %475 : vector<8x144xf32>
    %482 = arith.mulf %151, %467 : vector<8x144xf32>
    %483 = arith.mulf %482, %477 : vector<8x144xf32>
    %484 = arith.mulf %191, %469 : vector<8x144xf32>
    %485 = arith.mulf %484, %473 : vector<8x144xf32>
    %486 = arith.mulf %231, %469 : vector<8x144xf32>
    %487 = arith.mulf %486, %475 : vector<8x144xf32>
    %488 = arith.mulf %271, %469 : vector<8x144xf32>
    %489 = arith.mulf %488, %477 : vector<8x144xf32>
    %490 = arith.mulf %311, %471 : vector<8x144xf32>
    %491 = arith.mulf %490, %473 : vector<8x144xf32>
    %492 = arith.mulf %351, %471 : vector<8x144xf32>
    %493 = arith.mulf %492, %475 : vector<8x144xf32>
    %494 = arith.mulf %391, %471 : vector<8x144xf32>
    %495 = arith.mulf %494, %477 : vector<8x144xf32>
    %496 = tpu.concatenate %479, %481, %483, %485, %487, %489, %491, %493, %495 in 0 : vector<8x144xf32>, vector<8x144xf32>, vector<8x144xf32>, vector<8x144xf32>, vector<8x144xf32>, vector<8x144xf32>, vector<8x144xf32>, vector<8x144xf32>, vector<8x144xf32> -> vector<72x144xf32>
    %c0_52 = arith.constant 0 : index
    %c0_53 = arith.constant 0 : index
    %497 = vector.load %arg11[%c0_52, %c0_53] : memref<8x72xf32, #tpu.memory_space<vmem>>, vector<8x72xf32>
    %cst_54 = arith.constant dense<0.000000e+00> : vector<8x144xf32>
    %498 = tpu.matmul %497, %496, %cst_54 {dimension_numbers = #tpu.dot_dimension_numbers<[1], [0], [0], [1], [0, 0, 1, 1], [], []>} : vector<8x72xf32>, vector<72x144xf32>, vector<8x144xf32> -> vector<8x144xf32>
    %c0_55 = arith.constant 0 : index
    %c0_56 = arith.constant 0 : index
    %499 = vector.load %arg12[%c0_55, %c0_56] : memref<8x1xf32, #tpu.memory_space<vmem>>, vector<8x1xf32>
    %500 = vector.broadcast %499 : vector<8x1xf32> to vector<8x144xf32>
    %501 = arith.addf %498, %500 : vector<8x144xf32>
    %c0_57 = arith.constant 0 : index
    %c0_58 = arith.constant 0 : index
    %c0_59 = arith.constant 0 : index
    %502 = vector.load %arg16[%c0_57, %c0_58, %c0_59] : memref<1x8x144xf32, #tpu.memory_space<vmem>>, vector<1x8x144xf32>
    %503 = vector.shape_cast %502 : vector<1x8x144xf32> to vector<8x144xf32>
    %504 = vector.shape_cast %501 : vector<8x144xf32> to vector<1x8x144xf32>
    tpu.vector_store %arg16[%c0_57, %c0_58, %c0_59], %504 {strides = array<i32>} : memref<1x8x144xf32, #tpu.memory_space<vmem>>, vector<1x8x144xf32>,
    return
  }
  func.func @transform_0(%arg0: i32) -> (i32, i32, i32) {
    %c0_i32 = arith.constant 0 : i32
    %c0_i32_0 = arith.constant 0 : i32
    %c0_i32_1 = arith.constant 0 : i32
    return %arg0, %c0_i32, %c0_i32_0 : i32, i32, i32
  }
  func.func @transform_1(%arg0: i32) -> (i32, i32) {
    %c0_i32 = arith.constant 0 : i32
    %c0_i32_0 = arith.constant 0 : i32
    %c0_i32_1 = arith.constant 0 : i32
    return %c0_i32, %c0_i32_0 : i32, i32
  }
  func.func @transform_2(%arg0: i32) -> (i32, i32) {
    %c0_i32 = arith.constant 0 : i32
    %c0_i32_0 = arith.constant 0 : i32
    %c0_i32_1 = arith.constant 0 : i32
    return %c0_i32, %c0_i32_0 : i32, i32
  }
  func.func @transform_3(%arg0: i32) -> (i32, i32) {
    %c0_i32 = arith.constant 0 : i32
    %c0_i32_0 = arith.constant 0 : i32
    %c0_i32_1 = arith.constant 0 : i32
    return %c0_i32, %c0_i32_0 : i32, i32
  }
  func.func @transform_4(%arg0: i32) -> (i32, i32) {
    %c0_i32 = arith.constant 0 : i32
    %c0_i32_0 = arith.constant 0 : i32
    %c0_i32_1 = arith.constant 0 : i32
    return %c0_i32, %c0_i32_0 : i32, i32
  }
  func.func @transform_5(%arg0: i32) -> (i32, i32) {
    %c0_i32 = arith.constant 0 : i32
    %c0_i32_0 = arith.constant 0 : i32
    %c0_i32_1 = arith.constant 0 : i32
    return %c0_i32, %c0_i32_0 : i32, i32
  }
  func.func @transform_6(%arg0: i32) -> (i32, i32) {
    %c0_i32 = arith.constant 0 : i32
    %c0_i32_0 = arith.constant 0 : i32
    %c0_i32_1 = arith.constant 0 : i32
    return %c0_i32, %c0_i32_0 : i32, i32
  }
  func.func @transform_7(%arg0: i32) -> (i32, i32) {
    %c0_i32 = arith.constant 0 : i32
    %c0_i32_0 = arith.constant 0 : i32
    %c0_i32_1 = arith.constant 0 : i32
    return %c0_i32, %c0_i32_0 : i32, i32
  }
  func.func @transform_8(%arg0: i32) -> (i32, i32) {
    %c0_i32 = arith.constant 0 : i32
    %c0_i32_0 = arith.constant 0 : i32
    %c0_i32_1 = arith.constant 0 : i32
    return %c0_i32, %c0_i32_0 : i32, i32
  }
  func.func @transform_9(%arg0: i32) -> (i32, i32) {
    %c0_i32 = arith.constant 0 : i32
    %c0_i32_0 = arith.constant 0 : i32
    %c0_i32_1 = arith.constant 0 : i32
    return %c0_i32, %c0_i32_0 : i32, i32
  }
  func.func @transform_10(%arg0: i32) -> (i32, i32) {
    %c0_i32 = arith.constant 0 : i32
    %c0_i32_0 = arith.constant 0 : i32
    %c0_i32_1 = arith.constant 0 : i32
    return %c0_i32, %c0_i32_0 : i32, i32
  }
  func.func @transform_11(%arg0: i32) -> (i32, i32) {
    %c0_i32 = arith.constant 0 : i32
    %c0_i32_0 = arith.constant 0 : i32
    %c0_i32_1 = arith.constant 0 : i32
    return %c0_i32, %c0_i32_0 : i32, i32
  }
  func.func @transform_12(%arg0: i32) -> (i32, i32) {
    %c0_i32 = arith.constant 0 : i32
    %c0_i32_0 = arith.constant 0 : i32
    %c0_i32_1 = arith.constant 0 : i32
    return %c0_i32, %c0_i32_0 : i32, i32
  }
  func.func @transform_13(%arg0: i32) -> (i32, i32) {
    %c0_i32 = arith.constant 0 : i32
    %c0_i32_0 = arith.constant 0 : i32
    %c0_i32_1 = arith.constant 0 : i32
    return %c0_i32, %c0_i32_0 : i32, i32
  }
  func.func @transform_14(%arg0: i32) -> (i32, i32) {
    %c0_i32 = arith.constant 0 : i32
    %c0_i32_0 = arith.constant 0 : i32
    %c0_i32_1 = arith.constant 0 : i32
    return %c0_i32, %c0_i32_0 : i32, i32
  }
  func.func @transform_15(%arg0: i32) -> (i32, i32, i32) {
    %c0_i32 = arith.constant 0 : i32
    %c0_i32_0 = arith.constant 0 : i32
    %c0_i32_1 = arith.constant 0 : i32
    return %arg0, %c0_i32, %c0_i32_0 : i32, i32, i32
  }
}

</mosaic_0001>

<llo_original>
// kernel: mul.0
$region0: #{mul.0}
  #allocation0 [shape = 's32[1]{0}', space=sflag, size = 0x4, scoped, tag = 'scoped memory for mul.0']
  %s0 = inlined_call_operand.vmem [shape: f32[8,81], index: 0, kind: input, shape index: {}]
  %s1 = inlined_call_operand.vmem [shape: f32[8,81], index: 1, kind: input, shape index: {}]
  %s2 = inlined_call_operand.vmem [shape: f32[8,81], index: 2, kind: output, shape index: {}]
  %v3 = vld [vmem:[%s0] sm:$0xff]
  %v4 = vld [vmem:[%s1] sm:$0xff]
  %5 = xla_tuple %v3, %v4
  %6 = xla_tuple %5
  %v7 = vmul.f32 %v3, %v4
  %8 = xla_tuple %v7
  %9 = vst [vmem:[%s2] sm:$0xff] %v7

// kernel: rfca_forward_pallas.1
$region0: #{rfca_forward_pallas.1}
  #allocation0 [shape = 'u32[]', space=smem, size = 0x4, offset = 0x4, fixed_abs, tag = 'smem constant byte address 0x4 - core index']
  #allocation1 [shape = 'u32[144,128]{1,0:T(1,128)}', space=vmem, size = 0x12000, scoped, tag = 'internal scratch']
  %s0 = inlined_call_operand.vmem [shape: f32[2,8,170], index: 0, kind: input, shape index: {}]
  %s1 = inlined_call_operand.vmem [shape: f32[3,144], index: 1, kind: input, shape index: {}]
  %s2 = inlined_call_operand.vmem [shape: f32[8,81], index: 2, kind: input, shape index: {}]
  %s3 = inlined_call_operand.vmem [shape: f32[8,9], index: 3, kind: input, shape index: {}]
  %s4 = inlined_call_operand.vmem [shape: f32[8,8], index: 4, kind: input, shape index: {}]
  %s5 = inlined_call_operand.vmem [shape: f32[8,1], index: 5, kind: input, shape index: {}]
  %s6 = inlined_call_operand.vmem [shape: f32[8,8], index: 6, kind: input, shape index: {}]
  %s7 = inlined_call_operand.vmem [shape: f32[8,1], index: 7, kind: input, shape index: {}]
  %s8 = inlined_call_operand.vmem [shape: f32[8,8], index: 8, kind: input, shape index: {}]
  %s9 = inlined_call_operand.vmem [shape: f32[8,1], index: 9, kind: input, shape index: {}]
  %s10 = inlined_call_operand.vmem [shape: f32[8,72], index: 10, kind: input, shape index: {}]
  %s11 = inlined_call_operand.vmem [shape: f32[8,1], index: 11, kind: input, shape index: {}]
  %s12 = inlined_call_operand.vmem [shape: f32[144,24], index: 12, kind: input, shape index: {}]
  %s13 = inlined_call_operand.vmem [shape: f32[12,144], index: 13, kind: input, shape index: {}]
  %s14 = inlined_call_operand.vmem [shape: f32[12,144], index: 14, kind: input, shape index: {}]
  %s15 = inlined_call_operand.vmem [shape: f32[2,8,144], index: 15, kind: output, shape index: {}]
  %s16 = sld [smem:[#allocation0]]
  $region93: #{rfca_forward_pallas.1} parent=0
    _
  %s18 = ssub.s32 1, %s16
  %s19 = scalar_select 0, %s18, %s16
  loop: start=0, step=1, limit=4
  $region2: #{rfca_forward_pallas.1} parent=0 // loop_pre_header
    _
  $region3: #{rfca_forward_pallas.1} parent=0 // loop_header
    %s21 = sphi 0, %s25
    %p22 = scmp.ge.s32.totalorder %s21, 4
    %s31 = sphi 0, %s33
    %s34 = sphi 0, %s31
    %s35 = sphi 0, %s34
    %s51 = sphi 0, %s35
    %s55 = sphi 0, %s55
    %s57 = sphi 0, %s55
    %s58 = sphi 0, %s57
    %s72 = sphi 0, %s58
    %s76 = sphi 0, %s76
    %s78 = sphi 0, %s76
    %s79 = sphi 0, %s78
    %s93 = sphi 0, %s79
    %s97 = sphi 0, %s97
    %s99 = sphi 0, %s97
    %s100 = sphi 0, %s99
    %s114 = sphi 0, %s100
    %s118 = sphi 0, %s118
    %s120 = sphi 0, %s118
    %s121 = sphi 0, %s120
    %s135 = sphi 0, %s121
    %s139 = sphi 0, %s139
    %s141 = sphi 0, %s139
    %s142 = sphi 0, %s141
    %s156 = sphi 0, %s142
    %s160 = sphi 0, %s160
    %s162 = sphi 0, %s160
    %s163 = sphi 0, %s162
    %s177 = sphi 0, %s163
    %s181 = sphi 0, %s181
    %s183 = sphi 0, %s181
    %s184 = sphi 0, %s183
    %s198 = sphi 0, %s184
    %s202 = sphi 0, %s202
    %s204 = sphi 0, %s202
    %s205 = sphi 0, %s204
    %s219 = sphi 0, %s205
    %s223 = sphi 0, %s223
    %s225 = sphi 0, %s223
    %s226 = sphi 0, %s225
    %s240 = sphi 0, %s226
    %s244 = sphi 0, %s244
    %s246 = sphi 0, %s244
    %s247 = sphi 0, %s246
    %s261 = sphi 0, %s247
    %s265 = sphi 0, %s265
    %s267 = sphi 0, %s265
    %s268 = sphi 0, %s267
    %s282 = sphi 0, %s268
    %s286 = sphi 0, %s286
    %s288 = sphi 0, %s286
    %s289 = sphi 0, %s288
    %s303 = sphi 0, %s289
    %s307 = sphi 0, %s307
    %s309 = sphi 0, %s307
    %s310 = sphi 0, %s309
    %s324 = sphi 0, %s310
    %s328 = sphi 0, %s328
    %s330 = sphi 0, %s328
    %s331 = sphi 0, %s330
    %s345 = sphi 0, %s331
    %s351 = sphi 0, %s353
    %s354 = sphi 0, %s351
    %s355 = sphi 0, %s354
    %s371 = sphi 0, %s355
  $region4: #{rfca_forward_pallas.1} parent=0 // loop_header_branch
    %24 = sbr.rel (%p22) target = $region8
  $region5: #{rfca_forward_pallas.1} parent=0 // loop_body
    %s26 = ssub.s32 %s21, 1
    %s27 = ssub.s32 %s21, 2
    %s28 = sadd.s32 %s21, 1
    %s29 = ssub.s32 %s21, %s28
    %p30 = scmp.eq.s32.totalorder %s29, 0
    %s32 = sadd.s32 %s31, 1
    %s33 = scalar_select %p30, %s31, %s32
    %p36 = pneg %p30
    %p37 = scmp.eq.s32.totalorder %s21, 1
    %p38 = por %p36, %p37
    %p39 = scmp.ne.s32.totalorder %s31, %s34
    %p40 = scmp.eq.s32.totalorder %s21, 0
    %p41 = por %p39, %p40
    %p42 = scmp.ne.s32.totalorder %s31, %s34
    %p43 = scmp.eq.s32.totalorder %s26, 1
    %p44 = por %p42, %p43
    %p45 = scmp.ne.s32.totalorder %s34, %s35
    %p46 = scmp.eq.s32.totalorder %s26, 0
    %p47 = por %p45, %p46
    %p48 = scmp.ne.s32.totalorder %s34, %s35
    %p49 = scmp.eq.s32.totalorder %s27, 1
    %p50 = por %p48, %p49
    %p52 = scmp.ne.s32.totalorder %s35, %s51
    %p53 = scmp.eq.s32.totalorder %s27, 0
    %p54 = por %p52, %p53
    %s56 = sadd.s32 %s55, 1
    %p59 = scmp.eq.s32.totalorder %s21, 1
    %p60 = scmp.ne.s32.totalorder %s55, %s57
    %p61 = scmp.eq.s32.totalorder %s21, 0
    %p62 = por %p60, %p61
    %p63 = scmp.ne.s32.totalorder %s55, %s57
    %p64 = scmp.eq.s32.totalorder %s26, 1
    %p65 = por %p63, %p64
    %p66 = scmp.ne.s32.totalorder %s57, %s58
    %p67 = scmp.eq.s32.totalorder %s26, 0
    %p68 = por %p66, %p67
    %p69 = scmp.ne.s32.totalorder %s57, %s58
    %p70 = scmp.eq.s32.totalorder %s27, 1
    %p71 = por %p69, %p70
    %p73 = scmp.ne.s32.totalorder %s58, %s72
    %p74 = scmp.eq.s32.totalorder %s27, 0
    %p75 = por %p73, %p74
    %s77 = sadd.s32 %s76, 1
    %p80 = scmp.eq.s32.totalorder %s21, 1
    %p81 = scmp.ne.s32.totalorder %s76, %s78
    %p82 = scmp.eq.s32.totalorder %s21, 0
    %p83 = por %p81, %p82
    %p84 = scmp.ne.s32.totalorder %s76, %s78
    %p85 = scmp.eq.s32.totalorder %s26, 1
    %p86 = por %p84, %p85
    %p87 = scmp.ne.s32.totalorder %s78, %s79
    %p88 = scmp.eq.s32.totalorder %s26, 0
    %p89 = por %p87, %p88
    %p90 = scmp.ne.s32.totalorder %s78, %s79
    %p91 = scmp.eq.s32.totalorder %s27, 1
    %p92 = por %p90, %p91
    %p94 = scmp.ne.s32.totalorder %s79, %s93
    %p95 = scmp.eq.s32.totalorder %s27, 0
    %p96 = por %p94, %p95
    %s98 = sadd.s32 %s97, 1
    %p101 = scmp.eq.s32.totalorder %s21, 1
    %p102 = scmp.ne.s32.totalorder %s97, %s99
    %p103 = scmp.eq.s32.totalorder %s21, 0
    %p104 = por %p102, %p103
    %p105 = scmp.ne.s32.totalorder %s97, %s99
    %p106 = scmp.eq.s32.totalorder %s26, 1
    %p107 = por %p105, %p106
    %p108 = scmp.ne.s32.totalorder %s99, %s100
    %p109 = scmp.eq.s32.totalorder %s26, 0
    %p110 = por %p108, %p109
    %p111 = scmp.ne.s32.totalorder %s99, %s100
    %p112 = scmp.eq.s32.totalorder %s27, 1
    %p113 = por %p111, %p112
    %p115 = scmp.ne.s32.totalorder %s100, %s114
    %p116 = scmp.eq.s32.totalorder %s27, 0
    %p117 = por %p115, %p116
    %s119 = sadd.s32 %s118, 1
    %p122 = scmp.eq.s32.totalorder %s21, 1
    %p123 = scmp.ne.s32.totalorder %s118, %s120
    %p124 = scmp.eq.s32.totalorder %s21, 0
    %p125 = por %p123, %p124
    %p126 = scmp.ne.s32.totalorder %s118, %s120
    %p127 = scmp.eq.s32.totalorder %s26, 1
    %p128 = por %p126, %p127
    %p129 = scmp.ne.s32.totalorder %s120, %s121
    %p130 = scmp.eq.s32.totalorder %s26, 0
    %p131 = por %p129, %p130
    %p132 = scmp.ne.s32.totalorder %s120, %s121
    %p133 = scmp.eq.s32.totalorder %s27, 1
    %p134 = por %p132, %p133
    %p136 = scmp.ne.s32.totalorder %s121, %s135
    %p137 = scmp.eq.s32.totalorder %s27, 0
    %p138 = por %p136, %p137
    %s140 = sadd.s32 %s139, 1
    %p143 = scmp.eq.s32.totalorder %s21, 1
    %p144 = scmp.ne.s32.totalorder %s139, %s141
    %p145 = scmp.eq.s32.totalorder %s21, 0
    %p146 = por %p144, %p145
    %p147 = scmp.ne.s32.totalorder %s139, %s141
    %p148 = scmp.eq.s32.totalorder %s26, 1
    %p149 = por %p147, %p148
    %p150 = scmp.ne.s32.totalorder %s141, %s142
    %p151 = scmp.eq.s32.totalorder %s26, 0
    %p152 = por %p150, %p151
    %p153 = scmp.ne.s32.totalorder %s141, %s142
    %p154 = scmp.eq.s32.totalorder %s27, 1
    %p155 = por %p153, %p154
    %p157 = scmp.ne.s32.totalorder %s142, %s156
    %p158 = scmp.eq.s32.totalorder %s27, 0
    %p159 = por %p157, %p158
    %s161 = sadd.s32 %s160, 1
    %p164 = scmp.eq.s32.totalorder %s21, 1
    %p165 = scmp.ne.s32.totalorder %s160, %s162
    %p166 = scmp.eq.s32.totalorder %s21, 0
    %p167 = por %p165, %p166
    %p168 = scmp.ne.s32.totalorder %s160, %s162
    %p169 = scmp.eq.s32.totalorder %s26, 1
    %p170 = por %p168, %p169
    %p171 = scmp.ne.s32.totalorder %s162, %s163
    %p172 = scmp.eq.s32.totalorder %s26, 0
    %p173 = por %p171, %p172
    %p174 = scmp.ne.s32.totalorder %s162, %s163
    %p175 = scmp.eq.s32.totalorder %s27, 1
    %p176 = por %p174, %p175
    %p178 = scmp.ne.s32.totalorder %s163, %s177
    %p179 = scmp.eq.s32.totalorder %s27, 0
    %p180 = por %p178, %p179
    %s182 = sadd.s32 %s181, 1
    %p185 = scmp.eq.s32.totalorder %s21, 1
    %p186 = scmp.ne.s32.totalorder %s181, %s183
    %p187 = scmp.eq.s32.totalorder %s21, 0
    %p188 = por %p186, %p187
    %p189 = scmp.ne.s32.totalorder %s181, %s183
    %p190 = scmp.eq.s32.totalorder %s26, 1
    %p191 = por %p189, %p190
    %p192 = scmp.ne.s32.totalorder %s183, %s184
    %p193 = scmp.eq.s32.totalorder %s26, 0
    %p194 = por %p192, %p193
    %p195 = scmp.ne.s32.totalorder %s183, %s184
    %p196 = scmp.eq.s32.totalorder %s27, 1
    %p197 = por %p195, %p196
    %p199 = scmp.ne.s32.totalorder %s184, %s198
    %p200 = scmp.eq.s32.totalorder %s27, 0
    %p201 = por %p199, %p200
    %s203 = sadd.s32 %s202, 1
    %p206 = scmp.eq.s32.totalorder %s21, 1
    %p207 = scmp.ne.s32.totalorder %s202, %s204
    %p208 = scmp.eq.s32.totalorder %s21, 0
    %p209 = por %p207, %p208
    %p210 = scmp.ne.s32.totalorder %s202, %s204
    %p211 = scmp.eq.s32.totalorder %s26, 1
    %p212 = por %p210, %p211
    %p213 = scmp.ne.s32.totalorder %s204, %s205
    %p214 = scmp.eq.s32.totalorder %s26, 0
    %p215 = por %p213, %p214
    %p216 = scmp.ne.s32.totalorder %s204, %s205
    %p217 = scmp.eq.s32.totalorder %s27, 1
    %p218 = por %p216, %p217
    %p220 = scmp.ne.s32.totalorder %s205, %s219
    %p221 = scmp.eq.s32.totalorder %s27, 0
    %p222 = por %p220, %p221
    %s224 = sadd.s32 %s223, 1
    %p227 = scmp.eq.s32.totalorder %s21, 1
    %p228 = scmp.ne.s32.totalorder %s223, %s225
    %p229 = scmp.eq.s32.totalorder %s21, 0
    %p230 = por %p228, %p229
    %p231 = scmp.ne.s32.totalorder %s223, %s225
    %p232 = scmp.eq.s32.totalorder %s26, 1
    %p233 = por %p231, %p232
    %p234 = scmp.ne.s32.totalorder %s225, %s226
    %p235 = scmp.eq.s32.totalorder %s26, 0
    %p236 = por %p234, %p235
    %p237 = scmp.ne.s32.totalorder %s225, %s226
    %p238 = scmp.eq.s32.totalorder %s27, 1
    %p239 = por %p237, %p238
    %p241 = scmp.ne.s32.totalorder %s226, %s240
    %p242 = scmp.eq.s32.totalorder %s27, 0
    %p243 = por %p241, %p242
    %s245 = sadd.s32 %s244, 1
    %p248 = scmp.eq.s32.totalorder %s21, 1
    %p249 = scmp.ne.s32.totalorder %s244, %s246
    %p250 = scmp.eq.s32.totalorder %s21, 0
    %p251 = por %p249, %p250
    %p252 = scmp.ne.s32.totalorder %s244, %s246
    %p253 = scmp.eq.s32.totalorder %s26, 1
    %p254 = por %p252, %p253
    %p255 = scmp.ne.s32.totalorder %s246, %s247
    %p256 = scmp.eq.s32.totalorder %s26, 0
    %p257 = por %p255, %p256
    %p258 = scmp.ne.s32.totalorder %s246, %s247
    %p259 = scmp.eq.s32.totalorder %s27, 1
    %p260 = por %p258, %p259
    %p262 = scmp.ne.s32.totalorder %s247, %s261
    %p263 = scmp.eq.s32.totalorder %s27, 0
    %p264 = por %p262, %p263
    %s266 = sadd.s32 %s265, 1
    %p269 = scmp.eq.s32.totalorder %s21, 1
    %p270 = scmp.ne.s32.totalorder %s265, %s267
    %p271 = scmp.eq.s32.totalorder %s21, 0
    %p272 = por %p270, %p271
    %p273 = scmp.ne.s32.totalorder %s265, %s267
    %p274 = scmp.eq.s32.totalorder %s26, 1
    %p275 = por %p273, %p274
    %p276 = scmp.ne.s32.totalorder %s267, %s268
    %p277 = scmp.eq.s32.totalorder %s26, 0
    %p278 = por %p276, %p277
    %p279 = scmp.ne.s32.totalorder %s267, %s268
    %p280 = scmp.eq.s32.totalorder %s27, 1
    %p281 = por %p279, %p280
    %p283 = scmp.ne.s32.totalorder %s268, %s282
    %p284 = scmp.eq.s32.totalorder %s27, 0
    %p285 = por %p283, %p284
    %s287 = sadd.s32 %s286, 1
    %p290 = scmp.eq.s32.totalorder %s21, 1
    %p291 = scmp.ne.s32.totalorder %s286, %s288
    %p292 = scmp.eq.s32.totalorder %s21, 0
    %p293 = por %p291, %p292
    %p294 = scmp.ne.s32.totalorder %s286, %s288
    %p295 = scmp.eq.s32.totalorder %s26, 1
    %p296 = por %p294, %p295
    %p297 = scmp.ne.s32.totalorder %s288, %s289
    %p298 = scmp.eq.s32.totalorder %s26, 0
    %p299 = por %p297, %p298
    %p300 = scmp.ne.s32.totalorder %s288, %s289
    %p301 = scmp.eq.s32.totalorder %s27, 1
    %p302 = por %p300, %p301
    %p304 = scmp.ne.s32.totalorder %s289, %s303
    %p305 = scmp.eq.s32.totalorder %s27, 0
    %p306 = por %p304, %p305
    %s308 = sadd.s32 %s307, 1
    %p311 = scmp.eq.s32.totalorder %s21, 1
    %p312 = scmp.ne.s32.totalorder %s307, %s309
    %p313 = scmp.eq.s32.totalorder %s21, 0
    %p314 = por %p312, %p313
    %p315 = scmp.ne.s32.totalorder %s307, %s309
    %p316 = scmp.eq.s32.totalorder %s26, 1
    %p317 = por %p315, %p316
    %p318 = scmp.ne.s32.totalorder %s309, %s310
    %p319 = scmp.eq.s32.totalorder %s26, 0
    %p320 = por %p318, %p319
    %p321 = scmp.ne.s32.totalorder %s309, %s310
    %p322 = scmp.eq.s32.totalorder %s27, 1
    %p323 = por %p321, %p322
    %p325 = scmp.ne.s32.totalorder %s310, %s324
    %p326 = scmp.eq.s32.totalorder %s27, 0
    %p327 = por %p325, %p326
    %s329 = sadd.s32 %s328, 1
    %p332 = scmp.eq.s32.totalorder %s21, 1
    %p333 = scmp.ne.s32.totalorder %s328, %s330
    %p334 = scmp.eq.s32.totalorder %s21, 0
    %p335 = por %p333, %p334
    %p336 = scmp.ne.s32.totalorder %s328, %s330
    %p337 = scmp.eq.s32.totalorder %s26, 1
    %p338 = por %p336, %p337
    %p339 = scmp.ne.s32.totalorder %s330, %s331
    %p340 = scmp.eq.s32.totalorder %s26, 0
    %p341 = por %p339, %p340
    %p342 = scmp.ne.s32.totalorder %s330, %s331
    %p343 = scmp.eq.s32.totalorder %s27, 1
    %p344 = por %p342, %p343
    %p346 = scmp.ne.s32.totalorder %s331, %s345
    %p347 = scmp.eq.s32.totalorder %s27, 0
    %p348 = por %p346, %p347
    %s349 = ssub.s32 %s21, %s28
    %p350 = scmp.eq.s32.totalorder %s349, 0
    %s352 = sadd.s32 %s351, 1
    %s353 = scalar_select %p350, %s351, %s352
    %p356 = pneg %p350
    %p357 = scmp.eq.s32.totalorder %s21, 1
    %p358 = por %p356, %p357
    %p359 = scmp.ne.s32.totalorder %s351, %s354
    %p360 = scmp.eq.s32.totalorder %s21, 0
    %p361 = por %p359, %p360
    %p362 = scmp.ne.s32.totalorder %s351, %s354
    %p363 = scmp.eq.s32.totalorder %s26, 1
    %p364 = por %p362, %p363
    %p365 = scmp.ne.s32.totalorder %s354, %s355
    %p366 = scmp.eq.s32.totalorder %s26, 0
    %p367 = por %p365, %p366
    %p368 = scmp.ne.s32.totalorder %s354, %s355
    %p369 = scmp.eq.s32.totalorder %s27, 1
    %p370 = por %p368, %p369
    %p372 = scmp.ne.s32.totalorder %s355, %s371
    %p373 = scmp.eq.s32.totalorder %s27, 0
    %p374 = por %p372, %p373
    %p375 = scmp.le.s32.totalorder 1, %s21
    %p376 = scmp.lt.s32.totalorder %s21, 3
    %p377 = pnand %p375, %p376
    %p378 = pneg %p377
    // Predicated region
    $region9: #{rfca_forward_pallas.1} parent=5 // pred_check
      _
    $region10: #{rfca_forward_pallas.1} parent=5 // pred_check_branch
      %380 = sbr.rel (%p377) target = $region12
    $region11: #{rfca_forward_pallas.1} parent=5 // pred_region
      %s381 = ssub.s32 %s21, 1
      // Predicated region
      $region13: #{rfca_forward_pallas.1} parent=11 // pred_check
        %p382 = pneg %p68
      $region14: #{rfca_forward_pallas.1} parent=11 // pred_check_branch
        %384 = sbr.rel (%p382) target = $region16
      $region15: #{rfca_forward_pallas.1} parent=11 // pred_region
        _
      $region16: #{rfca_forward_pallas.1} parent=11 // pred_fallthru
        _
      // Predicated region
      $region17: #{rfca_forward_pallas.1} parent=11 // pred_check
        %p385 = pneg %p89
      $region18: #{rfca_forward_pallas.1} parent=11 // pred_check_branch
        %387 = sbr.rel (%p385) target = $region20
      $region19: #{rfca_forward_pallas.1} parent=11 // pred_region
        _
      $region20: #{rfca_forward_pallas.1} parent=11 // pred_fallthru
        _
      // Predicated region
      $region21: #{rfca_forward_pallas.1} parent=11 // pred_check
        %p388 = pneg %p110
      $region22: #{rfca_forward_pallas.1} parent=11 // pred_check_branch
        %390 = sbr.rel (%p388) target = $region24
      $region23: #{rfca_forward_pallas.1} parent=11 // pred_region
        _
      $region24: #{rfca_forward_pallas.1} parent=11 // pred_fallthru
        _
      // Predicated region
      $region25: #{rfca_forward_pallas.1} parent=11 // pred_check
        %p391 = pneg %p131
      $region26: #{rfca_forward_pallas.1} parent=11 // pred_check_branch
        %393 = sbr.rel (%p391) target = $region28
      $region27: #{rfca_forward_pallas.1} parent=11 // pred_region
        _
      $region28: #{rfca_forward_pallas.1} parent=11 // pred_fallthru
        _
      // Predicated region
      $region29: #{rfca_forward_pallas.1} parent=11 // pred_check
        %p394 = pneg %p152
      $region30: #{rfca_forward_pallas.1} parent=11 // pred_check_branch
        %396 = sbr.rel (%p394) target = $region32
      $region31: #{rfca_forward_pallas.1} parent=11 // pred_region
        _
      $region32: #{rfca_forward_pallas.1} parent=11 // pred_fallthru
        _
      // Predicated region
      $region33: #{rfca_forward_pallas.1} parent=11 // pred_check
        %p397 = pneg %p173
      $region34: #{rfca_forward_pallas.1} parent=11 // pred_check_branch
        %399 = sbr.rel (%p397) target = $region36
      $region35: #{rfca_forward_pallas.1} parent=11 // pred_region
        _
      $region36: #{rfca_forward_pallas.1} parent=11 // pred_fallthru
        _
      // Predicated region
      $region37: #{rfca_forward_pallas.1} parent=11 // pred_check
        %p400 = pneg %p194
      $region38: #{rfca_forward_pallas.1} parent=11 // pred_check_branch
        %402 = sbr.rel (%p400) target = $region40
      $region39: #{rfca_forward_pallas.1} parent=11 // pred_region
        _
      $region40: #{rfca_forward_pallas.1} parent=11 // pred_fallthru
        _
      // Predicated region
      $region41: #{rfca_forward_pallas.1} parent=11 // pred_check
        %p403 = pneg %p215
      $region42: #{rfca_forward_pallas.1} parent=11 // pred_check_branch
        %405 = sbr.rel (%p403) target = $region44
      $region43: #{rfca_forward_pallas.1} parent=11 // pred_region
        _
      $region44: #{rfca_forward_pallas.1} parent=11 // pred_fallthru
        _
      // Predicated region
      $region45: #{rfca_forward_pallas.1} parent=11 // pred_check
        %p406 = pneg %p236
      $region46: #{rfca_forward_pallas.1} parent=11 // pred_check_branch
        %408 = sbr.rel (%p406) target = $region48
      $region47: #{rfca_forward_pallas.1} parent=11 // pred_region
        _
      $region48: #{rfca_forward_pallas.1} parent=11 // pred_fallthru
        _
      // Predicated region
      $region49: #{rfca_forward_pallas.1} parent=11 // pred_check
        %p409 = pneg %p257
      $region50: #{rfca_forward_pallas.1} parent=11 // pred_check_branch
        %411 = sbr.rel (%p409) target = $region52
      $region51: #{rfca_forward_pallas.1} parent=11 // pred_region
        _
      $region52: #{rfca_forward_pallas.1} parent=11 // pred_fallthru
        _
      // Predicated region
      $region53: #{rfca_forward_pallas.1} parent=11 // pred_check
        %p412 = pneg %p278
      $region54: #{rfca_forward_pallas.1} parent=11 // pred_check_branch
        %414 = sbr.rel (%p412) target = $region56
      $region55: #{rfca_forward_pallas.1} parent=11 // pred_region
        _
      $region56: #{rfca_forward_pallas.1} parent=11 // pred_fallthru
        _
      // Predicated region
      $region57: #{rfca_forward_pallas.1} parent=11 // pred_check
        %p415 = pneg %p299
      $region58: #{rfca_forward_pallas.1} parent=11 // pred_check_branch
        %417 = sbr.rel (%p415) target = $region60
      $region59: #{rfca_forward_pallas.1} parent=11 // pred_region
        _
      $region60: #{rfca_forward_pallas.1} parent=11 // pred_fallthru
        _
      // Predicated region
      $region61: #{rfca_forward_pallas.1} parent=11 // pred_check
        %p418 = pneg %p320
      $region62: #{rfca_forward_pallas.1} parent=11 // pred_check_branch
        %420 = sbr.rel (%p418) target = $region64
      $region63: #{rfca_forward_pallas.1} parent=11 // pred_region
        _
      $region64: #{rfca_forward_pallas.1} parent=11 // pred_fallthru
        _
      // Predicated region
      $region65: #{rfca_forward_pallas.1} parent=11 // pred_check
        %p421 = pneg %p341
      $region66: #{rfca_forward_pallas.1} parent=11 // pred_check_branch
        %423 = sbr.rel (%p421) target = $region68
      $region67: #{rfca_forward_pallas.1} parent=11 // pred_region
        _
      $region68: #{rfca_forward_pallas.1} parent=11 // pred_fallthru
        _
    $region12: #{rfca_forward_pallas.1} parent=5 // pred_fallthru
      _
    %p424 = scmp.lt.s32.totalorder %s21, 2
    // Predicated region
    $region69: #{rfca_forward_pallas.1} parent=5 // pred_check
      %p425 = pneg %p424
    $region70: #{rfca_forward_pallas.1} parent=5 // pred_check_branch
      %427 = sbr.rel (%p425) target = $region72
    $region71: #{rfca_forward_pallas.1} parent=5 // pred_region
      // Predicated region
      $region73: #{rfca_forward_pallas.1} parent=71 // pred_check
        %p428 = pneg %p41
      $region74: #{rfca_forward_pallas.1} parent=71 // pred_check_branch
        %430 = sbr.rel (%p428) target = $region76
      $region75: #{rfca_forward_pallas.1} parent=71 // pred_region
        %p431 = scmp.lt.s32.totalorder %s21, 1
        %s432 = scalar_select %p431, %s21, 1
        %s433 = smul.addr %s432, 2
        %s434 = smul.addr %s433, 8
        %s435 = scalar_lea.vmem %s0, %s434
      $region76: #{rfca_forward_pallas.1} parent=71 // pred_fallthru
        _
    $region72: #{rfca_forward_pallas.1} parent=5 // pred_fallthru
      _
    %p436 = scmp.le.s32.totalorder 1, %s21
    %p437 = scmp.lt.s32.totalorder %s21, 3
    %p438 = pnand %p436, %p437
    %p439 = pneg %p438
    // Predicated region
    $region77: #{rfca_forward_pallas.1} parent=5 // pred_check
      _
    $region78: #{rfca_forward_pallas.1} parent=5 // pred_check_branch
      %441 = sbr.rel (%p438) target = $region80
    $region79: #{rfca_forward_pallas.1} parent=5 // pred_region
      %s442 = ssub.s32 %s21, 1
      %p443 = scmp.lt.s32.totalorder %s26, 1
      %s444 = scalar_select %p443, %s26, 1
      %s445 = smul.addr %s444, 2
      %s446 = smul.addr %s445, 8
      %s447 = scalar_lea.vmem %s0, %s446
      %p448 = pneg %p47
      %p449 = pneg %p44
      %p450 = pneg %p68
      %p451 = pneg %p65
      %p452 = pneg %p89
      %p453 = pneg %p86
      %p454 = pneg %p110
      %p455 = pneg %p107
      %p456 = pneg %p131
      %p457 = pneg %p128
      %p458 = pneg %p152
      %p459 = pneg %p149
      %p460 = pneg %p173
      %p461 = pneg %p170
      %p462 = pneg %p194
      %p463 = pneg %p191
      %p464 = pneg %p215
      %p465 = pneg %p212
      %p466 = pneg %p236
      %p467 = pneg %p233
      %p468 = pneg %p257
      %p469 = pneg %p254
      %p470 = pneg %p278
      %p471 = pneg %p275
      %p472 = pneg %p299
      %p473 = pneg %p296
      %p474 = pneg %p320
      %p475 = pneg %p317
      %p476 = pneg %p341
      %p477 = pneg %p338
      %p478 = pneg %p367
      %p479 = pneg %p364
      %p480 = scmp.lt.s32.totalorder %s26, 1
      %s481 = scalar_select %p480, %s26, 1
      %s482 = smul.addr %s481, 2
      %s483 = smul.addr %s482, 8
      %s484 = scalar_lea.vmem %s15, %s483
      %p485 = scmp.lt.s32.totalorder %s26, 1
      %s486 = scalar_select %p485, %s26, 1
      %s487 = smul.addr %s486, 2
      %s488 = smul.addr %s487, 8
      %s489 = scalar_lea.vmem %s0, %s488
      %p490 = scmp.lt.s32.totalorder %s26, 1
      %s491 = scalar_select %p490, %s26, 1
      %s492 = smul.addr %s491, 2
      %s493 = smul.addr %s492, 8
      %s494 = scalar_lea.vmem %s15, %s493
      %v495 = vld [vmem:[%s489] sm:$0xff]
      %v496 = vld [vmem:[%s489 + $0x8] sm:$0xff]
      %v497 = vld [vmem:[%s1] sm:$0x77]
      %v498 = vld [vmem:[%s2] sm:$0xff]
      %v499 = vld [vmem:[%s3] sm:$0xff]
      %v501 = vlaneseq
      %v502 = vshrl.u32 %v501, 7
      %v503 = vsub.s32 0, %v502
      %v504 = vrot.slane %v497, %v503
      %v505 = vlaneseq
      %v506 = vshrl.u32 %v505, 7
      %v507 = vsub.s32 4, %v506
      %v508 = vrot.slane %v497, %v507
      %v511 = vlaneseq
      %v512 = vshrl.u32 %v511, 7
      %v513 = vsub.s32 0, %v512
      %v514 = vrot.slane %v504, %v513
      %v515 = vlaneseq
      %v516 = vshrl.u32 %v515, 7
      %v517 = vsub.s32 0, %v516
      %v518 = vrot.slane %v508, %v517
      %v519 = vmul.f32 %v495, %v514
      %v520 = vmul.f32 %v496, %v518
      %v521 = vlaneseq
      %v522 = vshrl.u32 %v521, 7
      %v523 = vsub.s32 2, %v522
      %v524 = vrot.slane %v497, %v523
      %v525 = vlaneseq
      %v526 = vshrl.u32 %v525, 7
      %v527 = vsub.s32 6, %v526
      %v528 = vrot.slane %v497, %v527
      %v531 = vlaneseq
      %v532 = vshrl.u32 %v531, 7
      %v533 = vsub.s32 2, %v532
      %v534 = vrot.slane %v524, %v533
      %v535 = vlaneseq
      %v536 = vshrl.u32 %v535, 7
      %v537 = vsub.s32 2, %v536
      %v538 = vrot.slane %v528, %v537
      %541 = vrot.lane.b32.xlu0 %v534, 2
      %v542 = vpop.permute.xlu0 %541
      %543 = vrot.lane.b32.xlu0 %v538, 2
      %v544 = vpop.permute.xlu0 %543
      %vm545 = vcmask 15360
      %v546 = vsel %vm545, %v542, %v544
      %v549 = vmul.f32 %v495, %v542
      %v550 = vmul.f32 %v496, %v546
      %553 = vrot.lane.b32.xlu0 %v514, 12
      %v554 = vpop.permute.xlu0 %553
      %555 = vrot.lane.b32.xlu0 %v518, 12
      %v556 = vpop.permute.xlu0 %555
      %vm557 = vcmask 97280
      %v558 = vsel %vm557, %v554, %v556
      %v561 = vmul.f32 %v495, %v554
      %v562 = vmul.f32 %v496, %v558
      %563 = vrot.lane.b32.xlu0 %v534, 14
      %v564 = vpop.permute.xlu0 %563
      %565 = vrot.lane.b32.xlu0 %v538, 14
      %v566 = vpop.permute.xlu0 %565
      %vm567 = vcmask 113664
      %v568 = vsel %vm567, %v564, %v566
      %v571 = vmul.f32 %v495, %v564
      %v572 = vmul.f32 %v496, %v568
      %573 = vrot.lane.b32.xlu0 %v514, 24
      %v574 = vpop.permute.xlu0 %573
      %575 = vrot.lane.b32.xlu0 %v518, 24
      %v576 = vpop.permute.xlu0 %575
      %vm577 = vcmask 195584
      %v578 = vsel %vm577, %v574, %v576
      %v581 = vmul.f32 %v495, %v574
      %v582 = vmul.f32 %v496, %v578
      %583 = vrot.lane.b32.xlu0 %v534, 26
      %v584 = vpop.permute.xlu0 %583
      %585 = vrot.lane.b32.xlu0 %v538, 26
      %v586 = vpop.permute.xlu0 %585
      %vm587 = vcmask 211968
      %v588 = vsel %vm587, %v584, %v586
      %v591 = vmul.f32 %v495, %v584
      %v592 = vmul.f32 %v496, %v588
      %594 = vset.pattern.permute.xlu0 0
      %595 = vperm.xlu0 %594, %v498
      %v596 = vpop.permute.xlu0 %595
      %v598 = vmul.f32 %v596, %v519
      %v599 = vmul.f32 %v596, %v520
      %600 = vset.pattern.permute.xlu0 1
      %601 = vperm.xlu0 %600, %v498
      %v602 = vpop.permute.xlu0 %601
      %v604 = vmul.f32 %v602, %v495
      %v605 = vmul.f32 %v602, %v496
      %608 = vrot.lane.b32.xlu0 %v604, 127
      %v609 = vpop.permute.xlu0 %608
      %610 = vrot.lane.b32.xlu0 %v605, 127
      %v611 = vpop.permute.xlu0 %610
      %vm612 = vcmask 1039360
      %v613 = vsel %vm612, %v609, %v611
      %v616 = vadd.f32 %v598, %v613
      %v617 = vadd.f32 %v599, %v611
      %618 = vset.pattern.permute.xlu0 2
      %619 = vperm.xlu0 %618, %v498
      %v620 = vpop.permute.xlu0 %619
      %v622 = vmul.f32 %v620, %v549
      %v623 = vmul.f32 %v620, %v550
      %626 = vrot.lane.b32.xlu0 %v622, 126
      %v627 = vpop.permute.xlu0 %626
      %628 = vrot.lane.b32.xlu0 %v623, 126
      %v629 = vpop.permute.xlu0 %628
      %vm630 = vcmask 1031168
      %v631 = vsel %vm630, %v627, %v629
      %v634 = vadd.f32 %v616, %v631
      %v635 = vadd.f32 %v617, %v629
      %636 = vset.pattern.permute.xlu0 3
      %637 = vperm.xlu0 %636, %v498
      %v638 = vpop.permute.xlu0 %637
      %v640 = vmul.f32 %v638, %v561
      %v641 = vmul.f32 %v638, %v562
      %644 = vrot.lane.b32.xlu0 %v640, 116
      %v645 = vpop.permute.xlu0 %644
      %646 = vrot.lane.b32.xlu0 %v641, 116
      %v647 = vpop.permute.xlu0 %646
      %vm648 = vcmask 949248
      %v649 = vsel %vm648, %v645, %v647
      %v652 = vadd.f32 %v634, %v649
      %v653 = vadd.f32 %v635, %v647
      %654 = vset.pattern.permute.xlu0 4
      %655 = vperm.xlu0 %654, %v498
      %v656 = vpop.permute.xlu0 %655
      %v658 = vmul.f32 %v656, %v495
      %v659 = vmul.f32 %v656, %v496
      %662 = vrot.lane.b32.xlu0 %v658, 115
      %v663 = vpop.permute.xlu0 %662
      %664 = vrot.lane.b32.xlu0 %v659, 115
      %v665 = vpop.permute.xlu0 %664
      %vm666 = vcmask 941056
      %v667 = vsel %vm666, %v663, %v665
      %v670 = vadd.f32 %v652, %v667
      %v671 = vadd.f32 %v653, %v665
      %672 = vset.pattern.permute.xlu0 5
      %673 = vperm.xlu0 %672, %v498
      %v674 = vpop.permute.xlu0 %673
      %v676 = vmul.f32 %v674, %v571
      %v677 = vmul.f32 %v674, %v572
      %680 = vrot.lane.b32.xlu0 %v676, 114
      %v681 = vpop.permute.xlu0 %680
      %682 = vrot.lane.b32.xlu0 %v677, 114
      %v683 = vpop.permute.xlu0 %682
      %vm684 = vcmask 932864
      %v685 = vsel %vm684, %v681, %v683
      %v688 = vadd.f32 %v670, %v685
      %v689 = vadd.f32 %v671, %v683
      %690 = vset.pattern.permute.xlu0 6
      %691 = vperm.xlu0 %690, %v498
      %v692 = vpop.permute.xlu0 %691
      %v694 = vmul.f32 %v692, %v581
      %v695 = vmul.f32 %v692, %v582
      %698 = vrot.lane.b32.xlu0 %v694, 104
      %v699 = vpop.permute.xlu0 %698
      %700 = vrot.lane.b32.xlu0 %v695, 104
      %v701 = vpop.permute.xlu0 %700
      %vm702 = vcmask 850944
      %v703 = vsel %vm702, %v699, %v701
      %v706 = vadd.f32 %v688, %v703
      %v707 = vadd.f32 %v689, %v701
      %708 = vset.pattern.permute.xlu0 7
      %709 = vperm.xlu0 %708, %v498
      %v710 = vpop.permute.xlu0 %709
      %v712 = vmul.f32 %v710, %v495
      %v713 = vmul.f32 %v710, %v496
      %716 = vrot.lane.b32.xlu0 %v712, 103
      %v717 = vpop.permute.xlu0 %716
      %718 = vrot.lane.b32.xlu0 %v713, 103
      %v719 = vpop.permute.xlu0 %718
      %vm720 = vcmask 842752
      %v721 = vsel %vm720, %v717, %v719
      %v724 = vadd.f32 %v706, %v721
      %v725 = vadd.f32 %v707, %v719
      %726 = vset.pattern.permute.xlu0 8
      %727 = vperm.xlu0 %726, %v498
      %v728 = vpop.permute.xlu0 %727
      %v730 = vmul.f32 %v728, %v591
      %v731 = vmul.f32 %v728, %v592
      %734 = vrot.lane.b32.xlu0 %v730, 102
      %v735 = vpop.permute.xlu0 %734
      %736 = vrot.lane.b32.xlu0 %v731, 102
      %v737 = vpop.permute.xlu0 %736
      %vm738 = vcmask 834560
      %v739 = vsel %vm738, %v735, %v737
      %v742 = vadd.f32 %v724, %v739
      %v743 = vadd.f32 %v725, %v737
      %745 = vset.pattern.permute.xlu0 0
      %746 = vperm.xlu0 %745, %v499
      %v747 = vpop.permute.xlu0 %746
      %v749 = vadd.f32 %v742, %v747
      %v750 = vadd.f32 %v743, %v747
      %v751 = vmax.f32 %v749, 0.0
      %v752 = vmax.f32 %v750, 0.0
      %753 = vset.pattern.permute.xlu0 9
      %754 = vperm.xlu0 %753, %v498
      %v755 = vpop.permute.xlu0 %754
      %v757 = vmul.f32 %v755, %v519
      %v758 = vmul.f32 %v755, %v520
      %759 = vset.pattern.permute.xlu0 10
      %760 = vperm.xlu0 %759, %v498
      %v761 = vpop.permute.xlu0 %760
      %v763 = vmul.f32 %v761, %v495
      %v764 = vmul.f32 %v761, %v496
      %767 = vrot.lane.b32.xlu0 %v763, 127
      %v768 = vpop.permute.xlu0 %767
      %769 = vrot.lane.b32.xlu0 %v764, 127
      %v770 = vpop.permute.xlu0 %769
      %v771 = vsel %vm612, %v768, %v770
      %v774 = vadd.f32 %v757, %v771
      %v775 = vadd.f32 %v758, %v770
      %776 = vset.pattern.permute.xlu0 11
      %777 = vperm.xlu0 %776, %v498
      %v778 = vpop.permute.xlu0 %777
      %v780 = vmul.f32 %v778, %v549
      %v781 = vmul.f32 %v778, %v550
      %784 = vrot.lane.b32.xlu0 %v780, 126
      %v785 = vpop.permute.xlu0 %784
      %786 = vrot.lane.b32.xlu0 %v781, 126
      %v787 = vpop.permute.xlu0 %786
      %v788 = vsel %vm630, %v785, %v787
      %v791 = vadd.f32 %v774, %v788
      %v792 = vadd.f32 %v775, %v787
      %793 = vset.pattern.permute.xlu0 12
      %794 = vperm.xlu0 %793, %v498
      %v795 = vpop.permute.xlu0 %794
      %v797 = vmul.f32 %v795, %v561
      %v798 = vmul.f32 %v795, %v562
      %801 = vrot.lane.b32.xlu0 %v797, 116
      %v802 = vpop.permute.xlu0 %801
      %803 = vrot.lane.b32.xlu0 %v798, 116
      %v804 = vpop.permute.xlu0 %803
      %v805 = vsel %vm648, %v802, %v804
      %v808 = vadd.f32 %v791, %v805
      %v809 = vadd.f32 %v792, %v804
      %810 = vset.pattern.permute.xlu0 13
      %811 = vperm.xlu0 %810, %v498
      %v812 = vpop.permute.xlu0 %811
      %v814 = vmul.f32 %v812, %v495
      %v815 = vmul.f32 %v812, %v496
      %818 = vrot.lane.b32.xlu0 %v814, 115
      %v819 = vpop.permute.xlu0 %818
      %820 = vrot.lane.b32.xlu0 %v815, 115
      %v821 = vpop.permute.xlu0 %820
      %v822 = vsel %vm666, %v819, %v821
      %v825 = vadd.f32 %v808, %v822
      %v826 = vadd.f32 %v809, %v821
      %827 = vset.pattern.permute.xlu0 14
      %828 = vperm.xlu0 %827, %v498
      %v829 = vpop.permute.xlu0 %828
      %v831 = vmul.f32 %v829, %v571
      %v832 = vmul.f32 %v829, %v572
      %835 = vrot.lane.b32.xlu0 %v831, 114
      %v836 = vpop.permute.xlu0 %835
      %837 = vrot.lane.b32.xlu0 %v832, 114
      %v838 = vpop.permute.xlu0 %837
      %v839 = vsel %vm684, %v836, %v838
      %v842 = vadd.f32 %v825, %v839
      %v843 = vadd.f32 %v826, %v838
      %844 = vset.pattern.permute.xlu0 15
      %845 = vperm.xlu0 %844, %v498
      %v846 = vpop.permute.xlu0 %845
      %v848 = vmul.f32 %v846, %v581
      %v849 = vmul.f32 %v846, %v582
      %852 = vrot.lane.b32.xlu0 %v848, 104
      %v853 = vpop.permute.xlu0 %852
      %854 = vrot.lane.b32.xlu0 %v849, 104
      %v855 = vpop.permute.xlu0 %854
      %v856 = vsel %vm702, %v853, %v855
      %v859 = vadd.f32 %v842, %v856
      %v860 = vadd.f32 %v843, %v855
      %861 = vset.pattern.permute.xlu0 16
      %862 = vperm.xlu0 %861, %v498
      %v863 = vpop.permute.xlu0 %862
      %v865 = vmul.f32 %v863, %v495
      %v866 = vmul.f32 %v863, %v496
      %869 = vrot.lane.b32.xlu0 %v865, 103
      %v870 = vpop.permute.xlu0 %869
      %871 = vrot.lane.b32.xlu0 %v866, 103
      %v872 = vpop.permute.xlu0 %871
      %v873 = vsel %vm720, %v870, %v872
      %v876 = vadd.f32 %v859, %v873
      %v877 = vadd.f32 %v860, %v872
      %878 = vset.pattern.permute.xlu0 17
      %879 = vperm.xlu0 %878, %v498
      %v880 = vpop.permute.xlu0 %879
      %v882 = vmul.f32 %v880, %v591
      %v883 = vmul.f32 %v880, %v592
      %886 = vrot.lane.b32.xlu0 %v882, 102
      %v887 = vpop.permute.xlu0 %886
      %888 = vrot.lane.b32.xlu0 %v883, 102
      %v889 = vpop.permute.xlu0 %888
      %v890 = vsel %vm738, %v887, %v889
      %v893 = vadd.f32 %v876, %v890
      %v894 = vadd.f32 %v877, %v889
      %895 = vset.pattern.permute.xlu0 1
      %896 = vperm.xlu0 %895, %v499
      %v897 = vpop.permute.xlu0 %896
      %v899 = vadd.f32 %v893, %v897
      %v900 = vadd.f32 %v894, %v897
      %v901 = vmax.f32 %v899, 0.0
      %v902 = vmax.f32 %v900, 0.0
      %903 = vset.pattern.permute.xlu0 18
      %904 = vperm.xlu0 %903, %v498
      %v905 = vpop.permute.xlu0 %904
      %v907 = vmul.f32 %v905, %v519
      %v908 = vmul.f32 %v905, %v520
      %909 = vset.pattern.permute.xlu0 19
      %910 = vperm.xlu0 %909, %v498
      %v911 = vpop.permute.xlu0 %910
      %v913 = vmul.f32 %v911, %v495
      %v914 = vmul.f32 %v911, %v496
      %917 = vrot.lane.b32.xlu0 %v913, 127
      %v918 = vpop.permute.xlu0 %917
      %919 = vrot.lane.b32.xlu0 %v914, 127
      %v920 = vpop.permute.xlu0 %919
      %v921 = vsel %vm612, %v918, %v920
      %v924 = vadd.f32 %v907, %v921
      %v925 = vadd.f32 %v908, %v920
      %926 = vset.pattern.permute.xlu0 20
      %927 = vperm.xlu0 %926, %v498
      %v928 = vpop.permute.xlu0 %927
      %v930 = vmul.f32 %v928, %v549
      %v931 = vmul.f32 %v928, %v550
      %934 = vrot.lane.b32.xlu0 %v930, 126
      %v935 = vpop.permute.xlu0 %934
      %936 = vrot.lane.b32.xlu0 %v931, 126
      %v937 = vpop.permute.xlu0 %936
      %v938 = vsel %vm630, %v935, %v937
      %v941 = vadd.f32 %v924, %v938
      %v942 = vadd.f32 %v925, %v937
      %943 = vset.pattern.permute.xlu0 21
      %944 = vperm.xlu0 %943, %v498
      %v945 = vpop.permute.xlu0 %944
      %v947 = vmul.f32 %v945, %v561
      %v948 = vmul.f32 %v945, %v562
      %951 = vrot.lane.b32.xlu0 %v947, 116
      %v952 = vpop.permute.xlu0 %951
      %953 = vrot.lane.b32.xlu0 %v948, 116
      %v954 = vpop.permute.xlu0 %953
      %v955 = vsel %vm648, %v952, %v954
      %v958 = vadd.f32 %v941, %v955
      %v959 = vadd.f32 %v942, %v954
      %960 = vset.pattern.permute.xlu0 22
      %961 = vperm.xlu0 %960, %v498
      %v962 = vpop.permute.xlu0 %961
      %v964 = vmul.f32 %v962, %v495
      %v965 = vmul.f32 %v962, %v496
      %968 = vrot.lane.b32.xlu0 %v964, 115
      %v969 = vpop.permute.xlu0 %968
      %970 = vrot.lane.b32.xlu0 %v965, 115
      %v971 = vpop.permute.xlu0 %970
      %v972 = vsel %vm666, %v969, %v971
      %v975 = vadd.f32 %v958, %v972
      %v976 = vadd.f32 %v959, %v971
      %977 = vset.pattern.permute.xlu0 23
      %978 = vperm.xlu0 %977, %v498
      %v979 = vpop.permute.xlu0 %978
      %v981 = vmul.f32 %v979, %v571
      %v982 = vmul.f32 %v979, %v572
      %985 = vrot.lane.b32.xlu0 %v981, 114
      %v986 = vpop.permute.xlu0 %985
      %987 = vrot.lane.b32.xlu0 %v982, 114
      %v988 = vpop.permute.xlu0 %987
      %v989 = vsel %vm684, %v986, %v988
      %v992 = vadd.f32 %v975, %v989
      %v993 = vadd.f32 %v976, %v988
      %994 = vset.pattern.permute.xlu0 24
      %995 = vperm.xlu0 %994, %v498
      %v996 = vpop.permute.xlu0 %995
      %v998 = vmul.f32 %v996, %v581
      %v999 = vmul.f32 %v996, %v582
      %1002 = vrot.lane.b32.xlu0 %v998, 104
      %v1003 = vpop.permute.xlu0 %1002
      %1004 = vrot.lane.b32.xlu0 %v999, 104
      %v1005 = vpop.permute.xlu0 %1004
      %v1006 = vsel %vm702, %v1003, %v1005
      %v1009 = vadd.f32 %v992, %v1006
      %v1010 = vadd.f32 %v993, %v1005
      %1011 = vset.pattern.permute.xlu0 25
      %1012 = vperm.xlu0 %1011, %v498
      %v1013 = vpop.permute.xlu0 %1012
      %v1015 = vmul.f32 %v1013, %v495
      %v1016 = vmul.f32 %v1013, %v496
      %1019 = vrot.lane.b32.xlu0 %v1015, 103
      %v1020 = vpop.permute.xlu0 %1019
      %1021 = vrot.lane.b32.xlu0 %v1016, 103
      %v1022 = vpop.permute.xlu0 %1021
      %v1023 = vsel %vm720, %v1020, %v1022
      %v1026 = vadd.f32 %v1009, %v1023
      %v1027 = vadd.f32 %v1010, %v1022
      %1028 = vset.pattern.permute.xlu0 26
      %1029 = vperm.xlu0 %1028, %v498
      %v1030 = vpop.permute.xlu0 %1029
      %v1032 = vmul.f32 %v1030, %v591
      %v1033 = vmul.f32 %v1030, %v592
      %1036 = vrot.lane.b32.xlu0 %v1032, 102
      %v1037 = vpop.permute.xlu0 %1036
      %1038 = vrot.lane.b32.xlu0 %v1033, 102
      %v1039 = vpop.permute.xlu0 %1038
      %v1040 = vsel %vm738, %v1037, %v1039
      %v1043 = vadd.f32 %v1026, %v1040
      %v1044 = vadd.f32 %v1027, %v1039
      %1045 = vset.pattern.permute.xlu0 2
      %1046 = vperm.xlu0 %1045, %v499
      %v1047 = vpop.permute.xlu0 %1046
      %v1049 = vadd.f32 %v1043, %v1047
      %v1050 = vadd.f32 %v1044, %v1047
      %v1051 = vmax.f32 %v1049, 0.0
      %v1052 = vmax.f32 %v1050, 0.0
      %1053 = vset.pattern.permute.xlu0 27
      %1054 = vperm.xlu0 %1053, %v498
      %v1055 = vpop.permute.xlu0 %1054
      %v1057 = vmul.f32 %v1055, %v519
      %v1058 = vmul.f32 %v1055, %v520
      %1059 = vset.pattern.permute.xlu0 28
      %1060 = vperm.xlu0 %1059, %v498
      %v1061 = vpop.permute.xlu0 %1060
      %v1063 = vmul.f32 %v1061, %v495
      %v1064 = vmul.f32 %v1061, %v496
      %1067 = vrot.lane.b32.xlu0 %v1063, 127
      %v1068 = vpop.permute.xlu0 %1067
      %1069 = vrot.lane.b32.xlu0 %v1064, 127
      %v1070 = vpop.permute.xlu0 %1069
      %v1071 = vsel %vm612, %v1068, %v1070
      %v1074 = vadd.f32 %v1057, %v1071
      %v1075 = vadd.f32 %v1058, %v1070
      %1076 = vset.pattern.permute.xlu0 29
      %1077 = vperm.xlu0 %1076, %v498
      %v1078 = vpop.permute.xlu0 %1077
      %v1080 = vmul.f32 %v1078, %v549
      %v1081 = vmul.f32 %v1078, %v550
      %1084 = vrot.lane.b32.xlu0 %v1080, 126
      %v1085 = vpop.permute.xlu0 %1084
      %1086 = vrot.lane.b32.xlu0 %v1081, 126
      %v1087 = vpop.permute.xlu0 %1086
      %v1088 = vsel %vm630, %v1085, %v1087
      %v1091 = vadd.f32 %v1074, %v1088
      %v1092 = vadd.f32 %v1075, %v1087
      %1093 = vset.pattern.permute.xlu0 30
      %1094 = vperm.xlu0 %1093, %v498
      %v1095 = vpop.permute.xlu0 %1094
      %v1097 = vmul.f32 %v1095, %v561
      %v1098 = vmul.f32 %v1095, %v562
      %1101 = vrot.lane.b32.xlu0 %v1097, 116
      %v1102 = vpop.permute.xlu0 %1101
      %1103 = vrot.lane.b32.xlu0 %v1098, 116
      %v1104 = vpop.permute.xlu0 %1103
      %v1105 = vsel %vm648, %v1102, %v1104
      %v1108 = vadd.f32 %v1091, %v1105
      %v1109 = vadd.f32 %v1092, %v1104
      %1110 = vset.pattern.permute.xlu0 31
      %1111 = vperm.xlu0 %1110, %v498
      %v1112 = vpop.permute.xlu0 %1111
      %v1114 = vmul.f32 %v1112, %v495
      %v1115 = vmul.f32 %v1112, %v496
      %1118 = vrot.lane.b32.xlu0 %v1114, 115
      %v1119 = vpop.permute.xlu0 %1118
      %1120 = vrot.lane.b32.xlu0 %v1115, 115
      %v1121 = vpop.permute.xlu0 %1120
      %v1122 = vsel %vm666, %v1119, %v1121
      %v1125 = vadd.f32 %v1108, %v1122
      %v1126 = vadd.f32 %v1109, %v1121
      %1127 = vset.pattern.permute.xlu0 32
      %1128 = vperm.xlu0 %1127, %v498
      %v1129 = vpop.permute.xlu0 %1128
      %v1131 = vmul.f32 %v1129, %v571
      %v1132 = vmul.f32 %v1129, %v572
      %1135 = vrot.lane.b32.xlu0 %v1131, 114
      %v1136 = vpop.permute.xlu0 %1135
      %1137 = vrot.lane.b32.xlu0 %v1132, 114
      %v1138 = vpop.permute.xlu0 %1137
      %v1139 = vsel %vm684, %v1136, %v1138
      %v1142 = vadd.f32 %v1125, %v1139
      %v1143 = vadd.f32 %v1126, %v1138
      %1144 = vset.pattern.permute.xlu0 33
      %1145 = vperm.xlu0 %1144, %v498
      %v1146 = vpop.permute.xlu0 %1145
      %v1148 = vmul.f32 %v1146, %v581
      %v1149 = vmul.f32 %v1146, %v582
      %1152 = vrot.lane.b32.xlu0 %v1148, 104
      %v1153 = vpop.permute.xlu0 %1152
      %1154 = vrot.lane.b32.xlu0 %v1149, 104
      %v1155 = vpop.permute.xlu0 %1154
      %v1156 = vsel %vm702, %v1153, %v1155
      %v1159 = vadd.f32 %v1142, %v1156
      %v1160 = vadd.f32 %v1143, %v1155
      %1161 = vset.pattern.permute.xlu0 34
      %1162 = vperm.xlu0 %1161, %v498
      %v1163 = vpop.permute.xlu0 %1162
      %v1165 = vmul.f32 %v1163, %v495
      %v1166 = vmul.f32 %v1163, %v496
      %1169 = vrot.lane.b32.xlu0 %v1165, 103
      %v1170 = vpop.permute.xlu0 %1169
      %1171 = vrot.lane.b32.xlu0 %v1166, 103
      %v1172 = vpop.permute.xlu0 %1171
      %v1173 = vsel %vm720, %v1170, %v1172
      %v1176 = vadd.f32 %v1159, %v1173
      %v1177 = vadd.f32 %v1160, %v1172
      %1178 = vset.pattern.permute.xlu0 35
      %1179 = vperm.xlu0 %1178, %v498
      %v1180 = vpop.permute.xlu0 %1179
      %v1182 = vmul.f32 %v1180, %v591
      %v1183 = vmul.f32 %v1180, %v592
      %1186 = vrot.lane.b32.xlu0 %v1182, 102
      %v1187 = vpop.permute.xlu0 %1186
      %1188 = vrot.lane.b32.xlu0 %v1183, 102
      %v1189 = vpop.permute.xlu0 %1188
      %v1190 = vsel %vm738, %v1187, %v1189
      %v1193 = vadd.f32 %v1176, %v1190
      %v1194 = vadd.f32 %v1177, %v1189
      %1195 = vset.pattern.permute.xlu0 3
      %1196 = vperm.xlu0 %1195, %v499
      %v1197 = vpop.permute.xlu0 %1196
      %v1199 = vadd.f32 %v1193, %v1197
      %v1200 = vadd.f32 %v1194, %v1197
      %v1201 = vmax.f32 %v1199, 0.0
      %v1202 = vmax.f32 %v1200, 0.0
      %1203 = vset.pattern.permute.xlu0 36
      %1204 = vperm.xlu0 %1203, %v498
      %v1205 = vpop.permute.xlu0 %1204
      %v1207 = vmul.f32 %v1205, %v519
      %v1208 = vmul.f32 %v1205, %v520
      %1209 = vset.pattern.permute.xlu0 37
      %1210 = vperm.xlu0 %1209, %v498
      %v1211 = vpop.permute.xlu0 %1210
      %v1213 = vmul.f32 %v1211, %v495
      %v1214 = vmul.f32 %v1211, %v496
      %1217 = vrot.lane.b32.xlu0 %v1213, 127
      %v1218 = vpop.permute.xlu0 %1217
      %1219 = vrot.lane.b32.xlu0 %v1214, 127
      %v1220 = vpop.permute.xlu0 %1219
      %v1221 = vsel %vm612, %v1218, %v1220
      %v1224 = vadd.f32 %v1207, %v1221
      %v1225 = vadd.f32 %v1208, %v1220
      %1226 = vset.pattern.permute.xlu0 38
      %1227 = vperm.xlu0 %1226, %v498
      %v1228 = vpop.permute.xlu0 %1227
      %v1230 = vmul.f32 %v1228, %v549
      %v1231 = vmul.f32 %v1228, %v550
      %1234 = vrot.lane.b32.xlu0 %v1230, 126
      %v1235 = vpop.permute.xlu0 %1234
      %1236 = vrot.lane.b32.xlu0 %v1231, 126
      %v1237 = vpop.permute.xlu0 %1236
      %v1238 = vsel %vm630, %v1235, %v1237
      %v1241 = vadd.f32 %v1224, %v1238
      %v1242 = vadd.f32 %v1225, %v1237
      %1243 = vset.pattern.permute.xlu0 39
      %1244 = vperm.xlu0 %1243, %v498
      %v1245 = vpop.permute.xlu0 %1244
      %v1247 = vmul.f32 %v1245, %v561
      %v1248 = vmul.f32 %v1245, %v562
      %1251 = vrot.lane.b32.xlu0 %v1247, 116
      %v1252 = vpop.permute.xlu0 %1251
      %1253 = vrot.lane.b32.xlu0 %v1248, 116
      %v1254 = vpop.permute.xlu0 %1253
      %v1255 = vsel %vm648, %v1252, %v1254
      %v1258 = vadd.f32 %v1241, %v1255
      %v1259 = vadd.f32 %v1242, %v1254
      %1260 = vset.pattern.permute.xlu0 40
      %1261 = vperm.xlu0 %1260, %v498
      %v1262 = vpop.permute.xlu0 %1261
      %v1264 = vmul.f32 %v1262, %v495
      %v1265 = vmul.f32 %v1262, %v496
      %1268 = vrot.lane.b32.xlu0 %v1264, 115
      %v1269 = vpop.permute.xlu0 %1268
      %1270 = vrot.lane.b32.xlu0 %v1265, 115
      %v1271 = vpop.permute.xlu0 %1270
      %v1272 = vsel %vm666, %v1269, %v1271
      %v1275 = vadd.f32 %v1258, %v1272
      %v1276 = vadd.f32 %v1259, %v1271
      %1277 = vset.pattern.permute.xlu0 41
      %1278 = vperm.xlu0 %1277, %v498
      %v1279 = vpop.permute.xlu0 %1278
      %v1281 = vmul.f32 %v1279, %v571
      %v1282 = vmul.f32 %v1279, %v572
      %1285 = vrot.lane.b32.xlu0 %v1281, 114
      %v1286 = vpop.permute.xlu0 %1285
      %1287 = vrot.lane.b32.xlu0 %v1282, 114
      %v1288 = vpop.permute.xlu0 %1287
      %v1289 = vsel %vm684, %v1286, %v1288
      %v1292 = vadd.f32 %v1275, %v1289
      %v1293 = vadd.f32 %v1276, %v1288
      %1294 = vset.pattern.permute.xlu0 42
      %1295 = vperm.xlu0 %1294, %v498
      %v1296 = vpop.permute.xlu0 %1295
      %v1298 = vmul.f32 %v1296, %v581
      %v1299 = vmul.f32 %v1296, %v582
      %1302 = vrot.lane.b32.xlu0 %v1298, 104
      %v1303 = vpop.permute.xlu0 %1302
      %1304 = vrot.lane.b32.xlu0 %v1299, 104
      %v1305 = vpop.permute.xlu0 %1304
      %v1306 = vsel %vm702, %v1303, %v1305
      %v1309 = vadd.f32 %v1292, %v1306
      %v1310 = vadd.f32 %v1293, %v1305
      %1311 = vset.pattern.permute.xlu0 43
      %1312 = vperm.xlu0 %1311, %v498
      %v1313 = vpop.permute.xlu0 %1312
      %v1315 = vmul.f32 %v1313, %v495
      %v1316 = vmul.f32 %v1313, %v496
      %1319 = vrot.lane.b32.xlu0 %v1315, 103
      %v1320 = vpop.permute.xlu0 %1319
      %1321 = vrot.lane.b32.xlu0 %v1316, 103
      %v1322 = vpop.permute.xlu0 %1321
      %v1323 = vsel %vm720, %v1320, %v1322
      %v1326 = vadd.f32 %v1309, %v1323
      %v1327 = vadd.f32 %v1310, %v1322
      %1328 = vset.pattern.permute.xlu0 44
      %1329 = vperm.xlu0 %1328, %v498
      %v1330 = vpop.permute.xlu0 %1329
      %v1332 = vmul.f32 %v1330, %v591
      %v1333 = vmul.f32 %v1330, %v592
      %1336 = vrot.lane.b32.xlu0 %v1332, 102
      %v1337 = vpop.permute.xlu0 %1336
      %1338 = vrot.lane.b32.xlu0 %v1333, 102
      %v1339 = vpop.permute.xlu0 %1338
      %v1340 = vsel %vm738, %v1337, %v1339
      %v1343 = vadd.f32 %v1326, %v1340
      %v1344 = vadd.f32 %v1327, %v1339
      %1345 = vset.pattern.permute.xlu0 4
      %1346 = vperm.xlu0 %1345, %v499
      %v1347 = vpop.permute.xlu0 %1346
      %v1349 = vadd.f32 %v1343, %v1347
      %v1350 = vadd.f32 %v1344, %v1347
      %v1351 = vmax.f32 %v1349, 0.0
      %v1352 = vmax.f32 %v1350, 0.0
      %1353 = vset.pattern.permute.xlu0 45
      %1354 = vperm.xlu0 %1353, %v498
      %v1355 = vpop.permute.xlu0 %1354
      %v1357 = vmul.f32 %v1355, %v519
      %v1358 = vmul.f32 %v1355, %v520
      %1359 = vset.pattern.permute.xlu0 46
      %1360 = vperm.xlu0 %1359, %v498
      %v1361 = vpop.permute.xlu0 %1360
      %v1363 = vmul.f32 %v1361, %v495
      %v1364 = vmul.f32 %v1361, %v496
      %1367 = vrot.lane.b32.xlu0 %v1363, 127
      %v1368 = vpop.permute.xlu0 %1367
      %1369 = vrot.lane.b32.xlu0 %v1364, 127
      %v1370 = vpop.permute.xlu0 %1369
      %v1371 = vsel %vm612, %v1368, %v1370
      %v1374 = vadd.f32 %v1357, %v1371
      %v1375 = vadd.f32 %v1358, %v1370
      %1376 = vset.pattern.permute.xlu0 47
      %1377 = vperm.xlu0 %1376, %v498
      %v1378 = vpop.permute.xlu0 %1377
      %v1380 = vmul.f32 %v1378, %v549
      %v1381 = vmul.f32 %v1378, %v550
      %1384 = vrot.lane.b32.xlu0 %v1380, 126
      %v1385 = vpop.permute.xlu0 %1384
      %1386 = vrot.lane.b32.xlu0 %v1381, 126
      %v1387 = vpop.permute.xlu0 %1386
      %v1388 = vsel %vm630, %v1385, %v1387
      %v1391 = vadd.f32 %v1374, %v1388
      %v1392 = vadd.f32 %v1375, %v1387
      %1393 = vset.pattern.permute.xlu0 48
      %1394 = vperm.xlu0 %1393, %v498
      %v1395 = vpop.permute.xlu0 %1394
      %v1397 = vmul.f32 %v1395, %v561
      %v1398 = vmul.f32 %v1395, %v562
      %1401 = vrot.lane.b32.xlu0 %v1397, 116
      %v1402 = vpop.permute.xlu0 %1401
      %1403 = vrot.lane.b32.xlu0 %v1398, 116
      %v1404 = vpop.permute.xlu0 %1403
      %v1405 = vsel %vm648, %v1402, %v1404
      %v1408 = vadd.f32 %v1391, %v1405
      %v1409 = vadd.f32 %v1392, %v1404
      %1410 = vset.pattern.permute.xlu0 49
      %1411 = vperm.xlu0 %1410, %v498
      %v1412 = vpop.permute.xlu0 %1411
      %v1414 = vmul.f32 %v1412, %v495
      %v1415 = vmul.f32 %v1412, %v496
      %1418 = vrot.lane.b32.xlu0 %v1414, 115
      %v1419 = vpop.permute.xlu0 %1418
      %1420 = vrot.lane.b32.xlu0 %v1415, 115
      %v1421 = vpop.permute.xlu0 %1420
      %v1422 = vsel %vm666, %v1419, %v1421
      %v1425 = vadd.f32 %v1408, %v1422
      %v1426 = vadd.f32 %v1409, %v1421
      %1427 = vset.pattern.permute.xlu0 50
      %1428 = vperm.xlu0 %1427, %v498
      %v1429 = vpop.permute.xlu0 %1428
      %v1431 = vmul.f32 %v1429, %v571
      %v1432 = vmul.f32 %v1429, %v572
      %1435 = vrot.lane.b32.xlu0 %v1431, 114
      %v1436 = vpop.permute.xlu0 %1435
      %1437 = vrot.lane.b32.xlu0 %v1432, 114
      %v1438 = vpop.permute.xlu0 %1437
      %v1439 = vsel %vm684, %v1436, %v1438
      %v1442 = vadd.f32 %v1425, %v1439
      %v1443 = vadd.f32 %v1426, %v1438
      %1444 = vset.pattern.permute.xlu0 51
      %1445 = vperm.xlu0 %1444, %v498
      %v1446 = vpop.permute.xlu0 %1445
      %v1448 = vmul.f32 %v1446, %v581
      %v1449 = vmul.f32 %v1446, %v582
      %1452 = vrot.lane.b32.xlu0 %v1448, 104
      %v1453 = vpop.permute.xlu0 %1452
      %1454 = vrot.lane.b32.xlu0 %v1449, 104
      %v1455 = vpop.permute.xlu0 %1454
      %v1456 = vsel %vm702, %v1453, %v1455
      %v1459 = vadd.f32 %v1442, %v1456
      %v1460 = vadd.f32 %v1443, %v1455
      %1461 = vset.pattern.permute.xlu0 52
      %1462 = vperm.xlu0 %1461, %v498
      %v1463 = vpop.permute.xlu0 %1462
      %v1465 = vmul.f32 %v1463, %v495
      %v1466 = vmul.f32 %v1463, %v496
      %1469 = vrot.lane.b32.xlu0 %v1465, 103
      %v1470 = vpop.permute.xlu0 %1469
      %1471 = vrot.lane.b32.xlu0 %v1466, 103
      %v1472 = vpop.permute.xlu0 %1471
      %v1473 = vsel %vm720, %v1470, %v1472
      %v1476 = vadd.f32 %v1459, %v1473
      %v1477 = vadd.f32 %v1460, %v1472
      %1478 = vset.pattern.permute.xlu0 53
      %1479 = vperm.xlu0 %1478, %v498
      %v1480 = vpop.permute.xlu0 %1479
      %v1482 = vmul.f32 %v1480, %v591
      %v1483 = vmul.f32 %v1480, %v592
      %1486 = vrot.lane.b32.xlu0 %v1482, 102
      %v1487 = vpop.permute.xlu0 %1486
      %1488 = vrot.lane.b32.xlu0 %v1483, 102
      %v1489 = vpop.permute.xlu0 %1488
      %v1490 = vsel %vm738, %v1487, %v1489
      %v1493 = vadd.f32 %v1476, %v1490
      %v1494 = vadd.f32 %v1477, %v1489
      %1495 = vset.pattern.permute.xlu0 5
      %1496 = vperm.xlu0 %1495, %v499
      %v1497 = vpop.permute.xlu0 %1496
      %v1499 = vadd.f32 %v1493, %v1497
      %v1500 = vadd.f32 %v1494, %v1497
      %v1501 = vmax.f32 %v1499, 0.0
      %v1502 = vmax.f32 %v1500, 0.0
      %1503 = vset.pattern.permute.xlu0 54
      %1504 = vperm.xlu0 %1503, %v498
      %v1505 = vpop.permute.xlu0 %1504
      %v1507 = vmul.f32 %v1505, %v519
      %v1508 = vmul.f32 %v1505, %v520
      %1509 = vset.pattern.permute.xlu0 55
      %1510 = vperm.xlu0 %1509, %v498
      %v1511 = vpop.permute.xlu0 %1510
      %v1513 = vmul.f32 %v1511, %v495
      %v1514 = vmul.f32 %v1511, %v496
      %1517 = vrot.lane.b32.xlu0 %v1513, 127
      %v1518 = vpop.permute.xlu0 %1517
      %1519 = vrot.lane.b32.xlu0 %v1514, 127
      %v1520 = vpop.permute.xlu0 %1519
      %v1521 = vsel %vm612, %v1518, %v1520
      %v1524 = vadd.f32 %v1507, %v1521
      %v1525 = vadd.f32 %v1508, %v1520
      %1526 = vset.pattern.permute.xlu0 56
      %1527 = vperm.xlu0 %1526, %v498
      %v1528 = vpop.permute.xlu0 %1527
      %v1530 = vmul.f32 %v1528, %v549
      %v1531 = vmul.f32 %v1528, %v550
      %1534 = vrot.lane.b32.xlu0 %v1530, 126
      %v1535 = vpop.permute.xlu0 %1534
      %1536 = vrot.lane.b32.xlu0 %v1531, 126
      %v1537 = vpop.permute.xlu0 %1536
      %v1538 = vsel %vm630, %v1535, %v1537
      %v1541 = vadd.f32 %v1524, %v1538
      %v1542 = vadd.f32 %v1525, %v1537
      %1543 = vset.pattern.permute.xlu0 57
      %1544 = vperm.xlu0 %1543, %v498
      %v1545 = vpop.permute.xlu0 %1544
      %v1547 = vmul.f32 %v1545, %v561
      %v1548 = vmul.f32 %v1545, %v562
      %1551 = vrot.lane.b32.xlu0 %v1547, 116
      %v1552 = vpop.permute.xlu0 %1551
      %1553 = vrot.lane.b32.xlu0 %v1548, 116
      %v1554 = vpop.permute.xlu0 %1553
      %v1555 = vsel %vm648, %v1552, %v1554
      %v1558 = vadd.f32 %v1541, %v1555
      %v1559 = vadd.f32 %v1542, %v1554
      %1560 = vset.pattern.permute.xlu0 58
      %1561 = vperm.xlu0 %1560, %v498
      %v1562 = vpop.permute.xlu0 %1561
      %v1564 = vmul.f32 %v1562, %v495
      %v1565 = vmul.f32 %v1562, %v496
      %1568 = vrot.lane.b32.xlu0 %v1564, 115
      %v1569 = vpop.permute.xlu0 %1568
      %1570 = vrot.lane.b32.xlu0 %v1565, 115
      %v1571 = vpop.permute.xlu0 %1570
      %v1572 = vsel %vm666, %v1569, %v1571
      %v1575 = vadd.f32 %v1558, %v1572
      %v1576 = vadd.f32 %v1559, %v1571
      %1577 = vset.pattern.permute.xlu0 59
      %1578 = vperm.xlu0 %1577, %v498
      %v1579 = vpop.permute.xlu0 %1578
      %v1581 = vmul.f32 %v1579, %v571
      %v1582 = vmul.f32 %v1579, %v572
      %1585 = vrot.lane.b32.xlu0 %v1581, 114
      %v1586 = vpop.permute.xlu0 %1585
      %1587 = vrot.lane.b32.xlu0 %v1582, 114
      %v1588 = vpop.permute.xlu0 %1587
      %v1589 = vsel %vm684, %v1586, %v1588
      %v1592 = vadd.f32 %v1575, %v1589
      %v1593 = vadd.f32 %v1576, %v1588
      %1594 = vset.pattern.permute.xlu0 60
      %1595 = vperm.xlu0 %1594, %v498
      %v1596 = vpop.permute.xlu0 %1595
      %v1598 = vmul.f32 %v1596, %v581
      %v1599 = vmul.f32 %v1596, %v582
      %1602 = vrot.lane.b32.xlu0 %v1598, 104
      %v1603 = vpop.permute.xlu0 %1602
      %1604 = vrot.lane.b32.xlu0 %v1599, 104
      %v1605 = vpop.permute.xlu0 %1604
      %v1606 = vsel %vm702, %v1603, %v1605
      %v1609 = vadd.f32 %v1592, %v1606
      %v1610 = vadd.f32 %v1593, %v1605
      %1611 = vset.pattern.permute.xlu0 61
      %1612 = vperm.xlu0 %1611, %v498
      %v1613 = vpop.permute.xlu0 %1612
      %v1615 = vmul.f32 %v1613, %v495
      %v1616 = vmul.f32 %v1613, %v496
      %1619 = vrot.lane.b32.xlu0 %v1615, 103
      %v1620 = vpop.permute.xlu0 %1619
      %1621 = vrot.lane.b32.xlu0 %v1616, 103
      %v1622 = vpop.permute.xlu0 %1621
      %v1623 = vsel %vm720, %v1620, %v1622
      %v1626 = vadd.f32 %v1609, %v1623
      %v1627 = vadd.f32 %v1610, %v1622
      %1628 = vset.pattern.permute.xlu0 62
      %1629 = vperm.xlu0 %1628, %v498
      %v1630 = vpop.permute.xlu0 %1629
      %v1632 = vmul.f32 %v1630, %v591
      %v1633 = vmul.f32 %v1630, %v592
      %1636 = vrot.lane.b32.xlu0 %v1632, 102
      %v1637 = vpop.permute.xlu0 %1636
      %1638 = vrot.lane.b32.xlu0 %v1633, 102
      %v1639 = vpop.permute.xlu0 %1638
      %v1640 = vsel %vm738, %v1637, %v1639
      %v1643 = vadd.f32 %v1626, %v1640
      %v1644 = vadd.f32 %v1627, %v1639
      %1645 = vset.pattern.permute.xlu0 6
      %1646 = vperm.xlu0 %1645, %v499
      %v1647 = vpop.permute.xlu0 %1646
      %v1649 = vadd.f32 %v1643, %v1647
      %v1650 = vadd.f32 %v1644, %v1647
      %v1651 = vmax.f32 %v1649, 0.0
      %v1652 = vmax.f32 %v1650, 0.0
      %1653 = vset.pattern.permute.xlu0 63
      %1654 = vperm.xlu0 %1653, %v498
      %v1655 = vpop.permute.xlu0 %1654
      %v1657 = vmul.f32 %v1655, %v519
      %v1658 = vmul.f32 %v1655, %v520
      %1659 = vset.pattern.permute.xlu0 64
      %1660 = vperm.xlu0 %1659, %v498
      %v1661 = vpop.permute.xlu0 %1660
      %v1663 = vmul.f32 %v1661, %v495
      %v1664 = vmul.f32 %v1661, %v496
      %1667 = vrot.lane.b32.xlu0 %v1663, 127
      %v1668 = vpop.permute.xlu0 %1667
      %1669 = vrot.lane.b32.xlu0 %v1664, 127
      %v1670 = vpop.permute.xlu0 %1669
      %v1671 = vsel %vm612, %v1668, %v1670
      %v1674 = vadd.f32 %v1657, %v1671
      %v1675 = vadd.f32 %v1658, %v1670
      %1676 = vset.pattern.permute.xlu0 65
      %1677 = vperm.xlu0 %1676, %v498
      %v1678 = vpop.permute.xlu0 %1677
      %v1680 = vmul.f32 %v1678, %v549
      %v1681 = vmul.f32 %v1678, %v550
      %1684 = vrot.lane.b32.xlu0 %v1680, 126
      %v1685 = vpop.permute.xlu0 %1684
      %1686 = vrot.lane.b32.xlu0 %v1681, 126
      %v1687 = vpop.permute.xlu0 %1686
      %v1688 = vsel %vm630, %v1685, %v1687
      %v1691 = vadd.f32 %v1674, %v1688
      %v1692 = vadd.f32 %v1675, %v1687
      %1693 = vset.pattern.permute.xlu0 66
      %1694 = vperm.xlu0 %1693, %v498
      %v1695 = vpop.permute.xlu0 %1694
      %v1697 = vmul.f32 %v1695, %v561
      %v1698 = vmul.f32 %v1695, %v562
      %1701 = vrot.lane.b32.xlu0 %v1697, 116
      %v1702 = vpop.permute.xlu0 %1701
      %1703 = vrot.lane.b32.xlu0 %v1698, 116
      %v1704 = vpop.permute.xlu0 %1703
      %v1705 = vsel %vm648, %v1702, %v1704
      %v1708 = vadd.f32 %v1691, %v1705
      %v1709 = vadd.f32 %v1692, %v1704
      %1710 = vset.pattern.permute.xlu0 67
      %1711 = vperm.xlu0 %1710, %v498
      %v1712 = vpop.permute.xlu0 %1711
      %v1714 = vmul.f32 %v1712, %v495
      %v1715 = vmul.f32 %v1712, %v496
      %1718 = vrot.lane.b32.xlu0 %v1714, 115
      %v1719 = vpop.permute.xlu0 %1718
      %1720 = vrot.lane.b32.xlu0 %v1715, 115
      %v1721 = vpop.permute.xlu0 %1720
      %v1722 = vsel %vm666, %v1719, %v1721
      %v1725 = vadd.f32 %v1708, %v1722
      %v1726 = vadd.f32 %v1709, %v1721
      %1727 = vset.pattern.permute.xlu0 68
      %1728 = vperm.xlu0 %1727, %v498
      %v1729 = vpop.permute.xlu0 %1728
      %v1731 = vmul.f32 %v1729, %v571
      %v1732 = vmul.f32 %v1729, %v572
      %1735 = vrot.lane.b32.xlu0 %v1731, 114
      %v1736 = vpop.permute.xlu0 %1735
      %1737 = vrot.lane.b32.xlu0 %v1732, 114
      %v1738 = vpop.permute.xlu0 %1737
      %v1739 = vsel %vm684, %v1736, %v1738
      %v1742 = vadd.f32 %v1725, %v1739
      %v1743 = vadd.f32 %v1726, %v1738
      %1744 = vset.pattern.permute.xlu0 69
      %1745 = vperm.xlu0 %1744, %v498
      %v1746 = vpop.permute.xlu0 %1745
      %v1748 = vmul.f32 %v1746, %v581
      %v1749 = vmul.f32 %v1746, %v582
      %1752 = vrot.lane.b32.xlu0 %v1748, 104
      %v1753 = vpop.permute.xlu0 %1752
      %1754 = vrot.lane.b32.xlu0 %v1749, 104
      %v1755 = vpop.permute.xlu0 %1754
      %v1756 = vsel %vm702, %v1753, %v1755
      %v1759 = vadd.f32 %v1742, %v1756
      %v1760 = vadd.f32 %v1743, %v1755
      %1761 = vset.pattern.permute.xlu0 70
      %1762 = vperm.xlu0 %1761, %v498
      %v1763 = vpop.permute.xlu0 %1762
      %v1765 = vmul.f32 %v1763, %v495
      %v1766 = vmul.f32 %v1763, %v496
      %1769 = vrot.lane.b32.xlu0 %v1765, 103
      %v1770 = vpop.permute.xlu0 %1769
      %1771 = vrot.lane.b32.xlu0 %v1766, 103
      %v1772 = vpop.permute.xlu0 %1771
      %v1773 = vsel %vm720, %v1770, %v1772
      %v1776 = vadd.f32 %v1759, %v1773
      %v1777 = vadd.f32 %v1760, %v1772
      %1778 = vset.pattern.permute.xlu0 71
      %1779 = vperm.xlu0 %1778, %v498
      %v1780 = vpop.permute.xlu0 %1779
      %v1782 = vmul.f32 %v1780, %v591
      %v1783 = vmul.f32 %v1780, %v592
      %1786 = vrot.lane.b32.xlu0 %v1782, 102
      %v1787 = vpop.permute.xlu0 %1786
      %1788 = vrot.lane.b32.xlu0 %v1783, 102
      %v1789 = vpop.permute.xlu0 %1788
      %v1790 = vsel %vm738, %v1787, %v1789
      %v1793 = vadd.f32 %v1776, %v1790
      %v1794 = vadd.f32 %v1777, %v1789
      %1795 = vset.pattern.permute.xlu0 7
      %1796 = vperm.xlu0 %1795, %v499
      %v1797 = vpop.permute.xlu0 %1796
      %v1799 = vadd.f32 %v1793, %v1797
      %v1800 = vadd.f32 %v1794, %v1797
      %v1801 = vmax.f32 %v1799, 0.0
      %v1802 = vmax.f32 %v1800, 0.0
      %1803 = vset.pattern.permute.xlu0 72
      %1804 = vperm.xlu0 %1803, %v498
      %v1805 = vpop.permute.xlu0 %1804
      %v1807 = vmul.f32 %v1805, %v519
      %v1808 = vmul.f32 %v1805, %v520
      %1809 = vset.pattern.permute.xlu0 73
      %1810 = vperm.xlu0 %1809, %v498
      %v1811 = vpop.permute.xlu0 %1810
      %v1813 = vmul.f32 %v1811, %v495
      %v1814 = vmul.f32 %v1811, %v496
      %1817 = vrot.lane.b32.xlu0 %v1813, 127
      %v1818 = vpop.permute.xlu0 %1817
      %1819 = vrot.lane.b32.xlu0 %v1814, 127
      %v1820 = vpop.permute.xlu0 %1819
      %v1821 = vsel %vm612, %v1818, %v1820
      %v1824 = vadd.f32 %v1807, %v1821
      %v1825 = vadd.f32 %v1808, %v1820
      %1826 = vset.pattern.permute.xlu0 74
      %1827 = vperm.xlu0 %1826, %v498
      %v1828 = vpop.permute.xlu0 %1827
      %v1830 = vmul.f32 %v1828, %v549
      %v1831 = vmul.f32 %v1828, %v550
      %1834 = vrot.lane.b32.xlu0 %v1830, 126
      %v1835 = vpop.permute.xlu0 %1834
      %1836 = vrot.lane.b32.xlu0 %v1831, 126
      %v1837 = vpop.permute.xlu0 %1836
      %v1838 = vsel %vm630, %v1835, %v1837
      %v1841 = vadd.f32 %v1824, %v1838
      %v1842 = vadd.f32 %v1825, %v1837
      %1843 = vset.pattern.permute.xlu0 75
      %1844 = vperm.xlu0 %1843, %v498
      %v1845 = vpop.permute.xlu0 %1844
      %v1847 = vmul.f32 %v1845, %v561
      %v1848 = vmul.f32 %v1845, %v562
      %1851 = vrot.lane.b32.xlu0 %v1847, 116
      %v1852 = vpop.permute.xlu0 %1851
      %1853 = vrot.lane.b32.xlu0 %v1848, 116
      %v1854 = vpop.permute.xlu0 %1853
      %v1855 = vsel %vm648, %v1852, %v1854
      %v1858 = vadd.f32 %v1841, %v1855
      %v1859 = vadd.f32 %v1842, %v1854
      %1860 = vset.pattern.permute.xlu0 76
      %1861 = vperm.xlu0 %1860, %v498
      %v1862 = vpop.permute.xlu0 %1861
      %v1864 = vmul.f32 %v1862, %v495
      %v1865 = vmul.f32 %v1862, %v496
      %1868 = vrot.lane.b32.xlu0 %v1864, 115
      %v1869 = vpop.permute.xlu0 %1868
      %1870 = vrot.lane.b32.xlu0 %v1865, 115
      %v1871 = vpop.permute.xlu0 %1870
      %v1872 = vsel %vm666, %v1869, %v1871
      %v1875 = vadd.f32 %v1858, %v1872
      %v1876 = vadd.f32 %v1859, %v1871
      %1877 = vset.pattern.permute.xlu0 77
      %1878 = vperm.xlu0 %1877, %v498
      %v1879 = vpop.permute.xlu0 %1878
      %v1881 = vmul.f32 %v1879, %v571
      %v1882 = vmul.f32 %v1879, %v572
      %1885 = vrot.lane.b32.xlu0 %v1881, 114
      %v1886 = vpop.permute.xlu0 %1885
      %1887 = vrot.lane.b32.xlu0 %v1882, 114
      %v1888 = vpop.permute.xlu0 %1887
      %v1889 = vsel %vm684, %v1886, %v1888
      %v1892 = vadd.f32 %v1875, %v1889
      %v1893 = vadd.f32 %v1876, %v1888
      %1894 = vset.pattern.permute.xlu0 78
      %1895 = vperm.xlu0 %1894, %v498
      %v1896 = vpop.permute.xlu0 %1895
      %v1898 = vmul.f32 %v1896, %v581
      %v1899 = vmul.f32 %v1896, %v582
      %1902 = vrot.lane.b32.xlu0 %v1898, 104
      %v1903 = vpop.permute.xlu0 %1902
      %1904 = vrot.lane.b32.xlu0 %v1899, 104
      %v1905 = vpop.permute.xlu0 %1904
      %v1906 = vsel %vm702, %v1903, %v1905
      %v1909 = vadd.f32 %v1892, %v1906
      %v1910 = vadd.f32 %v1893, %v1905
      %1911 = vset.pattern.permute.xlu0 79
      %1912 = vperm.xlu0 %1911, %v498
      %v1913 = vpop.permute.xlu0 %1912
      %v1915 = vmul.f32 %v1913, %v495
      %v1916 = vmul.f32 %v1913, %v496
      %1919 = vrot.lane.b32.xlu0 %v1915, 103
      %v1920 = vpop.permute.xlu0 %1919
      %1921 = vrot.lane.b32.xlu0 %v1916, 103
      %v1922 = vpop.permute.xlu0 %1921
      %v1923 = vsel %vm720, %v1920, %v1922
      %v1926 = vadd.f32 %v1909, %v1923
      %v1927 = vadd.f32 %v1910, %v1922
      %1928 = vset.pattern.permute.xlu0 80
      %1929 = vperm.xlu0 %1928, %v498
      %v1930 = vpop.permute.xlu0 %1929
      %v1932 = vmul.f32 %v1930, %v591
      %v1933 = vmul.f32 %v1930, %v592
      %1936 = vrot.lane.b32.xlu0 %v1932, 102
      %v1937 = vpop.permute.xlu0 %1936
      %1938 = vrot.lane.b32.xlu0 %v1933, 102
      %v1939 = vpop.permute.xlu0 %1938
      %v1940 = vsel %vm738, %v1937, %v1939
      %v1943 = vadd.f32 %v1926, %v1940
      %v1944 = vadd.f32 %v1927, %v1939
      %1945 = vset.pattern.permute.xlu0 8
      %1946 = vperm.xlu0 %1945, %v499
      %v1947 = vpop.permute.xlu0 %1946
      %v1949 = vadd.f32 %v1943, %v1947
      %v1950 = vadd.f32 %v1944, %v1947
      %v1951 = vmax.f32 %v1949, 0.0
      %v1952 = vmax.f32 %v1950, 0.0
      %v1953 = vld [vmem:[%s12] sm:$0xff]
      %v1954 = vld [vmem:[%s12 + $0x8] sm:$0xff]
      %v1955 = vld [vmem:[%s12 + $0x10] sm:$0xff]
      %v1956 = vld [vmem:[%s12 + $0x18] sm:$0xff]
      %v1957 = vld [vmem:[%s12 + $0x20] sm:$0xff]
      %v1958 = vld [vmem:[%s12 + $0x28] sm:$0xff]
      %v1959 = vld [vmem:[%s12 + $0x30] sm:$0xff]
      %v1960 = vld [vmem:[%s12 + $0x38] sm:$0xff]
      %v1961 = vld [vmem:[%s12 + $0x40] sm:$0xff]
      %v1962 = vld [vmem:[%s12 + $0x48] sm:$0xff]
      %v1963 = vld [vmem:[%s12 + $0x50] sm:$0xff]
      %v1964 = vld [vmem:[%s12 + $0x58] sm:$0xff]
      %v1965 = vld [vmem:[%s12 + $0x60] sm:$0xff]
      %v1966 = vld [vmem:[%s12 + $0x68] sm:$0xff]
      %v1967 = vld [vmem:[%s12 + $0x70] sm:$0xff]
      %v1968 = vld [vmem:[%s12 + $0x78] sm:$0xff]
      %v1969 = vld [vmem:[%s12 + $0x80] sm:$0xff]
      %v1970 = vld [vmem:[%s12 + $0x88] sm:$0xff]
      %vm1971 = vcmask 130048
      %v1973 = vsel %vm1971, %v752, 0
      %v1976 = vsel %vm1971, %v902, 0
      %v1979 = vsel %vm1971, %v1052, 0
      %v1982 = vsel %vm1971, %v1202, 0
      %v1985 = vsel %vm1971, %v1352, 0
      %v1988 = vsel %vm1971, %v1502, 0
      %v1991 = vsel %vm1971, %v1652, 0
      %v1994 = vsel %vm1971, %v1802, 0
      %v1997 = vsel %vm1971, %v1952, 0
      %1999 = vmatprep.subr.mxu0 0.0
      %2000 = vmatpush1.msra.mxu0 %v1953
      %2001 = vmatprep.subr.mxu0 0.0
      %2002 = vmatpush1.msra.mxu0 %v1954
      %2003 = vmatprep.subr.mxu0 0.0
      %2004 = vmatpush1.msra.mxu0 %v1955
      %2005 = vmatprep.subr.mxu0 0.0
      %2006 = vmatpush1.msra.mxu0 %v1956
      %2007 = vmatprep.subr.mxu0 0.0
      %2008 = vmatpush1.msra.mxu0 %v1957
      %2009 = vmatprep.subr.mxu0 0.0
      %2010 = vmatpush1.msra.mxu0 %v1958
      %2011 = vmatprep.subr.mxu0 0.0
      %2012 = vmatpush1.msra.mxu0 %v1959
      %2013 = vmatprep.subr.mxu0 0.0
      %2014 = vmatpush1.msra.mxu0 %v1960
      %2015 = vmatprep.subr.mxu0 0.0
      %2016 = vmatpush1.msra.mxu0 %v1961
      %2017 = vmatprep.subr.mxu0 0.0
      %2018 = vmatpush1.msra.mxu0 %v1962
      %2019 = vmatprep.subr.mxu0 0.0
      %2020 = vmatpush1.msra.mxu0 %v1963
      %2021 = vmatprep.subr.mxu0 0.0
      %2022 = vmatpush1.msra.mxu0 %v1964
      %2023 = vmatprep.subr.mxu0 0.0
      %2024 = vmatpush1.msra.mxu0 %v1965
      %2025 = vmatprep.subr.mxu0 0.0
      %2026 = vmatpush1.msra.mxu0 %v1966
      %2027 = vmatprep.subr.mxu0 0.0
      %2028 = vmatpush1.msra.mxu0 %v1967
      %2029 = vmatprep.subr.mxu0 0.0
      %2030 = vmatpush1.msra.mxu0 %v1968
      %2031 = vmatprep.subr.mxu0 0.0
      %2032 = vmatpush1.msra.mxu0 %v1969
      %2033 = vmatprep.subr.mxu0 0.0
      %2034 = vmatpush1.msra.mxu0 %v1970
      %2035 = vmatprep.subr.mxu0 0.0
      %2036 = vmatpush1.msra.mxu0 0.0
      %2037 = vmatprep.subr.mxu0 0.0
      %2038 = vmatpush1.msra.mxu0 0.0
      %2039 = vmatprep.subr.mxu0 0.0
      %2040 = vmatpush1.msra.mxu0 0.0
      %2041 = vmatprep.subr.mxu0 0.0
      %2042 = vmatpush1.msra.mxu0 0.0
      %2043 = vmatprep.subr.mxu0 0.0
      %2044 = vmatpush1.msra.mxu0 0.0
      %2045 = vmatprep.subr.mxu0 0.0
      %2046 = vmatpush1.msra.mxu0 0.0
      %2047 = vmatprep.subr.mxu0 0.0
      %2048 = vmatpush1.msra.mxu0 0.0
      %2049 = vmatprep.subr.mxu0 0.0
      %2050 = vmatpush1.msra.mxu0 0.0
      %2051 = vmatprep.subr.mxu0 0.0
      %2052 = vmatpush1.msra.mxu0 0.0
      %2053 = vmatprep.subr.mxu0 0.0
      %2054 = vmatpush1.msra.mxu0 0.0
      %2055 = vmatprep.subr.mxu0 0.0
      %2056 = vmatpush1.msra.mxu0 0.0
      %2057 = vmatprep.subr.mxu0 0.0
      %2058 = vmatpush1.msra.mxu0 0.0
      %2059 = vmatprep.subr.mxu0 0.0
      %2060 = vmatpush1.msra.mxu0 0.0
      %2061 = vmatprep.subr.mxu0 0.0
      %2062 = vmatpush1.msra.mxu0 0.0
      %2063 = vmatprep.mubr.f32.mxu0 %v1973
      %2064 = vmatmul.mubr.f32.gmra.mrb[0].mxu0 %v751
      %v2065 = vpop.f32.mrb[0].mxu0
      %v2066 = vadd.f32 0.0, %v2065
      %v2067 = vpop.f32.mrb[0].mxu0
      %2068 = vmatprep.mubr.f32.mxu0 %v1976
      %2069 = vmatmul.mubr.f32.gmra.mrb[0].mxu0 %v901
      %v2070 = vpop.f32.mrb[0].mxu0
      %v2071 = vadd.f32 0.0, %v2070
      %v2072 = vpop.f32.mrb[0].mxu0
      %2073 = vmatprep.mubr.f32.mxu0 %v1979
      %2074 = vmatmul.mubr.f32.gmra.mrb[0].mxu0 %v1051
      %v2075 = vpop.f32.mrb[0].mxu0
      %v2076 = vadd.f32 0.0, %v2075
      %v2077 = vpop.f32.mrb[0].mxu0
      %2078 = vmatprep.mubr.f32.mxu0 %v1982
      %2079 = vmatmul.mubr.f32.gmra.mrb[0].mxu0 %v1201
      %v2080 = vpop.f32.mrb[0].mxu0
      %v2081 = vadd.f32 0.0, %v2080
      %v2082 = vpop.f32.mrb[0].mxu0
      %2083 = vmatprep.mubr.f32.mxu0 %v1985
      %2084 = vmatmul.mubr.f32.gmra.mrb[0].mxu0 %v1351
      %v2085 = vpop.f32.mrb[0].mxu0
      %v2086 = vadd.f32 0.0, %v2085
      %v2087 = vpop.f32.mrb[0].mxu0
      %2088 = vmatprep.mubr.f32.mxu0 %v1988
      %2089 = vmatmul.mubr.f32.gmra.mrb[0].mxu0 %v1501
      %v2090 = vpop.f32.mrb[0].mxu0
      %v2091 = vadd.f32 0.0, %v2090
      %v2092 = vpop.f32.mrb[0].mxu0
      %2093 = vmatprep.mubr.f32.mxu0 %v1991
      %2094 = vmatmul.mubr.f32.gmra.mrb[0].mxu0 %v1651
      %v2095 = vpop.f32.mrb[0].mxu0
      %v2096 = vadd.f32 0.0, %v2095
      %v2097 = vpop.f32.mrb[0].mxu0
      %2098 = vmatprep.mubr.f32.mxu0 %v1994
      %2099 = vmatmul.mubr.f32.gmra.mrb[0].mxu0 %v1801
      %v2100 = vpop.f32.mrb[0].mxu0
      %v2101 = vadd.f32 0.0, %v2100
      %v2102 = vpop.f32.mrb[0].mxu0
      %2103 = vmatprep.mubr.f32.mxu0 %v1997
      %2104 = vmatmul.mubr.f32.gmra.mrb[0].mxu0 %v1951
      %v2105 = vpop.f32.mrb[0].mxu0
      %v2106 = vadd.f32 0.0, %v2105
      %v2107 = vpop.f32.mrb[0].mxu0
      %2108 = vdwg.mxu0
      %v2109 = vadd.f32 %v2066, %v2071
      %v2110 = vadd.f32 %v2109, %v2076
      %v2111 = vadd.f32 %v2081, %v2086
      %v2112 = vadd.f32 %v2111, %v2091
      %v2113 = vadd.f32 %v2096, %v2101
      %v2114 = vadd.f32 %v2113, %v2106
      %v2115 = vadd.f32 %v2066, %v2081
      %v2116 = vadd.f32 %v2115, %v2096
      %v2117 = vadd.f32 %v2071, %v2086
      %v2118 = vadd.f32 %v2117, %v2101
      %v2119 = vadd.f32 %v2076, %v2091
      %v2120 = vadd.f32 %v2119, %v2106
      %2122 = vrot.lane.b32.xlu0 %v2112, 12
      %v2123 = vpop.permute.xlu0 %2122
      %2126 = vrot.lane.b32.xlu0 %v2114, 24
      %v2127 = vpop.permute.xlu0 %2126
      %2130 = vrot.lane.b32.xlu0 %v2116, 24
      %v2131 = vpop.permute.xlu0 %2130
      %2134 = vrot.lane.b32.xlu0 %v2118, 36
      %v2135 = vpop.permute.xlu0 %2134
      %2138 = vrot.lane.b32.xlu0 %v2120, 48
      %v2139 = vpop.permute.xlu0 %2138
      %v2141 = vsel %vm557, %v2110, %v2123
      %v2142 = vsel %vm577, %v2141, %v2127
      %vm2143 = vcmask 293888
      %v2144 = vsel %vm2143, %v2142, %v2131
      %vm2145 = vcmask 392192
      %v2146 = vsel %vm2145, %v2144, %v2135
      %vm2147 = vcmask 490496
      %v2148 = vsel %vm2147, %v2146, %v2139
      %v2149 = vld [vmem:[%s4] sm:$0xff]
      %v2150 = vld [vmem:[%s5] sm:$0xff]
      %2152 = vset.pattern.permute.xlu0 0
      %2153 = vperm.xlu0 %2152, %v2150
      %v2154 = vpop.permute.xlu0 %2153
      %vm2156 = vcmask 64512
      %v2158 = vsel %vm2156, %v2149, 0
      %2160 = vmatprep.subr.mxu0 0.0
      %2161 = vmatpush1.msra.mxu0 %v2148
      %2162 = vmatprep.subr.mxu0 0.0
      %2163 = vmatpush1.msra.mxu0 0.0
      %2164 = vmatprep.subr.mxu0 0.0
      %2165 = vmatpush1.msra.mxu0 0.0
      %2166 = vmatprep.subr.mxu0 0.0
      %2167 = vmatpush1.msra.mxu0 0.0
      %2168 = vmatprep.subr.mxu0 0.0
      %2169 = vmatpush1.msra.mxu0 0.0
      %2170 = vmatprep.subr.mxu0 0.0
      %2171 = vmatpush1.msra.mxu0 0.0
      %2172 = vmatprep.subr.mxu0 0.0
      %2173 = vmatpush1.msra.mxu0 0.0
      %2174 = vmatprep.subr.mxu0 0.0
      %2175 = vmatpush1.msra.mxu0 0.0
      %2176 = vmatprep.subr.mxu0 0.0
      %2177 = vmatpush1.msra.mxu0 0.0
      %2178 = vmatprep.subr.mxu0 0.0
      %2179 = vmatpush1.msra.mxu0 0.0
      %2180 = vmatprep.subr.mxu0 0.0
      %2181 = vmatpush1.msra.mxu0 0.0
      %2182 = vmatprep.subr.mxu0 0.0
      %2183 = vmatpush1.msra.mxu0 0.0
      %2184 = vmatprep.subr.mxu0 0.0
      %2185 = vmatpush1.msra.mxu0 0.0
      %2186 = vmatprep.subr.mxu0 0.0
      %2187 = vmatpush1.msra.mxu0 0.0
      %2188 = vmatprep.subr.mxu0 0.0
      %2189 = vmatpush1.msra.mxu0 0.0
      %2190 = vmatprep.subr.mxu0 0.0
      %2191 = vmatpush1.msra.mxu0 0.0
      %2192 = vmatprep.subr.mxu0 0.0
      %2193 = vmatpush1.msra.mxu0 0.0
      %2194 = vmatprep.subr.mxu0 0.0
      %2195 = vmatpush1.msra.mxu0 0.0
      %2196 = vmatprep.subr.mxu0 0.0
      %2197 = vmatpush1.msra.mxu0 0.0
      %2198 = vmatprep.subr.mxu0 0.0
      %2199 = vmatpush1.msra.mxu0 0.0
      %2200 = vmatprep.subr.mxu0 0.0
      %2201 = vmatpush1.msra.mxu0 0.0
      %2202 = vmatprep.subr.mxu0 0.0
      %2203 = vmatpush1.msra.mxu0 0.0
      %2204 = vmatprep.subr.mxu0 0.0
      %2205 = vmatpush1.msra.mxu0 0.0
      %2206 = vmatprep.subr.mxu0 0.0
      %2207 = vmatpush1.msra.mxu0 0.0
      %2208 = vmatprep.subr.mxu0 0.0
      %2209 = vmatpush1.msra.mxu0 0.0
      %2210 = vmatprep.subr.mxu0 0.0
      %2211 = vmatpush1.msra.mxu0 0.0
      %2212 = vmatprep.subr.mxu0 0.0
      %2213 = vmatpush1.msra.mxu0 0.0
      %2214 = vmatprep.subr.mxu0 0.0
      %2215 = vmatpush1.msra.mxu0 0.0
      %2216 = vmatprep.subr.mxu0 0.0
      %2217 = vmatpush1.msra.mxu0 0.0
      %2218 = vmatprep.subr.mxu0 0.0
      %2219 = vmatpush1.msra.mxu0 0.0
      %2220 = vmatprep.subr.mxu0 0.0
      %2221 = vmatpush1.msra.mxu0 0.0
      %2222 = vmatprep.subr.mxu0 0.0
      %2223 = vmatpush1.msra.mxu0 0.0
      %2224 = vmatprep.mubr.f32.mxu0 0.0
      %2225 = vmatmul.mubr.f32.gmra.mrb[0].mxu0 %v2158
      %v2226 = vpop.f32.mrb[0].mxu0
      %v2227 = vadd.f32 %v2154, %v2226
      %v2228 = vpop.f32.mrb[0].mxu0
      %2229 = vdwg.mxu0
      %v2230 = vadd.f32 %v2227, 3.0
      %v2231 = vmax.f32 %v2230, 0.0
      %v2232 = vmin.f32 %v2231, 6.0
      %v2233 = vmul.f32 %v2232, 0.16666667
      %v2234 = vmul.f32 %v2227, %v2233
      %v2235 = vld [vmem:[%s6] sm:$0xff]
      %v2236 = vld [vmem:[%s7] sm:$0xff]
      %2238 = vset.pattern.permute.xlu0 0
      %2239 = vperm.xlu0 %2238, %v2236
      %v2240 = vpop.permute.xlu0 %2239
      %v2243 = vsel %vm2156, %v2235, 0
      %2245 = vmatprep.subr.mxu0 0.0
      %2246 = vmatpush1.msra.mxu0 %v2234
      %2247 = vmatprep.subr.mxu0 0.0
      %2248 = vmatpush1.msra.mxu0 0.0
      %2249 = vmatprep.subr.mxu0 0.0
      %2250 = vmatpush1.msra.mxu0 0.0
      %2251 = vmatprep.subr.mxu0 0.0
      %2252 = vmatpush1.msra.mxu0 0.0
      %2253 = vmatprep.subr.mxu0 0.0
      %2254 = vmatpush1.msra.mxu0 0.0
      %2255 = vmatprep.subr.mxu0 0.0
      %2256 = vmatpush1.msra.mxu0 0.0
      %2257 = vmatprep.subr.mxu0 0.0
      %2258 = vmatpush1.msra.mxu0 0.0
      %2259 = vmatprep.subr.mxu0 0.0
      %2260 = vmatpush1.msra.mxu0 0.0
      %2261 = vmatprep.subr.mxu0 0.0
      %2262 = vmatpush1.msra.mxu0 0.0
      %2263 = vmatprep.subr.mxu0 0.0
      %2264 = vmatpush1.msra.mxu0 0.0
      %2265 = vmatprep.subr.mxu0 0.0
      %2266 = vmatpush1.msra.mxu0 0.0
      %2267 = vmatprep.subr.mxu0 0.0
      %2268 = vmatpush1.msra.mxu0 0.0
      %2269 = vmatprep.subr.mxu0 0.0
      %2270 = vmatpush1.msra.mxu0 0.0
      %2271 = vmatprep.subr.mxu0 0.0
      %2272 = vmatpush1.msra.mxu0 0.0
      %2273 = vmatprep.subr.mxu0 0.0
      %2274 = vmatpush1.msra.mxu0 0.0
      %2275 = vmatprep.subr.mxu0 0.0
      %2276 = vmatpush1.msra.mxu0 0.0
      %2277 = vmatprep.subr.mxu0 0.0
      %2278 = vmatpush1.msra.mxu0 0.0
      %2279 = vmatprep.subr.mxu0 0.0
      %2280 = vmatpush1.msra.mxu0 0.0
      %2281 = vmatprep.subr.mxu0 0.0
      %2282 = vmatpush1.msra.mxu0 0.0
      %2283 = vmatprep.subr.mxu0 0.0
      %2284 = vmatpush1.msra.mxu0 0.0
      %2285 = vmatprep.subr.mxu0 0.0
      %2286 = vmatpush1.msra.mxu0 0.0
      %2287 = vmatprep.subr.mxu0 0.0
      %2288 = vmatpush1.msra.mxu0 0.0
      %2289 = vmatprep.subr.mxu0 0.0
      %2290 = vmatpush1.msra.mxu0 0.0
      %2291 = vmatprep.subr.mxu0 0.0
      %2292 = vmatpush1.msra.mxu0 0.0
      %2293 = vmatprep.subr.mxu0 0.0
      %2294 = vmatpush1.msra.mxu0 0.0
      %2295 = vmatprep.subr.mxu0 0.0
      %2296 = vmatpush1.msra.mxu0 0.0
      %2297 = vmatprep.subr.mxu0 0.0
      %2298 = vmatpush1.msra.mxu0 0.0
      %2299 = vmatprep.subr.mxu0 0.0
      %2300 = vmatpush1.msra.mxu0 0.0
      %2301 = vmatprep.subr.mxu0 0.0
      %2302 = vmatpush1.msra.mxu0 0.0
      %2303 = vmatprep.subr.mxu0 0.0
      %2304 = vmatpush1.msra.mxu0 0.0
      %2305 = vmatprep.subr.mxu0 0.0
      %2306 = vmatpush1.msra.mxu0 0.0
      %2307 = vmatprep.subr.mxu0 0.0
      %2308 = vmatpush1.msra.mxu0 0.0
      %2309 = vmatprep.mubr.f32.mxu0 0.0
      %2310 = vmatmul.mubr.f32.gmra.mrb[0].mxu0 %v2243
      %v2311 = vpop.f32.mrb[0].mxu0
      %v2312 = vadd.f32 %v2240, %v2311
      %v2313 = vpop.f32.mrb[0].mxu0
      %2314 = vdwg.mxu0
      %v2315 = vld [vmem:[%s8] sm:$0xff]
      %v2316 = vld [vmem:[%s9] sm:$0xff]
      %2318 = vset.pattern.permute.xlu0 0
      %2319 = vperm.xlu0 %2318, %v2316
      %v2320 = vpop.permute.xlu0 %2319
      %2323 = vrot.lane.b32.xlu0 %v2234, 92
      %v2324 = vpop.permute.xlu0 %2323
      %v2327 = vsel %vm2156, %v2315, 0
      %2329 = vmatprep.subr.mxu0 0.0
      %2330 = vmatpush1.msra.mxu0 %v2324
      %2331 = vmatprep.subr.mxu0 0.0
      %2332 = vmatpush1.msra.mxu0 0.0
      %2333 = vmatprep.subr.mxu0 0.0
      %2334 = vmatpush1.msra.mxu0 0.0
      %2335 = vmatprep.subr.mxu0 0.0
      %2336 = vmatpush1.msra.mxu0 0.0
      %2337 = vmatprep.subr.mxu0 0.0
      %2338 = vmatpush1.msra.mxu0 0.0
      %2339 = vmatprep.subr.mxu0 0.0
      %2340 = vmatpush1.msra.mxu0 0.0
      %2341 = vmatprep.subr.mxu0 0.0
      %2342 = vmatpush1.msra.mxu0 0.0
      %2343 = vmatprep.subr.mxu0 0.0
      %2344 = vmatpush1.msra.mxu0 0.0
      %2345 = vmatprep.subr.mxu0 0.0
      %2346 = vmatpush1.msra.mxu0 0.0
      %2347 = vmatprep.subr.mxu0 0.0
      %2348 = vmatpush1.msra.mxu0 0.0
      %2349 = vmatprep.subr.mxu0 0.0
      %2350 = vmatpush1.msra.mxu0 0.0
      %2351 = vmatprep.subr.mxu0 0.0
      %2352 = vmatpush1.msra.mxu0 0.0
      %2353 = vmatprep.subr.mxu0 0.0
      %2354 = vmatpush1.msra.mxu0 0.0
      %2355 = vmatprep.subr.mxu0 0.0
      %2356 = vmatpush1.msra.mxu0 0.0
      %2357 = vmatprep.subr.mxu0 0.0
      %2358 = vmatpush1.msra.mxu0 0.0
      %2359 = vmatprep.subr.mxu0 0.0
      %2360 = vmatpush1.msra.mxu0 0.0
      %2361 = vmatprep.subr.mxu0 0.0
      %2362 = vmatpush1.msra.mxu0 0.0
      %2363 = vmatprep.subr.mxu0 0.0
      %2364 = vmatpush1.msra.mxu0 0.0
      %2365 = vmatprep.subr.mxu0 0.0
      %2366 = vmatpush1.msra.mxu0 0.0
      %2367 = vmatprep.subr.mxu0 0.0
      %2368 = vmatpush1.msra.mxu0 0.0
      %2369 = vmatprep.subr.mxu0 0.0
      %2370 = vmatpush1.msra.mxu0 0.0
      %2371 = vmatprep.subr.mxu0 0.0
      %2372 = vmatpush1.msra.mxu0 0.0
      %2373 = vmatprep.subr.mxu0 0.0
      %2374 = vmatpush1.msra.mxu0 0.0
      %2375 = vmatprep.subr.mxu0 0.0
      %2376 = vmatpush1.msra.mxu0 0.0
      %2377 = vmatprep.subr.mxu0 0.0
      %2378 = vmatpush1.msra.mxu0 0.0
      %2379 = vmatprep.subr.mxu0 0.0
      %2380 = vmatpush1.msra.mxu0 0.0
      %2381 = vmatprep.subr.mxu0 0.0
      %2382 = vmatpush1.msra.mxu0 0.0
      %2383 = vmatprep.subr.mxu0 0.0
      %2384 = vmatpush1.msra.mxu0 0.0
      %2385 = vmatprep.subr.mxu0 0.0
      %2386 = vmatpush1.msra.mxu0 0.0
      %2387 = vmatprep.subr.mxu0 0.0
      %2388 = vmatpush1.msra.mxu0 0.0
      %2389 = vmatprep.subr.mxu0 0.0
      %2390 = vmatpush1.msra.mxu0 0.0
      %2391 = vmatprep.subr.mxu0 0.0
      %2392 = vmatpush1.msra.mxu0 0.0
      %2393 = vmatprep.mubr.f32.mxu0 0.0
      %2394 = vmatmul.mubr.f32.gmra.mrb[0].mxu0 %v2327
      %v2395 = vpop.f32.mrb[0].mxu0
      %v2396 = vadd.f32 %v2320, %v2395
      %v2397 = vpop.f32.mrb[0].mxu0
      %2398 = vdwg.mxu0
      %v2399 = vsub.f32 0.0, %v2312
      %v2400 = vmul.f32 %v2399, 1.442695
      %v2401 = vpow.pop %v2400
      %v2402 = vadd.f32 %v2401, 1.0
      %v2403 = vrcp.pop %v2402
      %v2404 = vsub.f32 0.0, %v2396
      %v2405 = vmul.f32 %v2404, 1.442695
      %v2406 = vpow.pop %v2405
      %v2407 = vadd.f32 %v2406, 1.0
      %v2408 = vrcp.pop %v2407
      %v2409 = vld [vmem:[%s13] sm:$0xff]
      %v2410 = vld [vmem:[%s13 + $0x8] sm:$0xff]
      %v2411 = vld [vmem:[%s13 + $0x10] sm:$0xf]
      %v2412 = vld [vmem:[%s13 + $0x18] sm:$0xf]
      %v2413 = vld [vmem:[%s14] sm:$0xff]
      %v2414 = vld [vmem:[%s14 + $0x8] sm:$0xff]
      %v2415 = vld [vmem:[%s14 + $0x10] sm:$0xf]
      %v2416 = vld [vmem:[%s14 + $0x18] sm:$0xf]
      %v2418 = vsel %vm557, %v2403, 0
      %vm2420 = vcmask 1043456
      %v2422 = vsel %vm2420, %v2411, 0
      %v2425 = vsel %vm2420, %v2412, 0
      %2427 = vmatprep.subr.mxu0 %v2410
      %2428 = vmatpush1.msra.mxu0 %v2409
      %2429 = vmatprep.subr.mxu0 %v2425
      %2430 = vmatpush1.msra.mxu0 %v2422
      %2431 = vmatprep.subr.mxu0 0.0
      %2432 = vmatpush1.msra.mxu0 0.0
      %2433 = vmatprep.subr.mxu0 0.0
      %2434 = vmatpush1.msra.mxu0 0.0
      %2435 = vmatprep.subr.mxu0 0.0
      %2436 = vmatpush1.msra.mxu0 0.0
      %2437 = vmatprep.subr.mxu0 0.0
      %2438 = vmatpush1.msra.mxu0 0.0
      %2439 = vmatprep.subr.mxu0 0.0
      %2440 = vmatpush1.msra.mxu0 0.0
      %2441 = vmatprep.subr.mxu0 0.0
      %2442 = vmatpush1.msra.mxu0 0.0
      %2443 = vmatprep.subr.mxu0 0.0
      %2444 = vmatpush1.msra.mxu0 0.0
      %2445 = vmatprep.subr.mxu0 0.0
      %2446 = vmatpush1.msra.mxu0 0.0
      %2447 = vmatprep.subr.mxu0 0.0
      %2448 = vmatpush1.msra.mxu0 0.0
      %2449 = vmatprep.subr.mxu0 0.0
      %2450 = vmatpush1.msra.mxu0 0.0
      %2451 = vmatprep.subr.mxu0 0.0
      %2452 = vmatpush1.msra.mxu0 0.0
      %2453 = vmatprep.subr.mxu0 0.0
      %2454 = vmatpush1.msra.mxu0 0.0
      %2455 = vmatprep.subr.mxu0 0.0
      %2456 = vmatpush1.msra.mxu0 0.0
      %2457 = vmatprep.subr.mxu0 0.0
      %2458 = vmatpush1.msra.mxu0 0.0
      %2459 = vmatprep.subr.mxu0 0.0
      %2460 = vmatpush1.msra.mxu0 0.0
      %2461 = vmatprep.subr.mxu0 0.0
      %2462 = vmatpush1.msra.mxu0 0.0
      %2463 = vmatprep.subr.mxu0 0.0
      %2464 = vmatpush1.msra.mxu0 0.0
      %2465 = vmatprep.subr.mxu0 0.0
      %2466 = vmatpush1.msra.mxu0 0.0
      %2467 = vmatprep.subr.mxu0 0.0
      %2468 = vmatpush1.msra.mxu0 0.0
      %2469 = vmatprep.subr.mxu0 0.0
      %2470 = vmatpush1.msra.mxu0 0.0
      %2471 = vmatprep.subr.mxu0 0.0
      %2472 = vmatpush1.msra.mxu0 0.0
      %2473 = vmatprep.subr.mxu0 0.0
      %2474 = vmatpush1.msra.mxu0 0.0
      %2475 = vmatprep.subr.mxu0 0.0
      %2476 = vmatpush1.msra.mxu0 0.0
      %2477 = vmatprep.subr.mxu0 0.0
      %2478 = vmatpush1.msra.mxu0 0.0
      %2479 = vmatprep.subr.mxu0 0.0
      %2480 = vmatpush1.msra.mxu0 0.0
      %2481 = vmatprep.subr.mxu0 0.0
      %2482 = vmatpush1.msra.mxu0 0.0
      %2483 = vmatprep.subr.mxu0 0.0
      %2484 = vmatpush1.msra.mxu0 0.0
      %2485 = vmatprep.subr.mxu0 0.0
      %2486 = vmatpush1.msra.mxu0 0.0
      %2487 = vmatprep.subr.mxu0 0.0
      %2488 = vmatpush1.msra.mxu0 0.0
      %2489 = vmatprep.subr.mxu0 0.0
      %2490 = vmatpush1.msra.mxu0 0.0
      %2491 = vmatprep.mubr.f32.mxu0 0.0
      %2492 = vmatmul.mubr.f32.gmra.mrb[0].mxu0 %v2418
      %v2493 = vpop.f32.mrb[0].mxu0
      %v2494 = vadd.f32 0.0, %v2493
      %v2495 = vpop.f32.mrb[0].mxu0
      %v2496 = vadd.f32 0.0, %v2495
      %2497 = vdwg.mxu0
      %2498 = vrot.lane.b32.xlu0 %v2403, 116
      %v2499 = vpop.permute.xlu0 %2498
      %v2500 = vsel %vm557, %v2499, 0
      %2502 = vmatprep.subr.mxu0 %v2410
      %2503 = vmatpush1.msra.mxu0 %v2409
      %2504 = vmatprep.subr.mxu0 %v2425
      %2505 = vmatpush1.msra.mxu0 %v2422
      %2506 = vmatprep.subr.mxu0 0.0
      %2507 = vmatpush1.msra.mxu0 0.0
      %2508 = vmatprep.subr.mxu0 0.0
      %2509 = vmatpush1.msra.mxu0 0.0
      %2510 = vmatprep.subr.mxu0 0.0
      %2511 = vmatpush1.msra.mxu0 0.0
      %2512 = vmatprep.subr.mxu0 0.0
      %2513 = vmatpush1.msra.mxu0 0.0
      %2514 = vmatprep.subr.mxu0 0.0
      %2515 = vmatpush1.msra.mxu0 0.0
      %2516 = vmatprep.subr.mxu0 0.0
      %2517 = vmatpush1.msra.mxu0 0.0
      %2518 = vmatprep.subr.mxu0 0.0
      %2519 = vmatpush1.msra.mxu0 0.0
      %2520 = vmatprep.subr.mxu0 0.0
      %2521 = vmatpush1.msra.mxu0 0.0
      %2522 = vmatprep.subr.mxu0 0.0
      %2523 = vmatpush1.msra.mxu0 0.0
      %2524 = vmatprep.subr.mxu0 0.0
      %2525 = vmatpush1.msra.mxu0 0.0
      %2526 = vmatprep.subr.mxu0 0.0
      %2527 = vmatpush1.msra.mxu0 0.0
      %2528 = vmatprep.subr.mxu0 0.0
      %2529 = vmatpush1.msra.mxu0 0.0
      %2530 = vmatprep.subr.mxu0 0.0
      %2531 = vmatpush1.msra.mxu0 0.0
      %2532 = vmatprep.subr.mxu0 0.0
      %2533 = vmatpush1.msra.mxu0 0.0
      %2534 = vmatprep.subr.mxu0 0.0
      %2535 = vmatpush1.msra.mxu0 0.0
      %2536 = vmatprep.subr.mxu0 0.0
      %2537 = vmatpush1.msra.mxu0 0.0
      %2538 = vmatprep.subr.mxu0 0.0
      %2539 = vmatpush1.msra.mxu0 0.0
      %2540 = vmatprep.subr.mxu0 0.0
      %2541 = vmatpush1.msra.mxu0 0.0
      %2542 = vmatprep.subr.mxu0 0.0
      %2543 = vmatpush1.msra.mxu0 0.0
      %2544 = vmatprep.subr.mxu0 0.0
      %2545 = vmatpush1.msra.mxu0 0.0
      %2546 = vmatprep.subr.mxu0 0.0
      %2547 = vmatpush1.msra.mxu0 0.0
      %2548 = vmatprep.subr.mxu0 0.0
      %2549 = vmatpush1.msra.mxu0 0.0
      %2550 = vmatprep.subr.mxu0 0.0
      %2551 = vmatpush1.msra.mxu0 0.0
      %2552 = vmatprep.subr.mxu0 0.0
      %2553 = vmatpush1.msra.mxu0 0.0
      %2554 = vmatprep.subr.mxu0 0.0
      %2555 = vmatpush1.msra.mxu0 0.0
      %2556 = vmatprep.subr.mxu0 0.0
      %2557 = vmatpush1.msra.mxu0 0.0
      %2558 = vmatprep.subr.mxu0 0.0
      %2559 = vmatpush1.msra.mxu0 0.0
      %2560 = vmatprep.subr.mxu0 0.0
      %2561 = vmatpush1.msra.mxu0 0.0
      %2562 = vmatprep.subr.mxu0 0.0
      %2563 = vmatpush1.msra.mxu0 0.0
      %2564 = vmatprep.subr.mxu0 0.0
      %2565 = vmatpush1.msra.mxu0 0.0
      %2566 = vmatprep.mubr.f32.mxu0 0.0
      %2567 = vmatmul.mubr.f32.gmra.mrb[0].mxu0 %v2500
      %v2568 = vpop.f32.mrb[0].mxu0
      %v2569 = vadd.f32 0.0, %v2568
      %v2570 = vpop.f32.mrb[0].mxu0
      %v2571 = vadd.f32 0.0, %v2570
      %2572 = vdwg.mxu0
      %2573 = vrot.lane.b32.xlu0 %v2403, 104
      %v2574 = vpop.permute.xlu0 %2573
      %v2575 = vsel %vm557, %v2574, 0
      %2577 = vmatprep.subr.mxu0 %v2410
      %2578 = vmatpush1.msra.mxu0 %v2409
      %2579 = vmatprep.subr.mxu0 %v2425
      %2580 = vmatpush1.msra.mxu0 %v2422
      %2581 = vmatprep.subr.mxu0 0.0
      %2582 = vmatpush1.msra.mxu0 0.0
      %2583 = vmatprep.subr.mxu0 0.0
      %2584 = vmatpush1.msra.mxu0 0.0
      %2585 = vmatprep.subr.mxu0 0.0
      %2586 = vmatpush1.msra.mxu0 0.0
      %2587 = vmatprep.subr.mxu0 0.0
      %2588 = vmatpush1.msra.mxu0 0.0
      %2589 = vmatprep.subr.mxu0 0.0
      %2590 = vmatpush1.msra.mxu0 0.0
      %2591 = vmatprep.subr.mxu0 0.0
      %2592 = vmatpush1.msra.mxu0 0.0
      %2593 = vmatprep.subr.mxu0 0.0
      %2594 = vmatpush1.msra.mxu0 0.0
      %2595 = vmatprep.subr.mxu0 0.0
      %2596 = vmatpush1.msra.mxu0 0.0
      %2597 = vmatprep.subr.mxu0 0.0
      %2598 = vmatpush1.msra.mxu0 0.0
      %2599 = vmatprep.subr.mxu0 0.0
      %2600 = vmatpush1.msra.mxu0 0.0
      %2601 = vmatprep.subr.mxu0 0.0
      %2602 = vmatpush1.msra.mxu0 0.0
      %2603 = vmatprep.subr.mxu0 0.0
      %2604 = vmatpush1.msra.mxu0 0.0
      %2605 = vmatprep.subr.mxu0 0.0
      %2606 = vmatpush1.msra.mxu0 0.0
      %2607 = vmatprep.subr.mxu0 0.0
      %2608 = vmatpush1.msra.mxu0 0.0
      %2609 = vmatprep.subr.mxu0 0.0
      %2610 = vmatpush1.msra.mxu0 0.0
      %2611 = vmatprep.subr.mxu0 0.0
      %2612 = vmatpush1.msra.mxu0 0.0
      %2613 = vmatprep.subr.mxu0 0.0
      %2614 = vmatpush1.msra.mxu0 0.0
      %2615 = vmatprep.subr.mxu0 0.0
      %2616 = vmatpush1.msra.mxu0 0.0
      %2617 = vmatprep.subr.mxu0 0.0
      %2618 = vmatpush1.msra.mxu0 0.0
      %2619 = vmatprep.subr.mxu0 0.0
      %2620 = vmatpush1.msra.mxu0 0.0
      %2621 = vmatprep.subr.mxu0 0.0
      %2622 = vmatpush1.msra.mxu0 0.0
      %2623 = vmatprep.subr.mxu0 0.0
      %2624 = vmatpush1.msra.mxu0 0.0
      %2625 = vmatprep.subr.mxu0 0.0
      %2626 = vmatpush1.msra.mxu0 0.0
      %2627 = vmatprep.subr.mxu0 0.0
      %2628 = vmatpush1.msra.mxu0 0.0
      %2629 = vmatprep.subr.mxu0 0.0
      %2630 = vmatpush1.msra.mxu0 0.0
      %2631 = vmatprep.subr.mxu0 0.0
      %2632 = vmatpush1.msra.mxu0 0.0
      %2633 = vmatprep.subr.mxu0 0.0
      %2634 = vmatpush1.msra.mxu0 0.0
      %2635 = vmatprep.subr.mxu0 0.0
      %2636 = vmatpush1.msra.mxu0 0.0
      %2637 = vmatprep.subr.mxu0 0.0
      %2638 = vmatpush1.msra.mxu0 0.0
      %2639 = vmatprep.subr.mxu0 0.0
      %2640 = vmatpush1.msra.mxu0 0.0
      %2641 = vmatprep.mubr.f32.mxu0 0.0
      %2642 = vmatmul.mubr.f32.gmra.mrb[0].mxu0 %v2575
      %v2643 = vpop.f32.mrb[0].mxu0
      %v2644 = vadd.f32 0.0, %v2643
      %v2645 = vpop.f32.mrb[0].mxu0
      %v2646 = vadd.f32 0.0, %v2645
      %2647 = vdwg.mxu0
      %v2649 = vsel %vm557, %v2408, 0
      %v2652 = vsel %vm2420, %v2415, 0
      %v2655 = vsel %vm2420, %v2416, 0
      %2657 = vmatprep.subr.mxu0 %v2414
      %2658 = vmatpush1.msra.mxu0 %v2413
      %2659 = vmatprep.subr.mxu0 %v2655
      %2660 = vmatpush1.msra.mxu0 %v2652
      %2661 = vmatprep.subr.mxu0 0.0
      %2662 = vmatpush1.msra.mxu0 0.0
      %2663 = vmatprep.subr.mxu0 0.0
      %2664 = vmatpush1.msra.mxu0 0.0
      %2665 = vmatprep.subr.mxu0 0.0
      %2666 = vmatpush1.msra.mxu0 0.0
      %2667 = vmatprep.subr.mxu0 0.0
      %2668 = vmatpush1.msra.mxu0 0.0
      %2669 = vmatprep.subr.mxu0 0.0
      %2670 = vmatpush1.msra.mxu0 0.0
      %2671 = vmatprep.subr.mxu0 0.0
      %2672 = vmatpush1.msra.mxu0 0.0
      %2673 = vmatprep.subr.mxu0 0.0
      %2674 = vmatpush1.msra.mxu0 0.0
      %2675 = vmatprep.subr.mxu0 0.0
      %2676 = vmatpush1.msra.mxu0 0.0
      %2677 = vmatprep.subr.mxu0 0.0
      %2678 = vmatpush1.msra.mxu0 0.0
      %2679 = vmatprep.subr.mxu0 0.0
      %2680 = vmatpush1.msra.mxu0 0.0
      %2681 = vmatprep.subr.mxu0 0.0
      %2682 = vmatpush1.msra.mxu0 0.0
      %2683 = vmatprep.subr.mxu0 0.0
      %2684 = vmatpush1.msra.mxu0 0.0
      %2685 = vmatprep.subr.mxu0 0.0
      %2686 = vmatpush1.msra.mxu0 0.0
      %2687 = vmatprep.subr.mxu0 0.0
      %2688 = vmatpush1.msra.mxu0 0.0
      %2689 = vmatprep.subr.mxu0 0.0
      %2690 = vmatpush1.msra.mxu0 0.0
      %2691 = vmatprep.subr.mxu0 0.0
      %2692 = vmatpush1.msra.mxu0 0.0
      %2693 = vmatprep.subr.mxu0 0.0
      %2694 = vmatpush1.msra.mxu0 0.0
      %2695 = vmatprep.subr.mxu0 0.0
      %2696 = vmatpush1.msra.mxu0 0.0
      %2697 = vmatprep.subr.mxu0 0.0
      %2698 = vmatpush1.msra.mxu0 0.0
      %2699 = vmatprep.subr.mxu0 0.0
      %2700 = vmatpush1.msra.mxu0 0.0
      %2701 = vmatprep.subr.mxu0 0.0
      %2702 = vmatpush1.msra.mxu0 0.0
      %2703 = vmatprep.subr.mxu0 0.0
      %2704 = vmatpush1.msra.mxu0 0.0
      %2705 = vmatprep.subr.mxu0 0.0
      %2706 = vmatpush1.msra.mxu0 0.0
      %2707 = vmatprep.subr.mxu0 0.0
      %2708 = vmatpush1.msra.mxu0 0.0
      %2709 = vmatprep.subr.mxu0 0.0
      %2710 = vmatpush1.msra.mxu0 0.0
      %2711 = vmatprep.subr.mxu0 0.0
      %2712 = vmatpush1.msra.mxu0 0.0
      %2713 = vmatprep.subr.mxu0 0.0
      %2714 = vmatpush1.msra.mxu0 0.0
      %2715 = vmatprep.subr.mxu0 0.0
      %2716 = vmatpush1.msra.mxu0 0.0
      %2717 = vmatprep.subr.mxu0 0.0
      %2718 = vmatpush1.msra.mxu0 0.0
      %2719 = vmatprep.subr.mxu0 0.0
      %2720 = vmatpush1.msra.mxu0 0.0
      %2721 = vmatprep.mubr.f32.mxu0 0.0
      %2722 = vmatmul.mubr.f32.gmra.mrb[0].mxu0 %v2649
      %v2723 = vpop.f32.mrb[0].mxu0
      %v2724 = vadd.f32 0.0, %v2723
      %v2725 = vpop.f32.mrb[0].mxu0
      %v2726 = vadd.f32 0.0, %v2725
      %2727 = vdwg.mxu0
      %2728 = vrot.lane.b32.xlu0 %v2408, 116
      %v2729 = vpop.permute.xlu0 %2728
      %v2730 = vsel %vm557, %v2729, 0
      %2732 = vmatprep.subr.mxu0 %v2414
      %2733 = vmatpush1.msra.mxu0 %v2413
      %2734 = vmatprep.subr.mxu0 %v2655
      %2735 = vmatpush1.msra.mxu0 %v2652
      %2736 = vmatprep.subr.mxu0 0.0
      %2737 = vmatpush1.msra.mxu0 0.0
      %2738 = vmatprep.subr.mxu0 0.0
      %2739 = vmatpush1.msra.mxu0 0.0
      %2740 = vmatprep.subr.mxu0 0.0
      %2741 = vmatpush1.msra.mxu0 0.0
      %2742 = vmatprep.subr.mxu0 0.0
      %2743 = vmatpush1.msra.mxu0 0.0
      %2744 = vmatprep.subr.mxu0 0.0
      %2745 = vmatpush1.msra.mxu0 0.0
      %2746 = vmatprep.subr.mxu0 0.0
      %2747 = vmatpush1.msra.mxu0 0.0
      %2748 = vmatprep.subr.mxu0 0.0
      %2749 = vmatpush1.msra.mxu0 0.0
      %2750 = vmatprep.subr.mxu0 0.0
      %2751 = vmatpush1.msra.mxu0 0.0
      %2752 = vmatprep.subr.mxu0 0.0
      %2753 = vmatpush1.msra.mxu0 0.0
      %2754 = vmatprep.subr.mxu0 0.0
      %2755 = vmatpush1.msra.mxu0 0.0
      %2756 = vmatprep.subr.mxu0 0.0
      %2757 = vmatpush1.msra.mxu0 0.0
      %2758 = vmatprep.subr.mxu0 0.0
      %2759 = vmatpush1.msra.mxu0 0.0
      %2760 = vmatprep.subr.mxu0 0.0
      %2761 = vmatpush1.msra.mxu0 0.0
      %2762 = vmatprep.subr.mxu0 0.0
      %2763 = vmatpush1.msra.mxu0 0.0
      %2764 = vmatprep.subr.mxu0 0.0
      %2765 = vmatpush1.msra.mxu0 0.0
      %2766 = vmatprep.subr.mxu0 0.0
      %2767 = vmatpush1.msra.mxu0 0.0
      %2768 = vmatprep.subr.mxu0 0.0
      %2769 = vmatpush1.msra.mxu0 0.0
      %2770 = vmatprep.subr.mxu0 0.0
      %2771 = vmatpush1.msra.mxu0 0.0
      %2772 = vmatprep.subr.mxu0 0.0
      %2773 = vmatpush1.msra.mxu0 0.0
      %2774 = vmatprep.subr.mxu0 0.0
      %2775 = vmatpush1.msra.mxu0 0.0
      %2776 = vmatprep.subr.mxu0 0.0
      %2777 = vmatpush1.msra.mxu0 0.0
      %2778 = vmatprep.subr.mxu0 0.0
      %2779 = vmatpush1.msra.mxu0 0.0
      %2780 = vmatprep.subr.mxu0 0.0
      %2781 = vmatpush1.msra.mxu0 0.0
      %2782 = vmatprep.subr.mxu0 0.0
      %2783 = vmatpush1.msra.mxu0 0.0
      %2784 = vmatprep.subr.mxu0 0.0
      %2785 = vmatpush1.msra.mxu0 0.0
      %2786 = vmatprep.subr.mxu0 0.0
      %2787 = vmatpush1.msra.mxu0 0.0
      %2788 = vmatprep.subr.mxu0 0.0
      %2789 = vmatpush1.msra.mxu0 0.0
      %2790 = vmatprep.subr.mxu0 0.0
      %2791 = vmatpush1.msra.mxu0 0.0
      %2792 = vmatprep.subr.mxu0 0.0
      %2793 = vmatpush1.msra.mxu0 0.0
      %2794 = vmatprep.subr.mxu0 0.0
      %2795 = vmatpush1.msra.mxu0 0.0
      %2796 = vmatprep.mubr.f32.mxu0 0.0
      %2797 = vmatmul.mubr.f32.gmra.mrb[0].mxu0 %v2730
      %v2798 = vpop.f32.mrb[0].mxu0
      %v2799 = vadd.f32 0.0, %v2798
      %v2800 = vpop.f32.mrb[0].mxu0
      %v2801 = vadd.f32 0.0, %v2800
      %2802 = vdwg.mxu0
      %2803 = vrot.lane.b32.xlu0 %v2408, 104
      %v2804 = vpop.permute.xlu0 %2803
      %v2805 = vsel %vm557, %v2804, 0
      %2807 = vmatprep.subr.mxu0 %v2414
      %2808 = vmatpush1.msra.mxu0 %v2413
      %2809 = vmatprep.subr.mxu0 %v2655
      %2810 = vmatpush1.msra.mxu0 %v2652
      %2811 = vmatprep.subr.mxu0 0.0
      %2812 = vmatpush1.msra.mxu0 0.0
      %2813 = vmatprep.subr.mxu0 0.0
      %2814 = vmatpush1.msra.mxu0 0.0
      %2815 = vmatprep.subr.mxu0 0.0
      %2816 = vmatpush1.msra.mxu0 0.0
      %2817 = vmatprep.subr.mxu0 0.0
      %2818 = vmatpush1.msra.mxu0 0.0
      %2819 = vmatprep.subr.mxu0 0.0
      %2820 = vmatpush1.msra.mxu0 0.0
      %2821 = vmatprep.subr.mxu0 0.0
      %2822 = vmatpush1.msra.mxu0 0.0
      %2823 = vmatprep.subr.mxu0 0.0
      %2824 = vmatpush1.msra.mxu0 0.0
      %2825 = vmatprep.subr.mxu0 0.0
      %2826 = vmatpush1.msra.mxu0 0.0
      %2827 = vmatprep.subr.mxu0 0.0
      %2828 = vmatpush1.msra.mxu0 0.0
      %2829 = vmatprep.subr.mxu0 0.0
      %2830 = vmatpush1.msra.mxu0 0.0
      %2831 = vmatprep.subr.mxu0 0.0
      %2832 = vmatpush1.msra.mxu0 0.0
      %2833 = vmatprep.subr.mxu0 0.0
      %2834 = vmatpush1.msra.mxu0 0.0
      %2835 = vmatprep.subr.mxu0 0.0
      %2836 = vmatpush1.msra.mxu0 0.0
      %2837 = vmatprep.subr.mxu0 0.0
      %2838 = vmatpush1.msra.mxu0 0.0
      %2839 = vmatprep.subr.mxu0 0.0
      %2840 = vmatpush1.msra.mxu0 0.0
      %2841 = vmatprep.subr.mxu0 0.0
      %2842 = vmatpush1.msra.mxu0 0.0
      %2843 = vmatprep.subr.mxu0 0.0
      %2844 = vmatpush1.msra.mxu0 0.0
      %2845 = vmatprep.subr.mxu0 0.0
      %2846 = vmatpush1.msra.mxu0 0.0
      %2847 = vmatprep.subr.mxu0 0.0
      %2848 = vmatpush1.msra.mxu0 0.0
      %2849 = vmatprep.subr.mxu0 0.0
      %2850 = vmatpush1.msra.mxu0 0.0
      %2851 = vmatprep.subr.mxu0 0.0
      %2852 = vmatpush1.msra.mxu0 0.0
      %2853 = vmatprep.subr.mxu0 0.0
      %2854 = vmatpush1.msra.mxu0 0.0
      %2855 = vmatprep.subr.mxu0 0.0
      %2856 = vmatpush1.msra.mxu0 0.0
      %2857 = vmatprep.subr.mxu0 0.0
      %2858 = vmatpush1.msra.mxu0 0.0
      %2859 = vmatprep.subr.mxu0 0.0
      %2860 = vmatpush1.msra.mxu0 0.0
      %2861 = vmatprep.subr.mxu0 0.0
      %2862 = vmatpush1.msra.mxu0 0.0
      %2863 = vmatprep.subr.mxu0 0.0
      %2864 = vmatpush1.msra.mxu0 0.0
      %2865 = vmatprep.subr.mxu0 0.0
      %2866 = vmatpush1.msra.mxu0 0.0
      %2867 = vmatprep.subr.mxu0 0.0
      %2868 = vmatpush1.msra.mxu0 0.0
      %2869 = vmatprep.subr.mxu0 0.0
      %2870 = vmatpush1.msra.mxu0 0.0
      %2871 = vmatprep.mubr.f32.mxu0 0.0
      %2872 = vmatmul.mubr.f32.gmra.mrb[0].mxu0 %v2805
      %v2873 = vpop.f32.mrb[0].mxu0
      %v2874 = vadd.f32 0.0, %v2873
      %v2875 = vpop.f32.mrb[0].mxu0
      %v2876 = vadd.f32 0.0, %v2875
      %2877 = vdwg.mxu0
      %v2878 = vmul.f32 %v751, %v2494
      %v2879 = vmul.f32 %v752, %v2496
      %v2880 = vmul.f32 %v2878, %v2724
      %v2881 = vmul.f32 %v2879, %v2726
      %v2882 = vmul.f32 %v901, %v2494
      %v2883 = vmul.f32 %v902, %v2496
      %v2884 = vmul.f32 %v2882, %v2799
      %v2885 = vmul.f32 %v2883, %v2801
      %v2886 = vmul.f32 %v1051, %v2494
      %v2887 = vmul.f32 %v1052, %v2496
      %v2888 = vmul.f32 %v2886, %v2874
      %v2889 = vmul.f32 %v2887, %v2876
      %v2890 = vmul.f32 %v1201, %v2569
      %v2891 = vmul.f32 %v1202, %v2571
      %v2892 = vmul.f32 %v2890, %v2724
      %v2893 = vmul.f32 %v2891, %v2726
      %v2894 = vmul.f32 %v1351, %v2569
      %v2895 = vmul.f32 %v1352, %v2571
      %v2896 = vmul.f32 %v2894, %v2799
      %v2897 = vmul.f32 %v2895, %v2801
      %v2898 = vmul.f32 %v1501, %v2569
      %v2899 = vmul.f32 %v1502, %v2571
      %v2900 = vmul.f32 %v2898, %v2874
      %v2901 = vmul.f32 %v2899, %v2876
      %v2902 = vmul.f32 %v1651, %v2644
      %v2903 = vmul.f32 %v1652, %v2646
      %v2904 = vmul.f32 %v2902, %v2724
      %v2905 = vmul.f32 %v2903, %v2726
      %v2906 = vmul.f32 %v1801, %v2644
      %v2907 = vmul.f32 %v1802, %v2646
      %v2908 = vmul.f32 %v2906, %v2799
      %v2909 = vmul.f32 %v2907, %v2801
      %v2910 = vmul.f32 %v1951, %v2644
      %v2911 = vmul.f32 %v1952, %v2646
      %v2912 = vmul.f32 %v2910, %v2874
      %v2913 = vmul.f32 %v2911, %v2876
      %v2914 = vld [vmem:[%s10] sm:$0xff]
      %v2915 = vld [vmem:[%s11] sm:$0xff]
      %2917 = vset.pattern.permute.xlu0 0
      %2918 = vperm.xlu0 %2917, %v2915
      %v2919 = vpop.permute.xlu0 %2918
      %vm2921 = vcmask 588800
      %v2923 = vsel %vm2921, %v2914, 0
      %2925 = vmatprep.subr.mxu0 %v2881
      %2926 = vmatpush1.msra.mxu0 %v2880
      %2927 = vmatprep.subr.mxu0 %v2885
      %2928 = vmatpush1.msra.mxu0 %v2884
      %2929 = vmatprep.subr.mxu0 %v2889
      %2930 = vmatpush1.msra.mxu0 %v2888
      %2931 = vmatprep.subr.mxu0 %v2893
      %2932 = vmatpush1.msra.mxu0 %v2892
      %2933 = vmatprep.subr.mxu0 %v2897
      %2934 = vmatpush1.msra.mxu0 %v2896
      %2935 = vmatprep.subr.mxu0 %v2901
      %2936 = vmatpush1.msra.mxu0 %v2900
      %2937 = vmatprep.subr.mxu0 %v2905
      %2938 = vmatpush1.msra.mxu0 %v2904
      %2939 = vmatprep.subr.mxu0 %v2909
      %2940 = vmatpush1.msra.mxu0 %v2908
      %2941 = vmatprep.subr.mxu0 %v2913
      %2942 = vmatpush1.msra.mxu0 %v2912
      %2943 = vmatprep.subr.mxu0 0.0
      %2944 = vmatpush1.msra.mxu0 0.0
      %2945 = vmatprep.subr.mxu0 0.0
      %2946 = vmatpush1.msra.mxu0 0.0
      %2947 = vmatprep.subr.mxu0 0.0
      %2948 = vmatpush1.msra.mxu0 0.0
      %2949 = vmatprep.subr.mxu0 0.0
      %2950 = vmatpush1.msra.mxu0 0.0
      %2951 = vmatprep.subr.mxu0 0.0
      %2952 = vmatpush1.msra.mxu0 0.0
      %2953 = vmatprep.subr.mxu0 0.0
      %2954 = vmatpush1.msra.mxu0 0.0
      %2955 = vmatprep.subr.mxu0 0.0
      %2956 = vmatpush1.msra.mxu0 0.0
      %2957 = vmatprep.subr.mxu0 0.0
      %2958 = vmatpush1.msra.mxu0 0.0
      %2959 = vmatprep.subr.mxu0 0.0
      %2960 = vmatpush1.msra.mxu0 0.0
      %2961 = vmatprep.subr.mxu0 0.0
      %2962 = vmatpush1.msra.mxu0 0.0
      %2963 = vmatprep.subr.mxu0 0.0
      %2964 = vmatpush1.msra.mxu0 0.0
      %2965 = vmatprep.subr.mxu0 0.0
      %2966 = vmatpush1.msra.mxu0 0.0
      %2967 = vmatprep.subr.mxu0 0.0
      %2968 = vmatpush1.msra.mxu0 0.0
      %2969 = vmatprep.subr.mxu0 0.0
      %2970 = vmatpush1.msra.mxu0 0.0
      %2971 = vmatprep.subr.mxu0 0.0
      %2972 = vmatpush1.msra.mxu0 0.0
      %2973 = vmatprep.subr.mxu0 0.0
      %2974 = vmatpush1.msra.mxu0 0.0
      %2975 = vmatprep.subr.mxu0 0.0
      %2976 = vmatpush1.msra.mxu0 0.0
      %2977 = vmatprep.subr.mxu0 0.0
      %2978 = vmatpush1.msra.mxu0 0.0
      %2979 = vmatprep.subr.mxu0 0.0
      %2980 = vmatpush1.msra.mxu0 0.0
      %2981 = vmatprep.subr.mxu0 0.0
      %2982 = vmatpush1.msra.mxu0 0.0
      %2983 = vmatprep.subr.mxu0 0.0
      %2984 = vmatpush1.msra.mxu0 0.0
      %2985 = vmatprep.subr.mxu0 0.0
      %2986 = vmatpush1.msra.mxu0 0.0
      %2987 = vmatprep.subr.mxu0 0.0
      %2988 = vmatpush1.msra.mxu0 0.0
      %2989 = vmatprep.mubr.f32.mxu0 0.0
      %2990 = vmatmul.mubr.f32.gmra.mrb[0].mxu0 %v2923
      %v2991 = vpop.f32.mrb[0].mxu0
      %v2992 = vadd.f32 %v2919, %v2991
      %v2993 = vpop.f32.mrb[0].mxu0
      %v2994 = vadd.f32 %v2919, %v2993
      %2995 = vdwg.mxu0
      %2996 = vst [vmem:[%s494] sm:$0xff] %v2992
      %2997 = vst.msk [vmem:[%s494 + $0x8] sm:$0xff] %vm1971, %v2994
      %p2998 = scmp.lt.s32.totalorder %s26, 1
      %s2999 = scalar_select %p2998, %s26, 1
      %s3000 = smul.addr %s2999, 2
      %s3001 = smul.addr %s3000, 8
      %s3002 = scalar_lea.vmem %s15, %s3001
      // Predicated region
      $region81: #{rfca_forward_pallas.1} parent=79 // pred_check
        %p3003 = pneg %p364
      $region82: #{rfca_forward_pallas.1} parent=79 // pred_check_branch
        %3005 = sbr.rel (%p3003) target = $region84
      $region83: #{rfca_forward_pallas.1} parent=79 // pred_region
        _
      $region84: #{rfca_forward_pallas.1} parent=79 // pred_fallthru
        _
    $region80: #{rfca_forward_pallas.1} parent=5 // pred_fallthru
      _
    %p3006 = scmp.le.s32.totalorder 2, %s21
    // Predicated region
    $region85: #{rfca_forward_pallas.1} parent=5 // pred_check
      %p3007 = pneg %p3006
    $region86: #{rfca_forward_pallas.1} parent=5 // pred_check_branch
      %3009 = sbr.rel (%p3007) target = $region88
    $region87: #{rfca_forward_pallas.1} parent=5 // pred_region
      %s3010 = ssub.s32 %s21, 2
      // Predicated region
      $region89: #{rfca_forward_pallas.1} parent=87 // pred_check
        %p3011 = pneg %p370
      $region90: #{rfca_forward_pallas.1} parent=87 // pred_check_branch
        %3013 = sbr.rel (%p3011) target = $region92
      $region91: #{rfca_forward_pallas.1} parent=87 // pred_region
        %p3014 = scmp.lt.s32.totalorder %s27, 1
        %s3015 = scalar_select %p3014, %s27, 1
        %s3016 = smul.addr %s3015, 2
        %s3017 = smul.addr %s3016, 8
        %s3018 = scalar_lea.vmem %s15, %s3017
      $region92: #{rfca_forward_pallas.1} parent=87 // pred_fallthru
        _
    $region88: #{rfca_forward_pallas.1} parent=5 // pred_fallthru
      _
  $region6: #{rfca_forward_pallas.1} parent=0 // loop_footer
    %s25 = sadd.s32 1, %s21
  $region7: #{rfca_forward_pallas.1} parent=0 // loop_footer_branch
    %20 = sbr.rel target = $region3
  $region8: #{rfca_forward_pallas.1} parent=0 // loop_exit
    _

</llo_original>
